<compile_context>
chip_gen: v7x
topology: tpu7x:2x2x1
jax: 0.10.0
libtpu: 0.0.40
codegen_flags: <defaults>
</compile_context>

<pallas_src>
import functools

import jax
import jax.numpy as jnp
from jax.experimental import pallas as pl
from jax.experimental.pallas import tpu as pltpu


def _nerf_kernel(pts_ref, w0_ref, b0_ref, wh_ref, bh_ref, wskip_ref,
                 wout_ref, bout_ref, sigma_ref, rgb_ref, *, skip_l, n_hidden):
    """Fused NeRF MLP for one tile of rays (rows)."""
    x = pts_ref[...]                                   # (tile_n, C), C = 3

    def affine_from_pts(w):
        # (tile_n, C) x (C, W) with tiny C: VPU broadcasts instead of MXU.
        acc = x[:, 0:1] * w[0:1, :]
        for c in range(1, x.shape[1]):
            acc = acc + x[:, c:c + 1] * w[c:c + 1, :]
        return acc                                     # (tile_n, W)

    # Layer 0: Linear(input_ch, W) + ReLU
    h = jnp.maximum(affine_from_pts(w0_ref[...]) + b0_ref[...], 0.0)

    # Hidden layers 1..D-1 (skip layer's pts-columns folded in as an extra
    # broadcast term so every MXU matmul stays a clean (W, W) contraction).
    for l in range(n_hidden):
        pre = jnp.dot(h, wh_ref[l], preferred_element_type=jnp.float32)
        pre = pre + bh_ref[l]
        if l == skip_l:
            pre = pre + affine_from_pts(wskip_ref[...])
        h = jnp.maximum(pre, 0.0)

    # Output head: Linear(W, 4) with output width 4 -> lane reductions.
    wout = wout_ref[...]                               # (4, W), pre-transposed
    bout = bout_ref[...]                               # (1, 4)
    rgb_cols = []
    for j in range(3):
        col = jnp.sum(h * wout[j:j + 1, :], axis=-1, keepdims=True)
        rgb_cols.append(col + bout[:, j:j + 1])
    rgb_ref[...] = jax.nn.sigmoid(
        jnp.concatenate(rgb_cols, axis=-1)).astype(rgb_ref.dtype)
    sigma = jnp.sum(h * wout[3:4, :], axis=-1, keepdims=True) + bout[:, 3:4]
    sigma_ref[...] = sigma.astype(sigma_ref.dtype)


def nerf_forward(input_pts, input_views, ws, bs, w_out, b_out, *, tile_n=128):
    """Pallas TPU implementation of NeRF.forward (use_view_dirs=False,
    multires=-1 so both embedders are Identity).

    ws[i]: (in_dim_i, W) transposed Linear weights, bs[i]: (W,) biases,
    w_out: (W, 4), b_out: (4,). Returns (sigma [N], rgb [N, 3])."""
    # TODO(synk): use_view_dirs=True branch (feature/alpha/views_linears/rgb
    # heads) and multires>=0 positional Embedder are disabled by the module
    # defaults and are not implemented in-kernel.
    del input_views                                    # unused when use_view_dirs=False
    N, C = input_pts.shape
    W = ws[0].shape[1]
    D = len(ws)
    out_ch = w_out.shape[1]
    assert out_ch == 4, "output_ch must be 4 (rgb + sigma)"

    w0 = ws[0]                                         # (C, W)
    b0 = bs[0].reshape(1, W)

    skip_l = None
    w_skip = jnp.zeros((C, W), dtype=input_pts.dtype)
    wh_list, bh_list = [], []
    for i in range(1, D):
        w = ws[i]
        if w.shape[0] == W + C:                        # skip layer: cat([pts, h])
            w_skip = w[:C, :]
            w = w[C:, :]
            skip_l = i - 1
        wh_list.append(w)
        bh_list.append(bs[i].reshape(1, W))
    wh = jnp.stack(wh_list, axis=0)                    # (D-1, W, W)
    bh = jnp.stack(bh_list, axis=0)                    # (D-1, 1, W)
    wout_t = w_out.T                                   # (4, W)
    bout = b_out.reshape(1, out_ch)

    n_hidden = D - 1
    grid = (pl.cdiv(N, tile_n),)
    kernel = functools.partial(_nerf_kernel, skip_l=skip_l, n_hidden=n_hidden)

    sigma2d, rgb = pl.pallas_call(
        kernel,
        out_shape=(
            jax.ShapeDtypeStruct((N, 1), input_pts.dtype),
            jax.ShapeDtypeStruct((N, 3), input_pts.dtype),
        ),
        grid_spec=pl.GridSpec(
            grid=grid,
            in_specs=[
                pl.BlockSpec((tile_n, C), lambda i: (i, 0)),
                pl.BlockSpec((C, W), lambda i: (0, 0)),
                pl.BlockSpec((1, W), lambda i: (0, 0)),
                pl.BlockSpec((n_hidden, W, W), lambda i: (0, 0, 0)),
                pl.BlockSpec((n_hidden, 1, W), lambda i: (0, 0, 0)),
                pl.BlockSpec((C, W), lambda i: (0, 0)),
                pl.BlockSpec((out_ch, W), lambda i: (0, 0)),
                pl.BlockSpec((1, out_ch), lambda i: (0, 0)),
            ],
            out_specs=(
                pl.BlockSpec((tile_n, 1), lambda i: (i, 0)),
                pl.BlockSpec((tile_n, 3), lambda i: (i, 0)),
            ),
        ),
        compiler_params=pltpu.CompilerParams(
            dimension_semantics=("parallel",),
        ),
    )(input_pts, w0, b0, wh, bh, w_skip, wout_t, bout)

    return sigma2d[:, 0], rgb


def nerf_reference(input_pts, input_views, ws, bs, w_out, b_out, skips=(4,)):
    """Plain-JAX reference matching the PyTorch forward (use_view_dirs=False)."""
    del input_views
    h = input_pts
    for i in range(len(ws)):
        h = jnp.maximum(
            jnp.dot(h, ws[i], precision=jax.lax.Precision.HIGHEST) + bs[i], 0.0)
        if i in skips:
            h = jnp.concatenate([input_pts, h], axis=-1)
    out = jnp.dot(h, w_out, precision=jax.lax.Precision.HIGHEST) + b_out
    rgb = jax.nn.sigmoid(out[..., :3])
    sigma = out[..., 3]
    return sigma, rgb


if __name__ == "__main__":
    key = jax.random.PRNGKey(0)

    # NeRF defaults: D=8, W=256, input_ch=3, output_ch=4, skips=[4],
    # use_view_dirs=False, multires=-1 (Identity embedders).
    D, W, input_ch, input_ch_view, output_ch = 8, 256, 3, 3, 4
    skips = [4]
    N = 512                                            # number of sample points (rays)

    in_dims = []
    for i in range(D):
        if i == 0:
            in_dims.append(input_ch)
        elif (i - 1) in skips:
            in_dims.append(W + input_ch)
        else:
            in_dims.append(W)

    ks = jax.random.split(key, 2 * D + 4)
    ws, bs = [], []
    for i in range(D):
        fan_in = in_dims[i]
        w = jax.random.normal(ks[2 * i], (fan_in, W), dtype=jnp.float32)
        ws.append(w / jnp.sqrt(jnp.float32(fan_in)))
        bs.append(0.01 * jax.random.normal(ks[2 * i + 1], (W,), dtype=jnp.float32))
    w_out = jax.random.normal(ks[2 * D], (W, output_ch), dtype=jnp.float32)
    w_out = w_out / jnp.sqrt(jnp.float32(W))
    b_out = 0.01 * jax.random.normal(ks[2 * D + 1], (output_ch,), dtype=jnp.float32)

    input_pts = jax.random.normal(ks[2 * D + 2], (N, input_ch), dtype=jnp.float32)
    input_views = jax.random.normal(ks[2 * D + 3], (N, input_ch_view),
                                    dtype=jnp.float32)

    sigma, rgb = nerf_forward(input_pts, input_views, ws, bs, w_out, b_out)
    sigma = jax.block_until_ready(sigma)
    rgb = jax.block_until_ready(rgb)

    sigma_ref, rgb_ref = nerf_reference(input_pts, input_views, ws, bs,
                                        w_out, b_out, skips=tuple(skips))

    assert sigma.shape == (N,) and rgb.shape == (N, 3)
    assert sigma.dtype == input_pts.dtype and rgb.dtype == input_pts.dtype
    assert jnp.allclose(sigma, sigma_ref, atol=2e-3, rtol=2e-3)
    assert jnp.allclose(rgb, rgb_ref, atol=2e-3, rtol=2e-3)

    print("KERNEL_OK")
</pallas_src>

<mosaic_0001>
module attributes {stable_mosaic.version = 11 : i64} {
  func.func @_nerf_kernel(%arg0: i32, %arg1: memref<128x3xf32, #tpu.memory_space<vmem>>, %arg2: memref<3x256xf32, #tpu.memory_space<vmem>>, %arg3: memref<1x256xf32, #tpu.memory_space<vmem>>, %arg4: memref<7x256x256xf32, #tpu.memory_space<vmem>>, %arg5: memref<7x1x256xf32, #tpu.memory_space<vmem>>, %arg6: memref<3x256xf32, #tpu.memory_space<vmem>>, %arg7: memref<4x256xf32, #tpu.memory_space<vmem>>, %arg8: memref<1x4xf32, #tpu.memory_space<vmem>>, %arg9: memref<128x1xf32, #tpu.memory_space<vmem>>, %arg10: memref<128x3xf32, #tpu.memory_space<vmem>>) attributes {dimension_semantics = [#tpu.dimension_semantics<parallel>], iteration_bounds = array<i64: 4>, scalar_prefetch = 0 : i64, scratch_operands = 0 : i64, tpu.core_type = #tpu.core_type<tc>, window_params = [{transform_indices = @transform_0, window_bounds = array<i64: 128, 3>}, {pipeline_mode = #tpu.pipeline_mode<synchronous>, transform_indices = @transform_1, window_bounds = array<i64: 3, 256>}, {pipeline_mode = #tpu.pipeline_mode<synchronous>, transform_indices = @transform_2, window_bounds = array<i64: 1, 256>}, {pipeline_mode = #tpu.pipeline_mode<synchronous>, transform_indices = @transform_3, window_bounds = array<i64: 7, 256, 256>}, {pipeline_mode = #tpu.pipeline_mode<synchronous>, transform_indices = @transform_4, window_bounds = array<i64: 7, 1, 256>}, {pipeline_mode = #tpu.pipeline_mode<synchronous>, transform_indices = @transform_5, window_bounds = array<i64: 3, 256>}, {pipeline_mode = #tpu.pipeline_mode<synchronous>, transform_indices = @transform_6, window_bounds = array<i64: 4, 256>}, {pipeline_mode = #tpu.pipeline_mode<synchronous>, transform_indices = @transform_7, window_bounds = array<i64: 1, 4>}, {transform_indices = @transform_8, window_bounds = array<i64: 128, 1>}, {transform_indices = @transform_9, window_bounds = array<i64: 128, 3>}]} {
    %c0 = arith.constant 0 : index
    %c0_0 = arith.constant 0 : index
    %0 = vector.load %arg1[%c0, %c0_0] : memref<128x3xf32, #tpu.memory_space<vmem>>, vector<128x3xf32>
    %c0_1 = arith.constant 0 : index
    %c0_2 = arith.constant 0 : index
    %1 = vector.load %arg2[%c0_1, %c0_2] : memref<3x256xf32, #tpu.memory_space<vmem>>, vector<3x256xf32>
    %2 = vector.extract_strided_slice %0 {offsets = [0, 0], sizes = [128, 1], strides = [1, 1]} : vector<128x3xf32> to vector<128x1xf32>
    %3 = vector.extract_strided_slice %1 {offsets = [0, 0], sizes = [1, 256], strides = [1, 1]} : vector<3x256xf32> to vector<1x256xf32>
    %4 = vector.broadcast %2 : vector<128x1xf32> to vector<128x256xf32>
    %5 = vector.broadcast %3 : vector<1x256xf32> to vector<128x256xf32>
    %6 = arith.mulf %4, %5 : vector<128x256xf32>
    %7 = vector.extract_strided_slice %0 {offsets = [0, 1], sizes = [128, 1], strides = [1, 1]} : vector<128x3xf32> to vector<128x1xf32>
    %8 = vector.extract_strided_slice %1 {offsets = [1, 0], sizes = [1, 256], strides = [1, 1]} : vector<3x256xf32> to vector<1x256xf32>
    %9 = vector.broadcast %7 : vector<128x1xf32> to vector<128x256xf32>
    %10 = vector.broadcast %8 : vector<1x256xf32> to vector<128x256xf32>
    %11 = arith.mulf %9, %10 : vector<128x256xf32>
    %12 = arith.addf %6, %11 : vector<128x256xf32>
    %13 = vector.extract_strided_slice %0 {offsets = [0, 2], sizes = [128, 1], strides = [1, 1]} : vector<128x3xf32> to vector<128x1xf32>
    %14 = vector.extract_strided_slice %1 {offsets = [2, 0], sizes = [1, 256], strides = [1, 1]} : vector<3x256xf32> to vector<1x256xf32>
    %15 = vector.broadcast %13 : vector<128x1xf32> to vector<128x256xf32>
    %16 = vector.broadcast %14 : vector<1x256xf32> to vector<128x256xf32>
    %17 = arith.mulf %15, %16 : vector<128x256xf32>
    %18 = arith.addf %12, %17 : vector<128x256xf32>
    %c0_3 = arith.constant 0 : index
    %c0_4 = arith.constant 0 : index
    %19 = vector.load %arg3[%c0_3, %c0_4] : memref<1x256xf32, #tpu.memory_space<vmem>>, vector<1x256xf32>
    %20 = vector.broadcast %19 : vector<1x256xf32> to vector<128x256xf32>
    %21 = arith.addf %18, %20 : vector<128x256xf32>
    %cst = arith.constant 0.000000e+00 : f32
    %22 = vector.broadcast %cst : f32 to vector<128x256xf32>
    %23 = arith.maximumf %21, %22 : vector<128x256xf32>
    %c0_5 = arith.constant 0 : index
    %c0_6 = arith.constant 0 : index
    %c0_7 = arith.constant 0 : index
    %24 = vector.load %arg4[%c0_5, %c0_6, %c0_7] : memref<7x256x256xf32, #tpu.memory_space<vmem>>, vector<1x256x256xf32>
    %25 = vector.shape_cast %24 : vector<1x256x256xf32> to vector<256x256xf32>
    %cst_8 = arith.constant dense<0.000000e+00> : vector<128x256xf32>
    %26 = tpu.matmul %23, %25, %cst_8 {dimension_numbers = #tpu.dot_dimension_numbers<[1], [0], [0], [1], [0, 0, 1, 1], [], []>} : vector<128x256xf32>, vector<256x256xf32>, vector<128x256xf32> -> vector<128x256xf32>
    %c0_9 = arith.constant 0 : index
    %c0_10 = arith.constant 0 : index
    %c0_11 = arith.constant 0 : index
    %27 = vector.load %arg5[%c0_9, %c0_10, %c0_11] : memref<7x1x256xf32, #tpu.memory_space<vmem>>, vector<1x1x256xf32>
    %28 = vector.shape_cast %27 : vector<1x1x256xf32> to vector<1x256xf32>
    %29 = vector.broadcast %28 : vector<1x256xf32> to vector<128x256xf32>
    %30 = arith.addf %26, %29 : vector<128x256xf32>
    %cst_12 = arith.constant 0.000000e+00 : f32
    %31 = vector.broadcast %cst_12 : f32 to vector<128x256xf32>
    %32 = arith.maximumf %30, %31 : vector<128x256xf32>
    %c1 = arith.constant 1 : index
    %c0_13 = arith.constant 0 : index
    %c0_14 = arith.constant 0 : index
    %33 = vector.load %arg4[%c1, %c0_13, %c0_14] : memref<7x256x256xf32, #tpu.memory_space<vmem>>, vector<1x256x256xf32>
    %34 = vector.shape_cast %33 : vector<1x256x256xf32> to vector<256x256xf32>
    %cst_15 = arith.constant dense<0.000000e+00> : vector<128x256xf32>
    %35 = tpu.matmul %32, %34, %cst_15 {dimension_numbers = #tpu.dot_dimension_numbers<[1], [0], [0], [1], [0, 0, 1, 1], [], []>} : vector<128x256xf32>, vector<256x256xf32>, vector<128x256xf32> -> vector<128x256xf32>
    %c1_16 = arith.constant 1 : index
    %c0_17 = arith.constant 0 : index
    %c0_18 = arith.constant 0 : index
    %36 = vector.load %arg5[%c1_16, %c0_17, %c0_18] : memref<7x1x256xf32, #tpu.memory_space<vmem>>, vector<1x1x256xf32>
    %37 = vector.shape_cast %36 : vector<1x1x256xf32> to vector<1x256xf32>
    %38 = vector.broadcast %37 : vector<1x256xf32> to vector<128x256xf32>
    %39 = arith.addf %35, %38 : vector<128x256xf32>
    %cst_19 = arith.constant 0.000000e+00 : f32
    %40 = vector.broadcast %cst_19 : f32 to vector<128x256xf32>
    %41 = arith.maximumf %39, %40 : vector<128x256xf32>
    %c2 = arith.constant 2 : index
    %c0_20 = arith.constant 0 : index
    %c0_21 = arith.constant 0 : index
    %42 = vector.load %arg4[%c2, %c0_20, %c0_21] : memref<7x256x256xf32, #tpu.memory_space<vmem>>, vector<1x256x256xf32>
    %43 = vector.shape_cast %42 : vector<1x256x256xf32> to vector<256x256xf32>
    %cst_22 = arith.constant dense<0.000000e+00> : vector<128x256xf32>
    %44 = tpu.matmul %41, %43, %cst_22 {dimension_numbers = #tpu.dot_dimension_numbers<[1], [0], [0], [1], [0, 0, 1, 1], [], []>} : vector<128x256xf32>, vector<256x256xf32>, vector<128x256xf32> -> vector<128x256xf32>
    %c2_23 = arith.constant 2 : index
    %c0_24 = arith.constant 0 : index
    %c0_25 = arith.constant 0 : index
    %45 = vector.load %arg5[%c2_23, %c0_24, %c0_25] : memref<7x1x256xf32, #tpu.memory_space<vmem>>, vector<1x1x256xf32>
    %46 = vector.shape_cast %45 : vector<1x1x256xf32> to vector<1x256xf32>
    %47 = vector.broadcast %46 : vector<1x256xf32> to vector<128x256xf32>
    %48 = arith.addf %44, %47 : vector<128x256xf32>
    %cst_26 = arith.constant 0.000000e+00 : f32
    %49 = vector.broadcast %cst_26 : f32 to vector<128x256xf32>
    %50 = arith.maximumf %48, %49 : vector<128x256xf32>
    %c3 = arith.constant 3 : index
    %c0_27 = arith.constant 0 : index
    %c0_28 = arith.constant 0 : index
    %51 = vector.load %arg4[%c3, %c0_27, %c0_28] : memref<7x256x256xf32, #tpu.memory_space<vmem>>, vector<1x256x256xf32>
    %52 = vector.shape_cast %51 : vector<1x256x256xf32> to vector<256x256xf32>
    %cst_29 = arith.constant dense<0.000000e+00> : vector<128x256xf32>
    %53 = tpu.matmul %50, %52, %cst_29 {dimension_numbers = #tpu.dot_dimension_numbers<[1], [0], [0], [1], [0, 0, 1, 1], [], []>} : vector<128x256xf32>, vector<256x256xf32>, vector<128x256xf32> -> vector<128x256xf32>
    %c3_30 = arith.constant 3 : index
    %c0_31 = arith.constant 0 : index
    %c0_32 = arith.constant 0 : index
    %54 = vector.load %arg5[%c3_30, %c0_31, %c0_32] : memref<7x1x256xf32, #tpu.memory_space<vmem>>, vector<1x1x256xf32>
    %55 = vector.shape_cast %54 : vector<1x1x256xf32> to vector<1x256xf32>
    %56 = vector.broadcast %55 : vector<1x256xf32> to vector<128x256xf32>
    %57 = arith.addf %53, %56 : vector<128x256xf32>
    %cst_33 = arith.constant 0.000000e+00 : f32
    %58 = vector.broadcast %cst_33 : f32 to vector<128x256xf32>
    %59 = arith.maximumf %57, %58 : vector<128x256xf32>
    %c4 = arith.constant 4 : index
    %c0_34 = arith.constant 0 : index
    %c0_35 = arith.constant 0 : index
    %60 = vector.load %arg4[%c4, %c0_34, %c0_35] : memref<7x256x256xf32, #tpu.memory_space<vmem>>, vector<1x256x256xf32>
    %61 = vector.shape_cast %60 : vector<1x256x256xf32> to vector<256x256xf32>
    %cst_36 = arith.constant dense<0.000000e+00> : vector<128x256xf32>
    %62 = tpu.matmul %59, %61, %cst_36 {dimension_numbers = #tpu.dot_dimension_numbers<[1], [0], [0], [1], [0, 0, 1, 1], [], []>} : vector<128x256xf32>, vector<256x256xf32>, vector<128x256xf32> -> vector<128x256xf32>
    %c4_37 = arith.constant 4 : index
    %c0_38 = arith.constant 0 : index
    %c0_39 = arith.constant 0 : index
    %63 = vector.load %arg5[%c4_37, %c0_38, %c0_39] : memref<7x1x256xf32, #tpu.memory_space<vmem>>, vector<1x1x256xf32>
    %64 = vector.shape_cast %63 : vector<1x1x256xf32> to vector<1x256xf32>
    %65 = vector.broadcast %64 : vector<1x256xf32> to vector<128x256xf32>
    %66 = arith.addf %62, %65 : vector<128x256xf32>
    %c0_40 = arith.constant 0 : index
    %c0_41 = arith.constant 0 : index
    %67 = vector.load %arg6[%c0_40, %c0_41] : memref<3x256xf32, #tpu.memory_space<vmem>>, vector<3x256xf32>
    %68 = vector.extract_strided_slice %0 {offsets = [0, 0], sizes = [128, 1], strides = [1, 1]} : vector<128x3xf32> to vector<128x1xf32>
    %69 = vector.extract_strided_slice %67 {offsets = [0, 0], sizes = [1, 256], strides = [1, 1]} : vector<3x256xf32> to vector<1x256xf32>
    %70 = vector.broadcast %68 : vector<128x1xf32> to vector<128x256xf32>
    %71 = vector.broadcast %69 : vector<1x256xf32> to vector<128x256xf32>
    %72 = arith.mulf %70, %71 : vector<128x256xf32>
    %73 = vector.extract_strided_slice %0 {offsets = [0, 1], sizes = [128, 1], strides = [1, 1]} : vector<128x3xf32> to vector<128x1xf32>
    %74 = vector.extract_strided_slice %67 {offsets = [1, 0], sizes = [1, 256], strides = [1, 1]} : vector<3x256xf32> to vector<1x256xf32>
    %75 = vector.broadcast %73 : vector<128x1xf32> to vector<128x256xf32>
    %76 = vector.broadcast %74 : vector<1x256xf32> to vector<128x256xf32>
    %77 = arith.mulf %75, %76 : vector<128x256xf32>
    %78 = arith.addf %72, %77 : vector<128x256xf32>
    %79 = vector.extract_strided_slice %0 {offsets = [0, 2], sizes = [128, 1], strides = [1, 1]} : vector<128x3xf32> to vector<128x1xf32>
    %80 = vector.extract_strided_slice %67 {offsets = [2, 0], sizes = [1, 256], strides = [1, 1]} : vector<3x256xf32> to vector<1x256xf32>
    %81 = vector.broadcast %79 : vector<128x1xf32> to vector<128x256xf32>
    %82 = vector.broadcast %80 : vector<1x256xf32> to vector<128x256xf32>
    %83 = arith.mulf %81, %82 : vector<128x256xf32>
    %84 = arith.addf %78, %83 : vector<128x256xf32>
    %85 = arith.addf %66, %84 : vector<128x256xf32>
    %cst_42 = arith.constant 0.000000e+00 : f32
    %86 = vector.broadcast %cst_42 : f32 to vector<128x256xf32>
    %87 = arith.maximumf %85, %86 : vector<128x256xf32>
    %c5 = arith.constant 5 : index
    %c0_43 = arith.constant 0 : index
    %c0_44 = arith.constant 0 : index
    %88 = vector.load %arg4[%c5, %c0_43, %c0_44] : memref<7x256x256xf32, #tpu.memory_space<vmem>>, vector<1x256x256xf32>
    %89 = vector.shape_cast %88 : vector<1x256x256xf32> to vector<256x256xf32>
    %cst_45 = arith.constant dense<0.000000e+00> : vector<128x256xf32>
    %90 = tpu.matmul %87, %89, %cst_45 {dimension_numbers = #tpu.dot_dimension_numbers<[1], [0], [0], [1], [0, 0, 1, 1], [], []>} : vector<128x256xf32>, vector<256x256xf32>, vector<128x256xf32> -> vector<128x256xf32>
    %c5_46 = arith.constant 5 : index
    %c0_47 = arith.constant 0 : index
    %c0_48 = arith.constant 0 : index
    %91 = vector.load %arg5[%c5_46, %c0_47, %c0_48] : memref<7x1x256xf32, #tpu.memory_space<vmem>>, vector<1x1x256xf32>
    %92 = vector.shape_cast %91 : vector<1x1x256xf32> to vector<1x256xf32>
    %93 = vector.broadcast %92 : vector<1x256xf32> to vector<128x256xf32>
    %94 = arith.addf %90, %93 : vector<128x256xf32>
    %cst_49 = arith.constant 0.000000e+00 : f32
    %95 = vector.broadcast %cst_49 : f32 to vector<128x256xf32>
    %96 = arith.maximumf %94, %95 : vector<128x256xf32>
    %c6 = arith.constant 6 : index
    %c0_50 = arith.constant 0 : index
    %c0_51 = arith.constant 0 : index
    %97 = vector.load %arg4[%c6, %c0_50, %c0_51] : memref<7x256x256xf32, #tpu.memory_space<vmem>>, vector<1x256x256xf32>
    %98 = vector.shape_cast %97 : vector<1x256x256xf32> to vector<256x256xf32>
    %cst_52 = arith.constant dense<0.000000e+00> : vector<128x256xf32>
    %99 = tpu.matmul %96, %98, %cst_52 {dimension_numbers = #tpu.dot_dimension_numbers<[1], [0], [0], [1], [0, 0, 1, 1], [], []>} : vector<128x256xf32>, vector<256x256xf32>, vector<128x256xf32> -> vector<128x256xf32>
    %c6_53 = arith.constant 6 : index
    %c0_54 = arith.constant 0 : index
    %c0_55 = arith.constant 0 : index
    %100 = vector.load %arg5[%c6_53, %c0_54, %c0_55] : memref<7x1x256xf32, #tpu.memory_space<vmem>>, vector<1x1x256xf32>
    %101 = vector.shape_cast %100 : vector<1x1x256xf32> to vector<1x256xf32>
    %102 = vector.broadcast %101 : vector<1x256xf32> to vector<128x256xf32>
    %103 = arith.addf %99, %102 : vector<128x256xf32>
    %cst_56 = arith.constant 0.000000e+00 : f32
    %104 = vector.broadcast %cst_56 : f32 to vector<128x256xf32>
    %105 = arith.maximumf %103, %104 : vector<128x256xf32>
    %c0_57 = arith.constant 0 : index
    %c0_58 = arith.constant 0 : index
    %106 = vector.load %arg7[%c0_57, %c0_58] : memref<4x256xf32, #tpu.memory_space<vmem>>, vector<4x256xf32>
    %c0_59 = arith.constant 0 : index
    %c0_60 = arith.constant 0 : index
    %107 = vector.load %arg8[%c0_59, %c0_60] : memref<1x4xf32, #tpu.memory_space<vmem>>, vector<1x4xf32>
    %108 = vector.extract_strided_slice %106 {offsets = [0, 0], sizes = [1, 256], strides = [1, 1]} : vector<4x256xf32> to vector<1x256xf32>
    %109 = vector.broadcast %108 : vector<1x256xf32> to vector<128x256xf32>
    %110 = arith.mulf %105, %109 : vector<128x256xf32>
    %cst_61 = arith.constant dense<0.000000e+00> : vector<128xf32>
    %111 = vector.multi_reduction <add>, %110, %cst_61 [1] : vector<128x256xf32> to vector<128xf32>
    %112 = vector.shape_cast %111 : vector<128xf32> to vector<128x1xf32>
    %113 = vector.extract_strided_slice %107 {offsets = [0, 0], sizes = [1, 1], strides = [1, 1]} : vector<1x4xf32> to vector<1x1xf32>
    %114 = vector.broadcast %113 : vector<1x1xf32> to vector<128x1xf32>
    %115 = arith.addf %112, %114 : vector<128x1xf32>
    %116 = vector.extract_strided_slice %106 {offsets = [1, 0], sizes = [1, 256], strides = [1, 1]} : vector<4x256xf32> to vector<1x256xf32>
    %117 = vector.broadcast %116 : vector<1x256xf32> to vector<128x256xf32>
    %118 = arith.mulf %105, %117 : vector<128x256xf32>
    %cst_62 = arith.constant dense<0.000000e+00> : vector<128xf32>
    %119 = vector.multi_reduction <add>, %118, %cst_62 [1] : vector<128x256xf32> to vector<128xf32>
    %120 = vector.shape_cast %119 : vector<128xf32> to vector<128x1xf32>
    %121 = vector.extract_strided_slice %107 {offsets = [0, 1], sizes = [1, 1], strides = [1, 1]} : vector<1x4xf32> to vector<1x1xf32>
    %122 = vector.broadcast %121 : vector<1x1xf32> to vector<128x1xf32>
    %123 = arith.addf %120, %122 : vector<128x1xf32>
    %124 = vector.extract_strided_slice %106 {offsets = [2, 0], sizes = [1, 256], strides = [1, 1]} : vector<4x256xf32> to vector<1x256xf32>
    %125 = vector.broadcast %124 : vector<1x256xf32> to vector<128x256xf32>
    %126 = arith.mulf %105, %125 : vector<128x256xf32>
    %cst_63 = arith.constant dense<0.000000e+00> : vector<128xf32>
    %127 = vector.multi_reduction <add>, %126, %cst_63 [1] : vector<128x256xf32> to vector<128xf32>
    %128 = vector.shape_cast %127 : vector<128xf32> to vector<128x1xf32>
    %129 = vector.extract_strided_slice %107 {offsets = [0, 2], sizes = [1, 1], strides = [1, 1]} : vector<1x4xf32> to vector<1x1xf32>
    %130 = vector.broadcast %129 : vector<1x1xf32> to vector<128x1xf32>
    %131 = arith.addf %128, %130 : vector<128x1xf32>
    %132 = tpu.concatenate %115, %123, %131 in 1 : vector<128x1xf32>, vector<128x1xf32>, vector<128x1xf32> -> vector<128x3xf32>
    %133 = arith.negf %132 : vector<128x3xf32>
    %134 = math.exp %133 : vector<128x3xf32>
    %cst_64 = arith.constant 1.000000e+00 : f32
    %135 = vector.broadcast %cst_64 : f32 to vector<128x3xf32>
    %136 = arith.addf %135, %134 : vector<128x3xf32>
    %137 = arith.divf %135, %136 : vector<128x3xf32>
    %c0_65 = arith.constant 0 : index
    %c0_66 = arith.constant 0 : index
    %138 = vector.load %arg10[%c0_65, %c0_66] : memref<128x3xf32, #tpu.memory_space<vmem>>, vector<128x3xf32>
    tpu.vector_store %arg10[%c0_65, %c0_66], %137 {strides = array<i32>} : memref<128x3xf32, #tpu.memory_space<vmem>>, vector<128x3xf32>,
    %139 = vector.extract_strided_slice %106 {offsets = [3, 0], sizes = [1, 256], strides = [1, 1]} : vector<4x256xf32> to vector<1x256xf32>
    %140 = vector.broadcast %139 : vector<1x256xf32> to vector<128x256xf32>
    %141 = arith.mulf %105, %140 : vector<128x256xf32>
    %cst_67 = arith.constant dense<0.000000e+00> : vector<128xf32>
    %142 = vector.multi_reduction <add>, %141, %cst_67 [1] : vector<128x256xf32> to vector<128xf32>
    %143 = vector.shape_cast %142 : vector<128xf32> to vector<128x1xf32>
    %144 = vector.extract_strided_slice %107 {offsets = [0, 3], sizes = [1, 1], strides = [1, 1]} : vector<1x4xf32> to vector<1x1xf32>
    %145 = vector.broadcast %144 : vector<1x1xf32> to vector<128x1xf32>
    %146 = arith.addf %143, %145 : vector<128x1xf32>
    %c0_68 = arith.constant 0 : index
    %c0_69 = arith.constant 0 : index
    %147 = vector.load %arg9[%c0_68, %c0_69] : memref<128x1xf32, #tpu.memory_space<vmem>>, vector<128x1xf32>
    tpu.vector_store %arg9[%c0_68, %c0_69], %146 {strides = array<i32>} : memref<128x1xf32, #tpu.memory_space<vmem>>, vector<128x1xf32>,
    return
  }
  func.func @transform_0(%arg0: i32) -> (i32, i32) {
    %c0_i32 = arith.constant 0 : i32
    %c0_i32_0 = arith.constant 0 : i32
    return %arg0, %c0_i32 : i32, i32
  }
  func.func @transform_1(%arg0: i32) -> (i32, i32) {
    %c0_i32 = arith.constant 0 : i32
    %c0_i32_0 = arith.constant 0 : i32
    %c0_i32_1 = arith.constant 0 : i32
    return %c0_i32, %c0_i32_0 : i32, i32
  }
  func.func @transform_2(%arg0: i32) -> (i32, i32) {
    %c0_i32 = arith.constant 0 : i32
    %c0_i32_0 = arith.constant 0 : i32
    %c0_i32_1 = arith.constant 0 : i32
    return %c0_i32, %c0_i32_0 : i32, i32
  }
  func.func @transform_3(%arg0: i32) -> (i32, i32, i32) {
    %c0_i32 = arith.constant 0 : i32
    %c0_i32_0 = arith.constant 0 : i32
    %c0_i32_1 = arith.constant 0 : i32
    %c0_i32_2 = arith.constant 0 : i32
    return %c0_i32, %c0_i32_0, %c0_i32_1 : i32, i32, i32
  }
  func.func @transform_4(%arg0: i32) -> (i32, i32, i32) {
    %c0_i32 = arith.constant 0 : i32
    %c0_i32_0 = arith.constant 0 : i32
    %c0_i32_1 = arith.constant 0 : i32
    %c0_i32_2 = arith.constant 0 : i32
    return %c0_i32, %c0_i32_0, %c0_i32_1 : i32, i32, i32
  }
  func.func @transform_5(%arg0: i32) -> (i32, i32) {
    %c0_i32 = arith.constant 0 : i32
    %c0_i32_0 = arith.constant 0 : i32
    %c0_i32_1 = arith.constant 0 : i32
    return %c0_i32, %c0_i32_0 : i32, i32
  }
  func.func @transform_6(%arg0: i32) -> (i32, i32) {
    %c0_i32 = arith.constant 0 : i32
    %c0_i32_0 = arith.constant 0 : i32
    %c0_i32_1 = arith.constant 0 : i32
    return %c0_i32, %c0_i32_0 : i32, i32
  }
  func.func @transform_7(%arg0: i32) -> (i32, i32) {
    %c0_i32 = arith.constant 0 : i32
    %c0_i32_0 = arith.constant 0 : i32
    %c0_i32_1 = arith.constant 0 : i32
    return %c0_i32, %c0_i32_0 : i32, i32
  }
  func.func @transform_8(%arg0: i32) -> (i32, i32) {
    %c0_i32 = arith.constant 0 : i32
    %c0_i32_0 = arith.constant 0 : i32
    return %arg0, %c0_i32 : i32, i32
  }
  func.func @transform_9(%arg0: i32) -> (i32, i32) {
    %c0_i32 = arith.constant 0 : i32
    %c0_i32_0 = arith.constant 0 : i32
    return %arg0, %c0_i32 : i32, i32
  }
}

</mosaic_0001>

<llo_original>
// kernel: tpu_custom_call.1
$region0: #{tpu_custom_call.1}
  #allocation0 [shape = 'u32[]', space=smem, size = 0x4, offset = 0x4, fixed_abs, tag = 'smem constant byte address 0x4 - core index']
  #allocation1 [shape = 'u32[144,128]{1,0:T(1,128)}', space=vmem, size = 0x12000, scoped, tag = 'internal scratch']
  %s0 = inlined_call_operand.vmem [shape: f32[512,3], index: 0, kind: input, shape index: {}]
  %s1 = inlined_call_operand.hbm [shape: f32[3,256], index: 1, kind: input, shape index: {}]
  %s2 = inlined_call_operand.hbm [shape: f32[1,256], index: 2, kind: input, shape index: {}]
  %s3 = inlined_call_operand.hbm [shape: f32[7,256,256], index: 3, kind: input, shape index: {}]
  %s4 = inlined_call_operand.hbm [shape: f32[7,1,256], index: 4, kind: input, shape index: {}]
  %s5 = inlined_call_operand.hbm [shape: f32[3,256], index: 5, kind: input, shape index: {}]
  %s6 = inlined_call_operand.hbm [shape: f32[4,256], index: 6, kind: input, shape index: {}]
  %s7 = inlined_call_operand.hbm [shape: f32[1,4], index: 7, kind: input, shape index: {}]
  %s8 = inlined_call_operand.vmem [shape: f32[512,1], index: 8, kind: output, shape index: {0}]
  %s9 = inlined_call_operand.vmem [shape: f32[512,3], index: 9, kind: output, shape index: {1}]
  %10 = xla_tuple %s8, %s9
  %s11 = sld [smem:[#allocation0]]
  $region101: #{tpu_custom_call.1} parent=0
    _
  %s13 = ssub.s32 1, %s11
  %s14 = scalar_select 0, %s13, %s11
  $region1: #{tpu_custom_call.1} parent=0
    #allocation2 [shape = 'u8[4096]{0}', space=vmem, size = 0x1000, scoped, tag = 'input window, operand 1, single buffered']
    #allocation3 [shape = 's32[2]{0}', space=sflag, size = 0x8, scoped, tag = 'scoped memory for tpu_custom_call.1']
    #allocation4 [shape = 'u8[1024]{0}', space=vmem, size = 0x400, scoped, tag = 'input window, operand 2, single buffered']
    #allocation5 [shape = 's32[1]{0}', space=sflag, size = 0x4, scoped, tag = 'scoped memory for tpu_custom_call.1']
    #allocation6 [shape = 'u8[1835008]{0}', space=vmem, size = 0x1c0000, scoped, tag = 'input window, operand 3, single buffered']
    #allocation7 [shape = 'u8[7168]{0}', space=vmem, size = 0x1c00, scoped, tag = 'input window, operand 4, single buffered']
    #allocation8 [shape = 's32[1]{0}', space=sflag, size = 0x4, scoped, tag = 'scoped memory for tpu_custom_call.1']
    #allocation9 [shape = 'u8[4096]{0}', space=vmem, size = 0x1000, scoped, tag = 'input window, operand 5, single buffered']
    #allocation10 [shape = 'u8[4096]{0}', space=vmem, size = 0x1000, scoped, tag = 'input window, operand 6, single buffered']
    #allocation11 [shape = 's32[1]{0}', space=sflag, size = 0x4, scoped, tag = 'scoped memory for tpu_custom_call.1']
    #allocation12 [shape = 'u8[512]{0}', space=vmem, size = 0x400, scoped, tag = 'input window, operand 7, single buffered']
    %15 = vsyncpa [#allocation3], 0
    %16 = vsyncpa [#allocation5], 0
    %17 = vsyncpa [#allocation8], 0
    %18 = vsyncpa [#allocation11], 0
    loop: start=0, step=1, limit=6
    $region2: #{tpu_custom_call.1} parent=1 // loop_pre_header
      _
    $region3: #{tpu_custom_call.1} parent=1 // loop_header
      %s20 = sphi 0, %s24
      %p21 = scmp.ge.s32.totalorder %s20, 6
      %s30 = sphi 0, %s32
      %s33 = sphi 0, %s30
      %s34 = sphi 0, %s33
      %s50 = sphi 0, %s34
      %s54 = sphi 0, %s54
      %s56 = sphi 0, %s54
      %s57 = sphi 0, %s56
      %s71 = sphi 0, %s57
      %s75 = sphi 0, %s75
      %s77 = sphi 0, %s75
      %s78 = sphi 0, %s77
      %s92 = sphi 0, %s78
      %s96 = sphi 0, %s96
      %s98 = sphi 0, %s96
      %s99 = sphi 0, %s98
      %s113 = sphi 0, %s99
      %s117 = sphi 0, %s117
      %s119 = sphi 0, %s117
      %s120 = sphi 0, %s119
      %s134 = sphi 0, %s120
      %s138 = sphi 0, %s138
      %s140 = sphi 0, %s138
      %s141 = sphi 0, %s140
      %s155 = sphi 0, %s141
      %s159 = sphi 0, %s159
      %s161 = sphi 0, %s159
      %s162 = sphi 0, %s161
      %s176 = sphi 0, %s162
      %s180 = sphi 0, %s180
      %s182 = sphi 0, %s180
      %s183 = sphi 0, %s182
      %s197 = sphi 0, %s183
      %s203 = sphi 0, %s205
      %s206 = sphi 0, %s203
      %s207 = sphi 0, %s206
      %s223 = sphi 0, %s207
      %s229 = sphi 0, %s231
      %s232 = sphi 0, %s229
      %s233 = sphi 0, %s232
      %s249 = sphi 0, %s233
    $region4: #{tpu_custom_call.1} parent=1 // loop_header_branch
      %23 = sbr.rel (%p21) target = $region8
    $region5: #{tpu_custom_call.1} parent=1 // loop_body
      %s25 = ssub.s32 %s20, 1
      %s26 = ssub.s32 %s20, 2
      %s27 = sadd.s32 %s20, 1
      %s28 = ssub.s32 %s20, %s27
      %p29 = scmp.eq.s32.totalorder %s28, 0
      %s31 = sadd.s32 %s30, 1
      %s32 = scalar_select %p29, %s30, %s31
      %p35 = pneg %p29
      %p36 = scmp.eq.s32.totalorder %s20, 3
      %p37 = por %p35, %p36
      %p38 = scmp.ne.s32.totalorder %s30, %s33
      %p39 = scmp.eq.s32.totalorder %s20, 0
      %p40 = por %p38, %p39
      %p41 = scmp.ne.s32.totalorder %s30, %s33
      %p42 = scmp.eq.s32.totalorder %s25, 3
      %p43 = por %p41, %p42
      %p44 = scmp.ne.s32.totalorder %s33, %s34
      %p45 = scmp.eq.s32.totalorder %s25, 0
      %p46 = por %p44, %p45
      %p47 = scmp.ne.s32.totalorder %s33, %s34
      %p48 = scmp.eq.s32.totalorder %s26, 3
      %p49 = por %p47, %p48
      %p51 = scmp.ne.s32.totalorder %s34, %s50
      %p52 = scmp.eq.s32.totalorder %s26, 0
      %p53 = por %p51, %p52
      %s55 = sadd.s32 %s54, 1
      %p58 = scmp.eq.s32.totalorder %s20, 3
      %p59 = scmp.ne.s32.totalorder %s54, %s56
      %p60 = scmp.eq.s32.totalorder %s20, 0
      %p61 = por %p59, %p60
      %p62 = scmp.ne.s32.totalorder %s54, %s56
      %p63 = scmp.eq.s32.totalorder %s25, 3
      %p64 = por %p62, %p63
      %p65 = scmp.ne.s32.totalorder %s56, %s57
      %p66 = scmp.eq.s32.totalorder %s25, 0
      %p67 = por %p65, %p66
      %p68 = scmp.ne.s32.totalorder %s56, %s57
      %p69 = scmp.eq.s32.totalorder %s26, 3
      %p70 = por %p68, %p69
      %p72 = scmp.ne.s32.totalorder %s57, %s71
      %p73 = scmp.eq.s32.totalorder %s26, 0
      %p74 = por %p72, %p73
      %s76 = sadd.s32 %s75, 1
      %p79 = scmp.eq.s32.totalorder %s20, 3
      %p80 = scmp.ne.s32.totalorder %s75, %s77
      %p81 = scmp.eq.s32.totalorder %s20, 0
      %p82 = por %p80, %p81
      %p83 = scmp.ne.s32.totalorder %s75, %s77
      %p84 = scmp.eq.s32.totalorder %s25, 3
      %p85 = por %p83, %p84
      %p86 = scmp.ne.s32.totalorder %s77, %s78
      %p87 = scmp.eq.s32.totalorder %s25, 0
      %p88 = por %p86, %p87
      %p89 = scmp.ne.s32.totalorder %s77, %s78
      %p90 = scmp.eq.s32.totalorder %s26, 3
      %p91 = por %p89, %p90
      %p93 = scmp.ne.s32.totalorder %s78, %s92
      %p94 = scmp.eq.s32.totalorder %s26, 0
      %p95 = por %p93, %p94
      %s97 = sadd.s32 %s96, 1
      %p100 = scmp.eq.s32.totalorder %s20, 3
      %p101 = scmp.ne.s32.totalorder %s96, %s98
      %p102 = scmp.eq.s32.totalorder %s20, 0
      %p103 = por %p101, %p102
      %p104 = scmp.ne.s32.totalorder %s96, %s98
      %p105 = scmp.eq.s32.totalorder %s25, 3
      %p106 = por %p104, %p105
      %p107 = scmp.ne.s32.totalorder %s98, %s99
      %p108 = scmp.eq.s32.totalorder %s25, 0
      %p109 = por %p107, %p108
      %p110 = scmp.ne.s32.totalorder %s98, %s99
      %p111 = scmp.eq.s32.totalorder %s26, 3
      %p112 = por %p110, %p111
      %p114 = scmp.ne.s32.totalorder %s99, %s113
      %p115 = scmp.eq.s32.totalorder %s26, 0
      %p116 = por %p114, %p115
      %s118 = sadd.s32 %s117, 1
      %p121 = scmp.eq.s32.totalorder %s20, 3
      %p122 = scmp.ne.s32.totalorder %s117, %s119
      %p123 = scmp.eq.s32.totalorder %s20, 0
      %p124 = por %p122, %p123
      %p125 = scmp.ne.s32.totalorder %s117, %s119
      %p126 = scmp.eq.s32.totalorder %s25, 3
      %p127 = por %p125, %p126
      %p128 = scmp.ne.s32.totalorder %s119, %s120
      %p129 = scmp.eq.s32.totalorder %s25, 0
      %p130 = por %p128, %p129
      %p131 = scmp.ne.s32.totalorder %s119, %s120
      %p132 = scmp.eq.s32.totalorder %s26, 3
      %p133 = por %p131, %p132
      %p135 = scmp.ne.s32.totalorder %s120, %s134
      %p136 = scmp.eq.s32.totalorder %s26, 0
      %p137 = por %p135, %p136
      %s139 = sadd.s32 %s138, 1
      %p142 = scmp.eq.s32.totalorder %s20, 3
      %p143 = scmp.ne.s32.totalorder %s138, %s140
      %p144 = scmp.eq.s32.totalorder %s20, 0
      %p145 = por %p143, %p144
      %p146 = scmp.ne.s32.totalorder %s138, %s140
      %p147 = scmp.eq.s32.totalorder %s25, 3
      %p148 = por %p146, %p147
      %p149 = scmp.ne.s32.totalorder %s140, %s141
      %p150 = scmp.eq.s32.totalorder %s25, 0
      %p151 = por %p149, %p150
      %p152 = scmp.ne.s32.totalorder %s140, %s141
      %p153 = scmp.eq.s32.totalorder %s26, 3
      %p154 = por %p152, %p153
      %p156 = scmp.ne.s32.totalorder %s141, %s155
      %p157 = scmp.eq.s32.totalorder %s26, 0
      %p158 = por %p156, %p157
      %s160 = sadd.s32 %s159, 1
      %p163 = scmp.eq.s32.totalorder %s20, 3
      %p164 = scmp.ne.s32.totalorder %s159, %s161
      %p165 = scmp.eq.s32.totalorder %s20, 0
      %p166 = por %p164, %p165
      %p167 = scmp.ne.s32.totalorder %s159, %s161
      %p168 = scmp.eq.s32.totalorder %s25, 3
      %p169 = por %p167, %p168
      %p170 = scmp.ne.s32.totalorder %s161, %s162
      %p171 = scmp.eq.s32.totalorder %s25, 0
      %p172 = por %p170, %p171
      %p173 = scmp.ne.s32.totalorder %s161, %s162
      %p174 = scmp.eq.s32.totalorder %s26, 3
      %p175 = por %p173, %p174
      %p177 = scmp.ne.s32.totalorder %s162, %s176
      %p178 = scmp.eq.s32.totalorder %s26, 0
      %p179 = por %p177, %p178
      %s181 = sadd.s32 %s180, 1
      %p184 = scmp.eq.s32.totalorder %s20, 3
      %p185 = scmp.ne.s32.totalorder %s180, %s182
      %p186 = scmp.eq.s32.totalorder %s20, 0
      %p187 = por %p185, %p186
      %p188 = scmp.ne.s32.totalorder %s180, %s182
      %p189 = scmp.eq.s32.totalorder %s25, 3
      %p190 = por %p188, %p189
      %p191 = scmp.ne.s32.totalorder %s182, %s183
      %p192 = scmp.eq.s32.totalorder %s25, 0
      %p193 = por %p191, %p192
      %p194 = scmp.ne.s32.totalorder %s182, %s183
      %p195 = scmp.eq.s32.totalorder %s26, 3
      %p196 = por %p194, %p195
      %p198 = scmp.ne.s32.totalorder %s183, %s197
      %p199 = scmp.eq.s32.totalorder %s26, 0
      %p200 = por %p198, %p199
      %s201 = ssub.s32 %s20, %s27
      %p202 = scmp.eq.s32.totalorder %s201, 0
      %s204 = sadd.s32 %s203, 1
      %s205 = scalar_select %p202, %s203, %s204
      %p208 = pneg %p202
      %p209 = scmp.eq.s32.totalorder %s20, 3
      %p210 = por %p208, %p209
      %p211 = scmp.ne.s32.totalorder %s203, %s206
      %p212 = scmp.eq.s32.totalorder %s20, 0
      %p213 = por %p211, %p212
      %p214 = scmp.ne.s32.totalorder %s203, %s206
      %p215 = scmp.eq.s32.totalorder %s25, 3
      %p216 = por %p214, %p215
      %p217 = scmp.ne.s32.totalorder %s206, %s207
      %p218 = scmp.eq.s32.totalorder %s25, 0
      %p219 = por %p217, %p218
      %p220 = scmp.ne.s32.totalorder %s206, %s207
      %p221 = scmp.eq.s32.totalorder %s26, 3
      %p222 = por %p220, %p221
      %p224 = scmp.ne.s32.totalorder %s207, %s223
      %p225 = scmp.eq.s32.totalorder %s26, 0
      %p226 = por %p224, %p225
      %s227 = ssub.s32 %s20, %s27
      %p228 = scmp.eq.s32.totalorder %s227, 0
      %s230 = sadd.s32 %s229, 1
      %s231 = scalar_select %p228, %s229, %s230
      %p234 = pneg %p228
      %p235 = scmp.eq.s32.totalorder %s20, 3
      %p236 = por %p234, %p235
      %p237 = scmp.ne.s32.totalorder %s229, %s232
      %p238 = scmp.eq.s32.totalorder %s20, 0
      %p239 = por %p237, %p238
      %p240 = scmp.ne.s32.totalorder %s229, %s232
      %p241 = scmp.eq.s32.totalorder %s25, 3
      %p242 = por %p240, %p241
      %p243 = scmp.ne.s32.totalorder %s232, %s233
      %p244 = scmp.eq.s32.totalorder %s25, 0
      %p245 = por %p243, %p244
      %p246 = scmp.ne.s32.totalorder %s232, %s233
      %p247 = scmp.eq.s32.totalorder %s26, 3
      %p248 = por %p246, %p247
      %p250 = scmp.ne.s32.totalorder %s233, %s249
      %p251 = scmp.eq.s32.totalorder %s26, 0
      %p252 = por %p250, %p251
      %p253 = scmp.le.s32.totalorder 1, %s20
      %p254 = scmp.lt.s32.totalorder %s20, 5
      %p255 = pnand %p253, %p254
      %p256 = pneg %p255
      // Predicated region
      $region9: #{tpu_custom_call.1} parent=5 // pred_check
        _
      $region10: #{tpu_custom_call.1} parent=5 // pred_check_branch
        %258 = sbr.rel (%p255) target = $region12
      $region11: #{tpu_custom_call.1} parent=5 // pred_region
        %s259 = ssub.s32 %s20, 1
        // Predicated region
        $region13: #{tpu_custom_call.1} parent=11 // pred_check
          %p260 = pneg %p67
        $region14: #{tpu_custom_call.1} parent=11 // pred_check_branch
          %262 = sbr.rel (%p260) target = $region16
        $region15: #{tpu_custom_call.1} parent=11 // pred_region
          %s264 = ssub.s32 128, 128
          %265 = vsyncadd [#allocation3], %s264
          %s267 = sshll.u32 [#allocation2], 4
          %s268 = int_to_ptr.vmem [resolvable:$true] %s267
          %270 = dma.hbm_to_vmem [thread:$0]  %s1, 128, %s268, [#allocation3]
        $region16: #{tpu_custom_call.1} parent=11 // pred_fallthru
          _
        // Predicated region
        $region17: #{tpu_custom_call.1} parent=11 // pred_check
          %p271 = pneg %p88
        $region18: #{tpu_custom_call.1} parent=11 // pred_check_branch
          %273 = sbr.rel (%p271) target = $region20
        $region19: #{tpu_custom_call.1} parent=11 // pred_region
          %s275 = ssub.s32 32, 32
          %276 = vsyncadd [#allocation5], %s275
          %s278 = sshll.u32 [#allocation4], 4
          %s279 = int_to_ptr.vmem [resolvable:$true] %s278
          %281 = dma.hbm_to_vmem [thread:$0]  %s2, 32, %s279, [#allocation5]
        $region20: #{tpu_custom_call.1} parent=11 // pred_fallthru
          _
        // Predicated region
        $region21: #{tpu_custom_call.1} parent=11 // pred_check
          %p282 = pneg %p109
        $region22: #{tpu_custom_call.1} parent=11 // pred_check_branch
          %284 = sbr.rel (%p282) target = $region24
        $region23: #{tpu_custom_call.1} parent=11 // pred_region
          %s286 = ssub.s32 57344, 57344
          %287 = vsyncadd [#allocation5], %s286
          %s288 = sshll.u32 [#allocation6], 4
          %s289 = int_to_ptr.vmem [resolvable:$true] %s288
          %294 = dma.hbm_to_vmem [thread:$0]  %s3, 57344, %s289, [#allocation5], 256, 256, 16
        $region24: #{tpu_custom_call.1} parent=11 // pred_fallthru
          _
        // Predicated region
        $region25: #{tpu_custom_call.1} parent=11 // pred_check
          %p295 = pneg %p130
        $region26: #{tpu_custom_call.1} parent=11 // pred_check_branch
          %297 = sbr.rel (%p295) target = $region28
        $region27: #{tpu_custom_call.1} parent=11 // pred_region
          %s299 = ssub.s32 224, 224
          %300 = vsyncadd [#allocation8], %s299
          %s301 = sshll.u32 [#allocation7], 4
          %s302 = int_to_ptr.vmem [resolvable:$true] %s301
          %307 = dma.hbm_to_vmem [thread:$0]  %s4, 224, %s302, [#allocation8], 32, 32, 2
        $region28: #{tpu_custom_call.1} parent=11 // pred_fallthru
          _
        // Predicated region
        $region29: #{tpu_custom_call.1} parent=11 // pred_check
          %p308 = pneg %p151
        $region30: #{tpu_custom_call.1} parent=11 // pred_check_branch
          %310 = sbr.rel (%p308) target = $region32
        $region31: #{tpu_custom_call.1} parent=11 // pred_region
          %s312 = ssub.s32 128, 128
          %313 = vsyncadd [#allocation8], %s312
          %s315 = sshll.u32 [#allocation9], 4
          %s316 = int_to_ptr.vmem [resolvable:$true] %s315
          %318 = dma.hbm_to_vmem [thread:$0]  %s5, 128, %s316, [#allocation8]
        $region32: #{tpu_custom_call.1} parent=11 // pred_fallthru
          _
        // Predicated region
        $region33: #{tpu_custom_call.1} parent=11 // pred_check
          %p319 = pneg %p172
        $region34: #{tpu_custom_call.1} parent=11 // pred_check_branch
          %321 = sbr.rel (%p319) target = $region36
        $region35: #{tpu_custom_call.1} parent=11 // pred_region
          %s323 = ssub.s32 128, 128
          %324 = vsyncadd [#allocation11], %s323
          %s326 = sshll.u32 [#allocation10], 4
          %s327 = int_to_ptr.vmem [resolvable:$true] %s326
          %329 = dma.hbm_to_vmem [thread:$0]  %s6, 128, %s327, [#allocation11]
        $region36: #{tpu_custom_call.1} parent=11 // pred_fallthru
          _
        // Predicated region
        $region37: #{tpu_custom_call.1} parent=11 // pred_check
          %p330 = pneg %p193
        $region38: #{tpu_custom_call.1} parent=11 // pred_check_branch
          %332 = sbr.rel (%p330) target = $region40
        $region39: #{tpu_custom_call.1} parent=11 // pred_region
          %s334 = ssub.s32 16, 16
          %335 = vsyncadd [#allocation11], %s334
          %s337 = sshll.u32 [#allocation12], 4
          %s338 = int_to_ptr.vmem [resolvable:$true] %s337
          %340 = dma.hbm_to_vmem [thread:$0]  %s7, 16, %s338, [#allocation11]
        $region40: #{tpu_custom_call.1} parent=11 // pred_fallthru
          _
      $region12: #{tpu_custom_call.1} parent=5 // pred_fallthru
        _
      %p341 = scmp.lt.s32.totalorder %s20, 4
      // Predicated region
      $region41: #{tpu_custom_call.1} parent=5 // pred_check
        %p342 = pneg %p341
      $region42: #{tpu_custom_call.1} parent=5 // pred_check_branch
        %344 = sbr.rel (%p342) target = $region44
      $region43: #{tpu_custom_call.1} parent=5 // pred_region
        // Predicated region
        $region45: #{tpu_custom_call.1} parent=43 // pred_check
          %p345 = pneg %p40
        $region46: #{tpu_custom_call.1} parent=43 // pred_check_branch
          %347 = sbr.rel (%p345) target = $region48
        $region47: #{tpu_custom_call.1} parent=43 // pred_region
          %s348 = smul.u32 16, %s20
          %p349 = scmp.lt.s32.totalorder %s348, 63
          %s350 = scalar_select %p349, %s348, 63
          %s351 = smul.addr %s350, 8
          %s352 = scalar_lea.vmem %s0, %s351
          %s353 = smul.u32 16, %s20
        $region48: #{tpu_custom_call.1} parent=43 // pred_fallthru
          _
      $region44: #{tpu_custom_call.1} parent=5 // pred_fallthru
        _
      %p354 = scmp.le.s32.totalorder 1, %s20
      %p355 = scmp.lt.s32.totalorder %s20, 5
      %p356 = pnand %p354, %p355
      %p357 = pneg %p356
      // Predicated region
      $region49: #{tpu_custom_call.1} parent=5 // pred_check
        _
      $region50: #{tpu_custom_call.1} parent=5 // pred_check_branch
        %359 = sbr.rel (%p356) target = $region52
      $region51: #{tpu_custom_call.1} parent=5 // pred_region
        %s360 = ssub.s32 %s20, 1
        // Predicated region
        $region53: #{tpu_custom_call.1} parent=51 // pred_check
          %p361 = pneg %p67
        $region54: #{tpu_custom_call.1} parent=51 // pred_check_branch
          %363 = sbr.rel (%p361) target = $region56
        $region55: #{tpu_custom_call.1} parent=51 // pred_region
          %364 = dma.done [#allocation3], 128
        $region56: #{tpu_custom_call.1} parent=51 // pred_fallthru
          _
        // Predicated region
        $region57: #{tpu_custom_call.1} parent=51 // pred_check
          %p365 = pneg %p88
        $region58: #{tpu_custom_call.1} parent=51 // pred_check_branch
          %367 = sbr.rel (%p365) target = $region60
        $region59: #{tpu_custom_call.1} parent=51 // pred_region
          %368 = dma.done [#allocation5], 32
        $region60: #{tpu_custom_call.1} parent=51 // pred_fallthru
          _
        // Predicated region
        $region61: #{tpu_custom_call.1} parent=51 // pred_check
          %p369 = pneg %p109
        $region62: #{tpu_custom_call.1} parent=51 // pred_check_branch
          %371 = sbr.rel (%p369) target = $region64
        $region63: #{tpu_custom_call.1} parent=51 // pred_region
          %372 = dma.done [#allocation5], 57344
        $region64: #{tpu_custom_call.1} parent=51 // pred_fallthru
          _
        // Predicated region
        $region65: #{tpu_custom_call.1} parent=51 // pred_check
          %p373 = pneg %p130
        $region66: #{tpu_custom_call.1} parent=51 // pred_check_branch
          %375 = sbr.rel (%p373) target = $region68
        $region67: #{tpu_custom_call.1} parent=51 // pred_region
          %376 = dma.done [#allocation8], 224
        $region68: #{tpu_custom_call.1} parent=51 // pred_fallthru
          _
        // Predicated region
        $region69: #{tpu_custom_call.1} parent=51 // pred_check
          %p377 = pneg %p151
        $region70: #{tpu_custom_call.1} parent=51 // pred_check_branch
          %379 = sbr.rel (%p377) target = $region72
        $region71: #{tpu_custom_call.1} parent=51 // pred_region
          %380 = dma.done [#allocation8], 128
        $region72: #{tpu_custom_call.1} parent=51 // pred_fallthru
          _
        // Predicated region
        $region73: #{tpu_custom_call.1} parent=51 // pred_check
          %p381 = pneg %p172
        $region74: #{tpu_custom_call.1} parent=51 // pred_check_branch
          %383 = sbr.rel (%p381) target = $region76
        $region75: #{tpu_custom_call.1} parent=51 // pred_region
          %384 = dma.done [#allocation11], 128
        $region76: #{tpu_custom_call.1} parent=51 // pred_fallthru
          _
        // Predicated region
        $region77: #{tpu_custom_call.1} parent=51 // pred_check
          %p385 = pneg %p193
        $region78: #{tpu_custom_call.1} parent=51 // pred_check_branch
          %387 = sbr.rel (%p385) target = $region80
        $region79: #{tpu_custom_call.1} parent=51 // pred_region
          %388 = dma.done [#allocation11], 16
        $region80: #{tpu_custom_call.1} parent=51 // pred_fallthru
          _
        %s389 = smul.u32 16, %s25
        %p390 = scmp.lt.s32.totalorder %s389, 63
        %s391 = scalar_select %p390, %s389, 63
        %s392 = smul.addr %s391, 8
        %s393 = scalar_lea.vmem %s0, %s392
        %p394 = pneg %p46
        %p395 = pneg %p43
        %p396 = pneg %p67
        %p397 = pneg %p64
        %p398 = pneg %p88
        %p399 = pneg %p85
        %p400 = pneg %p109
        %p401 = pneg %p106
        %p402 = pneg %p130
        %p403 = pneg %p127
        %p404 = pneg %p151
        %p405 = pneg %p148
        %p406 = pneg %p172
        %p407 = pneg %p169
        %p408 = pneg %p193
        %p409 = pneg %p190
        %p410 = pneg %p219
        %p411 = pneg %p216
        %s412 = smul.u32 16, %s25
        %p413 = scmp.lt.s32.totalorder %s412, 63
        %s414 = scalar_select %p413, %s412, 63
        %s415 = smul.addr %s414, 8
        %s416 = scalar_lea.vmem %s8, %s415
        %p417 = pneg %p245
        %p418 = pneg %p242
        %s419 = smul.u32 16, %s25
        %p420 = scmp.lt.s32.totalorder %s419, 63
        %s421 = scalar_select %p420, %s419, 63
        %s422 = smul.addr %s421, 8
        %s423 = scalar_lea.vmem %s9, %s422
        %s424 = smul.u32 16, %s25
        %p425 = scmp.lt.s32.totalorder %s424, 63
        %s426 = scalar_select %p425, %s424, 63
        %s427 = smul.addr %s426, 8
        %s428 = scalar_lea.vmem %s0, %s427
        %s429 = smul.u32 16, %s25
        %s430 = smul.u32 16, %s25
        %p431 = scmp.lt.s32.totalorder %s430, 63
        %s432 = scalar_select %p431, %s430, 63
        %s433 = smul.addr %s432, 8
        %s434 = scalar_lea.vmem %s8, %s433
        %s435 = smul.u32 16, %s25
        %s436 = smul.u32 16, %s25
        %p437 = scmp.lt.s32.totalorder %s436, 63
        %s438 = scalar_select %p437, %s436, 63
        %s439 = smul.addr %s438, 8
        %s440 = scalar_lea.vmem %s9, %s439
        %s441 = smul.u32 16, %s25
        %v442 = vld [vmem:[%s428] sm:$0xff]
        %v443 = vld [vmem:[%s428 + $0x8] sm:$0xff]
        %v444 = vld [vmem:[%s428 + $0x10] sm:$0xff]
        %v445 = vld [vmem:[%s428 + $0x18] sm:$0xff]
        %v446 = vld [vmem:[%s428 + $0x20] sm:$0xff]
        %v447 = vld [vmem:[%s428 + $0x28] sm:$0xff]
        %v448 = vld [vmem:[%s428 + $0x30] sm:$0xff]
        %v449 = vld [vmem:[%s428 + $0x38] sm:$0xff]
        %v450 = vld [vmem:[%s428 + $0x40] sm:$0xff]
        %v451 = vld [vmem:[%s428 + $0x48] sm:$0xff]
        %v452 = vld [vmem:[%s428 + $0x50] sm:$0xff]
        %v453 = vld [vmem:[%s428 + $0x58] sm:$0xff]
        %v454 = vld [vmem:[%s428 + $0x60] sm:$0xff]
        %v455 = vld [vmem:[%s428 + $0x68] sm:$0xff]
        %v456 = vld [vmem:[%s428 + $0x70] sm:$0xff]
        %v457 = vld [vmem:[%s428 + $0x78] sm:$0xff]
        %v458 = vld [vmem:[#allocation2] sm:$0x77]
        %460 = vset.pattern.permute.xlu0 0
        %461 = vperm.xlu0 %460, %v442
        %v462 = vpop.permute.xlu0 %461
        %465 = vset.pattern.permute.xlu0 0
        %466 = vperm.xlu0 %465, %v443
        %v467 = vpop.permute.xlu0 %466
        %470 = vset.pattern.permute.xlu0 0
        %471 = vperm.xlu0 %470, %v444
        %v472 = vpop.permute.xlu0 %471
        %475 = vset.pattern.permute.xlu0 0
        %476 = vperm.xlu0 %475, %v445
        %v477 = vpop.permute.xlu0 %476
        %480 = vset.pattern.permute.xlu0 0
        %481 = vperm.xlu0 %480, %v446
        %v482 = vpop.permute.xlu0 %481
        %485 = vset.pattern.permute.xlu0 0
        %486 = vperm.xlu0 %485, %v447
        %v487 = vpop.permute.xlu0 %486
        %490 = vset.pattern.permute.xlu0 0
        %491 = vperm.xlu0 %490, %v448
        %v492 = vpop.permute.xlu0 %491
        %495 = vset.pattern.permute.xlu0 0
        %496 = vperm.xlu0 %495, %v449
        %v497 = vpop.permute.xlu0 %496
        %500 = vset.pattern.permute.xlu0 0
        %501 = vperm.xlu0 %500, %v450
        %v502 = vpop.permute.xlu0 %501
        %505 = vset.pattern.permute.xlu0 0
        %506 = vperm.xlu0 %505, %v451
        %v507 = vpop.permute.xlu0 %506
        %510 = vset.pattern.permute.xlu0 0
        %511 = vperm.xlu0 %510, %v452
        %v512 = vpop.permute.xlu0 %511
        %515 = vset.pattern.permute.xlu0 0
        %516 = vperm.xlu0 %515, %v453
        %v517 = vpop.permute.xlu0 %516
        %520 = vset.pattern.permute.xlu0 0
        %521 = vperm.xlu0 %520, %v454
        %v522 = vpop.permute.xlu0 %521
        %525 = vset.pattern.permute.xlu0 0
        %526 = vperm.xlu0 %525, %v455
        %v527 = vpop.permute.xlu0 %526
        %530 = vset.pattern.permute.xlu0 0
        %531 = vperm.xlu0 %530, %v456
        %v532 = vpop.permute.xlu0 %531
        %535 = vset.pattern.permute.xlu0 0
        %536 = vperm.xlu0 %535, %v457
        %v537 = vpop.permute.xlu0 %536
        %v540 = vlaneseq
        %v541 = vshrl.u32 %v540, 7
        %v542 = vsub.s32 0, %v541
        %v543 = vrot.slane %v458, %v542
        %v544 = vlaneseq
        %v545 = vshrl.u32 %v544, 7
        %v546 = vsub.s32 4, %v545
        %v547 = vrot.slane %v458, %v546
        %v550 = vlaneseq
        %v551 = vshrl.u32 %v550, 7
        %v552 = vsub.s32 0, %v551
        %v553 = vrot.slane %v543, %v552
        %v554 = vlaneseq
        %v555 = vshrl.u32 %v554, 7
        %v556 = vsub.s32 0, %v555
        %v557 = vrot.slane %v547, %v556
        %v558 = vmul.f32 %v462, %v553
        %v559 = vmul.f32 %v462, %v557
        %v560 = vmul.f32 %v467, %v553
        %v561 = vmul.f32 %v467, %v557
        %v562 = vmul.f32 %v472, %v553
        %v563 = vmul.f32 %v472, %v557
        %v564 = vmul.f32 %v477, %v553
        %v565 = vmul.f32 %v477, %v557
        %v566 = vmul.f32 %v482, %v553
        %v567 = vmul.f32 %v482, %v557
        %v568 = vmul.f32 %v487, %v553
        %v569 = vmul.f32 %v487, %v557
        %v570 = vmul.f32 %v492, %v553
        %v571 = vmul.f32 %v492, %v557
        %v572 = vmul.f32 %v497, %v553
        %v573 = vmul.f32 %v497, %v557
        %v574 = vmul.f32 %v502, %v553
        %v575 = vmul.f32 %v502, %v557
        %v576 = vmul.f32 %v507, %v553
        %v577 = vmul.f32 %v507, %v557
        %v578 = vmul.f32 %v512, %v553
        %v579 = vmul.f32 %v512, %v557
        %v580 = vmul.f32 %v517, %v553
        %v581 = vmul.f32 %v517, %v557
        %v582 = vmul.f32 %v522, %v553
        %v583 = vmul.f32 %v522, %v557
        %v584 = vmul.f32 %v527, %v553
        %v585 = vmul.f32 %v527, %v557
        %v586 = vmul.f32 %v532, %v553
        %v587 = vmul.f32 %v532, %v557
        %v588 = vmul.f32 %v537, %v553
        %v589 = vmul.f32 %v537, %v557
        %590 = vset.pattern.permute.xlu0 1
        %591 = vperm.xlu0 %590, %v442
        %v592 = vpop.permute.xlu0 %591
        %594 = vset.pattern.permute.xlu0 1
        %595 = vperm.xlu0 %594, %v443
        %v596 = vpop.permute.xlu0 %595
        %598 = vset.pattern.permute.xlu0 1
        %599 = vperm.xlu0 %598, %v444
        %v600 = vpop.permute.xlu0 %599
        %602 = vset.pattern.permute.xlu0 1
        %603 = vperm.xlu0 %602, %v445
        %v604 = vpop.permute.xlu0 %603
        %606 = vset.pattern.permute.xlu0 1
        %607 = vperm.xlu0 %606, %v446
        %v608 = vpop.permute.xlu0 %607
        %610 = vset.pattern.permute.xlu0 1
        %611 = vperm.xlu0 %610, %v447
        %v612 = vpop.permute.xlu0 %611
        %614 = vset.pattern.permute.xlu0 1
        %615 = vperm.xlu0 %614, %v448
        %v616 = vpop.permute.xlu0 %615
        %618 = vset.pattern.permute.xlu0 1
        %619 = vperm.xlu0 %618, %v449
        %v620 = vpop.permute.xlu0 %619
        %622 = vset.pattern.permute.xlu0 1
        %623 = vperm.xlu0 %622, %v450
        %v624 = vpop.permute.xlu0 %623
        %626 = vset.pattern.permute.xlu0 1
        %627 = vperm.xlu0 %626, %v451
        %v628 = vpop.permute.xlu0 %627
        %630 = vset.pattern.permute.xlu0 1
        %631 = vperm.xlu0 %630, %v452
        %v632 = vpop.permute.xlu0 %631
        %634 = vset.pattern.permute.xlu0 1
        %635 = vperm.xlu0 %634, %v453
        %v636 = vpop.permute.xlu0 %635
        %638 = vset.pattern.permute.xlu0 1
        %639 = vperm.xlu0 %638, %v454
        %v640 = vpop.permute.xlu0 %639
        %642 = vset.pattern.permute.xlu0 1
        %643 = vperm.xlu0 %642, %v455
        %v644 = vpop.permute.xlu0 %643
        %646 = vset.pattern.permute.xlu0 1
        %647 = vperm.xlu0 %646, %v456
        %v648 = vpop.permute.xlu0 %647
        %650 = vset.pattern.permute.xlu0 1
        %651 = vperm.xlu0 %650, %v457
        %v652 = vpop.permute.xlu0 %651
        %v654 = vlaneseq
        %v655 = vshrl.u32 %v654, 7
        %v656 = vsub.s32 1, %v655
        %v657 = vrot.slane %v458, %v656
        %v658 = vlaneseq
        %v659 = vshrl.u32 %v658, 7
        %v660 = vsub.s32 5, %v659
        %v661 = vrot.slane %v458, %v660
        %v664 = vlaneseq
        %v665 = vshrl.u32 %v664, 7
        %v666 = vsub.s32 1, %v665
        %v667 = vrot.slane %v657, %v666
        %v668 = vlaneseq
        %v669 = vshrl.u32 %v668, 7
        %v670 = vsub.s32 1, %v669
        %v671 = vrot.slane %v661, %v670
        %v672 = vmul.f32 %v592, %v667
        %v673 = vmul.f32 %v592, %v671
        %v674 = vmul.f32 %v596, %v667
        %v675 = vmul.f32 %v596, %v671
        %v676 = vmul.f32 %v600, %v667
        %v677 = vmul.f32 %v600, %v671
        %v678 = vmul.f32 %v604, %v667
        %v679 = vmul.f32 %v604, %v671
        %v680 = vmul.f32 %v608, %v667
        %v681 = vmul.f32 %v608, %v671
        %v682 = vmul.f32 %v612, %v667
        %v683 = vmul.f32 %v612, %v671
        %v684 = vmul.f32 %v616, %v667
        %v685 = vmul.f32 %v616, %v671
        %v686 = vmul.f32 %v620, %v667
        %v687 = vmul.f32 %v620, %v671
        %v688 = vmul.f32 %v624, %v667
        %v689 = vmul.f32 %v624, %v671
        %v690 = vmul.f32 %v628, %v667
        %v691 = vmul.f32 %v628, %v671
        %v692 = vmul.f32 %v632, %v667
        %v693 = vmul.f32 %v632, %v671
        %v694 = vmul.f32 %v636, %v667
        %v695 = vmul.f32 %v636, %v671
        %v696 = vmul.f32 %v640, %v667
        %v697 = vmul.f32 %v640, %v671
        %v698 = vmul.f32 %v644, %v667
        %v699 = vmul.f32 %v644, %v671
        %v700 = vmul.f32 %v648, %v667
        %v701 = vmul.f32 %v648, %v671
        %v702 = vmul.f32 %v652, %v667
        %v703 = vmul.f32 %v652, %v671
        %v704 = vadd.f32 %v558, %v672
        %v705 = vadd.f32 %v559, %v673
        %v706 = vadd.f32 %v560, %v674
        %v707 = vadd.f32 %v561, %v675
        %v708 = vadd.f32 %v562, %v676
        %v709 = vadd.f32 %v563, %v677
        %v710 = vadd.f32 %v564, %v678
        %v711 = vadd.f32 %v565, %v679
        %v712 = vadd.f32 %v566, %v680
        %v713 = vadd.f32 %v567, %v681
        %v714 = vadd.f32 %v568, %v682
        %v715 = vadd.f32 %v569, %v683
        %v716 = vadd.f32 %v570, %v684
        %v717 = vadd.f32 %v571, %v685
        %v718 = vadd.f32 %v572, %v686
        %v719 = vadd.f32 %v573, %v687
        %v720 = vadd.f32 %v574, %v688
        %v721 = vadd.f32 %v575, %v689
        %v722 = vadd.f32 %v576, %v690
        %v723 = vadd.f32 %v577, %v691
        %v724 = vadd.f32 %v578, %v692
        %v725 = vadd.f32 %v579, %v693
        %v726 = vadd.f32 %v580, %v694
        %v727 = vadd.f32 %v581, %v695
        %v728 = vadd.f32 %v582, %v696
        %v729 = vadd.f32 %v583, %v697
        %v730 = vadd.f32 %v584, %v698
        %v731 = vadd.f32 %v585, %v699
        %v732 = vadd.f32 %v586, %v700
        %v733 = vadd.f32 %v587, %v701
        %v734 = vadd.f32 %v588, %v702
        %v735 = vadd.f32 %v589, %v703
        %736 = vset.pattern.permute.xlu0 2
        %737 = vperm.xlu0 %736, %v442
        %v738 = vpop.permute.xlu0 %737
        %740 = vset.pattern.permute.xlu0 2
        %741 = vperm.xlu0 %740, %v443
        %v742 = vpop.permute.xlu0 %741
        %744 = vset.pattern.permute.xlu0 2
        %745 = vperm.xlu0 %744, %v444
        %v746 = vpop.permute.xlu0 %745
        %748 = vset.pattern.permute.xlu0 2
        %749 = vperm.xlu0 %748, %v445
        %v750 = vpop.permute.xlu0 %749
        %752 = vset.pattern.permute.xlu0 2
        %753 = vperm.xlu0 %752, %v446
        %v754 = vpop.permute.xlu0 %753
        %756 = vset.pattern.permute.xlu0 2
        %757 = vperm.xlu0 %756, %v447
        %v758 = vpop.permute.xlu0 %757
        %760 = vset.pattern.permute.xlu0 2
        %761 = vperm.xlu0 %760, %v448
        %v762 = vpop.permute.xlu0 %761
        %764 = vset.pattern.permute.xlu0 2
        %765 = vperm.xlu0 %764, %v449
        %v766 = vpop.permute.xlu0 %765
        %768 = vset.pattern.permute.xlu0 2
        %769 = vperm.xlu0 %768, %v450
        %v770 = vpop.permute.xlu0 %769
        %772 = vset.pattern.permute.xlu0 2
        %773 = vperm.xlu0 %772, %v451
        %v774 = vpop.permute.xlu0 %773
        %776 = vset.pattern.permute.xlu0 2
        %777 = vperm.xlu0 %776, %v452
        %v778 = vpop.permute.xlu0 %777
        %780 = vset.pattern.permute.xlu0 2
        %781 = vperm.xlu0 %780, %v453
        %v782 = vpop.permute.xlu0 %781
        %784 = vset.pattern.permute.xlu0 2
        %785 = vperm.xlu0 %784, %v454
        %v786 = vpop.permute.xlu0 %785
        %788 = vset.pattern.permute.xlu0 2
        %789 = vperm.xlu0 %788, %v455
        %v790 = vpop.permute.xlu0 %789
        %792 = vset.pattern.permute.xlu0 2
        %793 = vperm.xlu0 %792, %v456
        %v794 = vpop.permute.xlu0 %793
        %796 = vset.pattern.permute.xlu0 2
        %797 = vperm.xlu0 %796, %v457
        %v798 = vpop.permute.xlu0 %797
        %v800 = vlaneseq
        %v801 = vshrl.u32 %v800, 7
        %v802 = vsub.s32 2, %v801
        %v803 = vrot.slane %v458, %v802
        %v804 = vlaneseq
        %v805 = vshrl.u32 %v804, 7
        %v806 = vsub.s32 6, %v805
        %v807 = vrot.slane %v458, %v806
        %v810 = vlaneseq
        %v811 = vshrl.u32 %v810, 7
        %v812 = vsub.s32 2, %v811
        %v813 = vrot.slane %v803, %v812
        %v814 = vlaneseq
        %v815 = vshrl.u32 %v814, 7
        %v816 = vsub.s32 2, %v815
        %v817 = vrot.slane %v807, %v816
        %v818 = vmul.f32 %v738, %v813
        %v819 = vmul.f32 %v738, %v817
        %v820 = vmul.f32 %v742, %v813
        %v821 = vmul.f32 %v742, %v817
        %v822 = vmul.f32 %v746, %v813
        %v823 = vmul.f32 %v746, %v817
        %v824 = vmul.f32 %v750, %v813
        %v825 = vmul.f32 %v750, %v817
        %v826 = vmul.f32 %v754, %v813
        %v827 = vmul.f32 %v754, %v817
        %v828 = vmul.f32 %v758, %v813
        %v829 = vmul.f32 %v758, %v817
        %v830 = vmul.f32 %v762, %v813
        %v831 = vmul.f32 %v762, %v817
        %v832 = vmul.f32 %v766, %v813
        %v833 = vmul.f32 %v766, %v817
        %v834 = vmul.f32 %v770, %v813
        %v835 = vmul.f32 %v770, %v817
        %v836 = vmul.f32 %v774, %v813
        %v837 = vmul.f32 %v774, %v817
        %v838 = vmul.f32 %v778, %v813
        %v839 = vmul.f32 %v778, %v817
        %v840 = vmul.f32 %v782, %v813
        %v841 = vmul.f32 %v782, %v817
        %v842 = vmul.f32 %v786, %v813
        %v843 = vmul.f32 %v786, %v817
        %v844 = vmul.f32 %v790, %v813
        %v845 = vmul.f32 %v790, %v817
        %v846 = vmul.f32 %v794, %v813
        %v847 = vmul.f32 %v794, %v817
        %v848 = vmul.f32 %v798, %v813
        %v849 = vmul.f32 %v798, %v817
        %v850 = vadd.f32 %v704, %v818
        %v851 = vadd.f32 %v705, %v819
        %v852 = vadd.f32 %v706, %v820
        %v853 = vadd.f32 %v707, %v821
        %v854 = vadd.f32 %v708, %v822
        %v855 = vadd.f32 %v709, %v823
        %v856 = vadd.f32 %v710, %v824
        %v857 = vadd.f32 %v711, %v825
        %v858 = vadd.f32 %v712, %v826
        %v859 = vadd.f32 %v713, %v827
        %v860 = vadd.f32 %v714, %v828
        %v861 = vadd.f32 %v715, %v829
        %v862 = vadd.f32 %v716, %v830
        %v863 = vadd.f32 %v717, %v831
        %v864 = vadd.f32 %v718, %v832
        %v865 = vadd.f32 %v719, %v833
        %v866 = vadd.f32 %v720, %v834
        %v867 = vadd.f32 %v721, %v835
        %v868 = vadd.f32 %v722, %v836
        %v869 = vadd.f32 %v723, %v837
        %v870 = vadd.f32 %v724, %v838
        %v871 = vadd.f32 %v725, %v839
        %v872 = vadd.f32 %v726, %v840
        %v873 = vadd.f32 %v727, %v841
        %v874 = vadd.f32 %v728, %v842
        %v875 = vadd.f32 %v729, %v843
        %v876 = vadd.f32 %v730, %v844
        %v877 = vadd.f32 %v731, %v845
        %v878 = vadd.f32 %v732, %v846
        %v879 = vadd.f32 %v733, %v847
        %v880 = vadd.f32 %v734, %v848
        %v881 = vadd.f32 %v735, %v849
        %v882 = vld [vmem:[#allocation4] sm:$0x3]
        %v884 = vlaneseq
        %v885 = vshrl.u32 %v884, 7
        %v886 = vsub.s32 0, %v885
        %v887 = vrot.slane %v882, %v886
        %v888 = vlaneseq
        %v889 = vshrl.u32 %v888, 7
        %v890 = vsub.s32 1, %v889
        %v891 = vrot.slane %v882, %v890
        %v894 = vadd.f32 %v850, %v887
        %v895 = vadd.f32 %v851, %v891
        %v896 = vadd.f32 %v852, %v887
        %v897 = vadd.f32 %v853, %v891
        %v898 = vadd.f32 %v854, %v887
        %v899 = vadd.f32 %v855, %v891
        %v900 = vadd.f32 %v856, %v887
        %v901 = vadd.f32 %v857, %v891
        %v902 = vadd.f32 %v858, %v887
        %v903 = vadd.f32 %v859, %v891
        %v904 = vadd.f32 %v860, %v887
        %v905 = vadd.f32 %v861, %v891
        %v906 = vadd.f32 %v862, %v887
        %v907 = vadd.f32 %v863, %v891
        %v908 = vadd.f32 %v864, %v887
        %v909 = vadd.f32 %v865, %v891
        %v910 = vadd.f32 %v866, %v887
        %v911 = vadd.f32 %v867, %v891
        %v912 = vadd.f32 %v868, %v887
        %v913 = vadd.f32 %v869, %v891
        %v914 = vadd.f32 %v870, %v887
        %v915 = vadd.f32 %v871, %v891
        %v916 = vadd.f32 %v872, %v887
        %v917 = vadd.f32 %v873, %v891
        %v918 = vadd.f32 %v874, %v887
        %v919 = vadd.f32 %v875, %v891
        %v920 = vadd.f32 %v876, %v887
        %v921 = vadd.f32 %v877, %v891
        %v922 = vadd.f32 %v878, %v887
        %v923 = vadd.f32 %v879, %v891
        %v924 = vadd.f32 %v880, %v887
        %v925 = vadd.f32 %v881, %v891
        %v926 = vmax.f32 %v894, 0.0
        %v927 = vmax.f32 %v895, 0.0
        %v928 = vmax.f32 %v896, 0.0
        %v929 = vmax.f32 %v897, 0.0
        %v930 = vmax.f32 %v898, 0.0
        %v931 = vmax.f32 %v899, 0.0
        %v932 = vmax.f32 %v900, 0.0
        %v933 = vmax.f32 %v901, 0.0
        %v934 = vmax.f32 %v902, 0.0
        %v935 = vmax.f32 %v903, 0.0
        %v936 = vmax.f32 %v904, 0.0
        %v937 = vmax.f32 %v905, 0.0
        %v938 = vmax.f32 %v906, 0.0
        %v939 = vmax.f32 %v907, 0.0
        %v940 = vmax.f32 %v908, 0.0
        %v941 = vmax.f32 %v909, 0.0
        %v942 = vmax.f32 %v910, 0.0
        %v943 = vmax.f32 %v911, 0.0
        %v944 = vmax.f32 %v912, 0.0
        %v945 = vmax.f32 %v913, 0.0
        %v946 = vmax.f32 %v914, 0.0
        %v947 = vmax.f32 %v915, 0.0
        %v948 = vmax.f32 %v916, 0.0
        %v949 = vmax.f32 %v917, 0.0
        %v950 = vmax.f32 %v918, 0.0
        %v951 = vmax.f32 %v919, 0.0
        %v952 = vmax.f32 %v920, 0.0
        %v953 = vmax.f32 %v921, 0.0
        %v954 = vmax.f32 %v922, 0.0
        %v955 = vmax.f32 %v923, 0.0
        %v956 = vmax.f32 %v924, 0.0
        %v957 = vmax.f32 %v925, 0.0
        %v958 = vld [vmem:[#allocation6] sm:$0xff]
        %v959 = vld [vmem:[#allocation6 + $0x8] sm:$0xff]
        %v960 = vld [vmem:[#allocation6 + $0x10] sm:$0xff]
        %v961 = vld [vmem:[#allocation6 + $0x18] sm:$0xff]
        %v962 = vld [vmem:[#allocation6 + $0x20] sm:$0xff]
        %v963 = vld [vmem:[#allocation6 + $0x28] sm:$0xff]
        %v964 = vld [vmem:[#allocation6 + $0x30] sm:$0xff]
        %v965 = vld [vmem:[#allocation6 + $0x38] sm:$0xff]
        %v966 = vld [vmem:[#allocation6 + $0x40] sm:$0xff]
        %v967 = vld [vmem:[#allocation6 + $0x48] sm:$0xff]
        %v968 = vld [vmem:[#allocation6 + $0x50] sm:$0xff]
        %v969 = vld [vmem:[#allocation6 + $0x58] sm:$0xff]
        %v970 = vld [vmem:[#allocation6 + $0x60] sm:$0xff]
        %v971 = vld [vmem:[#allocation6 + $0x68] sm:$0xff]
        %v972 = vld [vmem:[#allocation6 + $0x70] sm:$0xff]
        %v973 = vld [vmem:[#allocation6 + $0x78] sm:$0xff]
        %v974 = vld [vmem:[#allocation6 + $0x80] sm:$0xff]
        %v975 = vld [vmem:[#allocation6 + $0x88] sm:$0xff]
        %v976 = vld [vmem:[#allocation6 + $0x90] sm:$0xff]
        %v977 = vld [vmem:[#allocation6 + $0x98] sm:$0xff]
        %v978 = vld [vmem:[#allocation6 + $0xa0] sm:$0xff]
        %v979 = vld [vmem:[#allocation6 + $0xa8] sm:$0xff]
        %v980 = vld [vmem:[#allocation6 + $0xb0] sm:$0xff]
        %v981 = vld [vmem:[#allocation6 + $0xb8] sm:$0xff]
        %v982 = vld [vmem:[#allocation6 + $0xc0] sm:$0xff]
        %v983 = vld [vmem:[#allocation6 + $0xc8] sm:$0xff]
        %v984 = vld [vmem:[#allocation6 + $0xd0] sm:$0xff]
        %v985 = vld [vmem:[#allocation6 + $0xd8] sm:$0xff]
        %v986 = vld [vmem:[#allocation6 + $0xe0] sm:$0xff]
        %v987 = vld [vmem:[#allocation6 + $0xe8] sm:$0xff]
        %v988 = vld [vmem:[#allocation6 + $0xf0] sm:$0xff]
        %v989 = vld [vmem:[#allocation6 + $0xf8] sm:$0xff]
        %v990 = vld [vmem:[#allocation6 + $0x100] sm:$0xff]
        %v991 = vld [vmem:[#allocation6 + $0x108] sm:$0xff]
        %v992 = vld [vmem:[#allocation6 + $0x110] sm:$0xff]
        %v993 = vld [vmem:[#allocation6 + $0x118] sm:$0xff]
        %v994 = vld [vmem:[#allocation6 + $0x120] sm:$0xff]
        %v995 = vld [vmem:[#allocation6 + $0x128] sm:$0xff]
        %v996 = vld [vmem:[#allocation6 + $0x130] sm:$0xff]
        %v997 = vld [vmem:[#allocation6 + $0x138] sm:$0xff]
        %v998 = vld [vmem:[#allocation6 + $0x140] sm:$0xff]
        %v999 = vld [vmem:[#allocation6 + $0x148] sm:$0xff]
        %v1000 = vld [vmem:[#allocation6 + $0x150] sm:$0xff]
        %v1001 = vld [vmem:[#allocation6 + $0x158] sm:$0xff]
        %v1002 = vld [vmem:[#allocation6 + $0x160] sm:$0xff]
        %v1003 = vld [vmem:[#allocation6 + $0x168] sm:$0xff]
        %v1004 = vld [vmem:[#allocation6 + $0x170] sm:$0xff]
        %v1005 = vld [vmem:[#allocation6 + $0x178] sm:$0xff]
        %v1006 = vld [vmem:[#allocation6 + $0x180] sm:$0xff]
        %v1007 = vld [vmem:[#allocation6 + $0x188] sm:$0xff]
        %v1008 = vld [vmem:[#allocation6 + $0x190] sm:$0xff]
        %v1009 = vld [vmem:[#allocation6 + $0x198] sm:$0xff]
        %v1010 = vld [vmem:[#allocation6 + $0x1a0] sm:$0xff]
        %v1011 = vld [vmem:[#allocation6 + $0x1a8] sm:$0xff]
        %v1012 = vld [vmem:[#allocation6 + $0x1b0] sm:$0xff]
        %v1013 = vld [vmem:[#allocation6 + $0x1b8] sm:$0xff]
        %v1014 = vld [vmem:[#allocation6 + $0x1c0] sm:$0xff]
        %v1015 = vld [vmem:[#allocation6 + $0x1c8] sm:$0xff]
        %v1016 = vld [vmem:[#allocation6 + $0x1d0] sm:$0xff]
        %v1017 = vld [vmem:[#allocation6 + $0x1d8] sm:$0xff]
        %v1018 = vld [vmem:[#allocation6 + $0x1e0] sm:$0xff]
        %v1019 = vld [vmem:[#allocation6 + $0x1e8] sm:$0xff]
        %v1020 = vld [vmem:[#allocation6 + $0x1f0] sm:$0xff]
        %v1021 = vld [vmem:[#allocation6 + $0x1f8] sm:$0xff]
        %v1022 = vld [vmem:[#allocation7] sm:$0x3]
        %v1024 = vlaneseq
        %v1025 = vshrl.u32 %v1024, 7
        %v1026 = vsub.s32 0, %v1025
        %v1027 = vrot.slane %v1022, %v1026
        %v1028 = vlaneseq
        %v1029 = vshrl.u32 %v1028, 7
        %v1030 = vsub.s32 1, %v1029
        %v1031 = vrot.slane %v1022, %v1030
        %1034 = vmatprep.subr.mxu0 %v959
        %1035 = vmatpush1.msra.mxu0 %v958
        %1036 = vmatprep.subr.mxu0 %v961
        %1037 = vmatpush1.msra.mxu0 %v960
        %1038 = vmatprep.subr.mxu0 %v963
        %1039 = vmatpush1.msra.mxu0 %v962
        %1040 = vmatprep.subr.mxu0 %v965
        %1041 = vmatpush1.msra.mxu0 %v964
        %1042 = vmatprep.subr.mxu0 %v967
        %1043 = vmatpush1.msra.mxu0 %v966
        %1044 = vmatprep.subr.mxu0 %v969
        %1045 = vmatpush1.msra.mxu0 %v968
        %1046 = vmatprep.subr.mxu0 %v971
        %1047 = vmatpush1.msra.mxu0 %v970
        %1048 = vmatprep.subr.mxu0 %v973
        %1049 = vmatpush1.msra.mxu0 %v972
        %1050 = vmatprep.subr.mxu0 %v975
        %1051 = vmatpush1.msra.mxu0 %v974
        %1052 = vmatprep.subr.mxu0 %v977
        %1053 = vmatpush1.msra.mxu0 %v976
        %1054 = vmatprep.subr.mxu0 %v979
        %1055 = vmatpush1.msra.mxu0 %v978
        %1056 = vmatprep.subr.mxu0 %v981
        %1057 = vmatpush1.msra.mxu0 %v980
        %1058 = vmatprep.subr.mxu0 %v983
        %1059 = vmatpush1.msra.mxu0 %v982
        %1060 = vmatprep.subr.mxu0 %v985
        %1061 = vmatpush1.msra.mxu0 %v984
        %1062 = vmatprep.subr.mxu0 %v987
        %1063 = vmatpush1.msra.mxu0 %v986
        %1064 = vmatprep.subr.mxu0 %v989
        %1065 = vmatpush1.msra.mxu0 %v988
        %1066 = vmatprep.subr.mxu0 %v991
        %1067 = vmatpush1.msra.mxu0 %v990
        %1068 = vmatprep.subr.mxu0 %v993
        %1069 = vmatpush1.msra.mxu0 %v992
        %1070 = vmatprep.subr.mxu0 %v995
        %1071 = vmatpush1.msra.mxu0 %v994
        %1072 = vmatprep.subr.mxu0 %v997
        %1073 = vmatpush1.msra.mxu0 %v996
        %1074 = vmatprep.subr.mxu0 %v999
        %1075 = vmatpush1.msra.mxu0 %v998
        %1076 = vmatprep.subr.mxu0 %v1001
        %1077 = vmatpush1.msra.mxu0 %v1000
        %1078 = vmatprep.subr.mxu0 %v1003
        %1079 = vmatpush1.msra.mxu0 %v1002
        %1080 = vmatprep.subr.mxu0 %v1005
        %1081 = vmatpush1.msra.mxu0 %v1004
        %1082 = vmatprep.subr.mxu0 %v1007
        %1083 = vmatpush1.msra.mxu0 %v1006
        %1084 = vmatprep.subr.mxu0 %v1009
        %1085 = vmatpush1.msra.mxu0 %v1008
        %1086 = vmatprep.subr.mxu0 %v1011
        %1087 = vmatpush1.msra.mxu0 %v1010
        %1088 = vmatprep.subr.mxu0 %v1013
        %1089 = vmatpush1.msra.mxu0 %v1012
        %1090 = vmatprep.subr.mxu0 %v1015
        %1091 = vmatpush1.msra.mxu0 %v1014
        %1092 = vmatprep.subr.mxu0 %v1017
        %1093 = vmatpush1.msra.mxu0 %v1016
        %1094 = vmatprep.subr.mxu0 %v1019
        %1095 = vmatpush1.msra.mxu0 %v1018
        %1096 = vmatprep.subr.mxu0 %v1021
        %1097 = vmatpush1.msra.mxu0 %v1020
        %1098 = vmatprep.mubr.f32.mxu0 %v927
        %1099 = vmatmul.mubr.f32.gmra.mrb[0].mxu0 %v926
        %v1100 = vpop.f32.mrb[0].mxu0
        %v1101 = vadd.f32 %v1027, %v1100
        %v1102 = vpop.f32.mrb[0].mxu0
        %v1103 = vadd.f32 %v1031, %v1102
        %1104 = vmatprep.mubr.f32.mxu0 %v929
        %1105 = vmatmul.mubr.f32.gmra.mrb[0].mxu0 %v928
        %v1106 = vpop.f32.mrb[0].mxu0
        %v1107 = vadd.f32 %v1027, %v1106
        %v1108 = vpop.f32.mrb[0].mxu0
        %v1109 = vadd.f32 %v1031, %v1108
        %1110 = vmatprep.mubr.f32.mxu0 %v931
        %1111 = vmatmul.mubr.f32.gmra.mrb[0].mxu0 %v930
        %v1112 = vpop.f32.mrb[0].mxu0
        %v1113 = vadd.f32 %v1027, %v1112
        %v1114 = vpop.f32.mrb[0].mxu0
        %v1115 = vadd.f32 %v1031, %v1114
        %1116 = vmatprep.mubr.f32.mxu0 %v933
        %1117 = vmatmul.mubr.f32.gmra.mrb[0].mxu0 %v932
        %v1118 = vpop.f32.mrb[0].mxu0
        %v1119 = vadd.f32 %v1027, %v1118
        %v1120 = vpop.f32.mrb[0].mxu0
        %v1121 = vadd.f32 %v1031, %v1120
        %1122 = vmatprep.mubr.f32.mxu0 %v935
        %1123 = vmatmul.mubr.f32.gmra.mrb[0].mxu0 %v934
        %v1124 = vpop.f32.mrb[0].mxu0
        %v1125 = vadd.f32 %v1027, %v1124
        %v1126 = vpop.f32.mrb[0].mxu0
        %v1127 = vadd.f32 %v1031, %v1126
        %1128 = vmatprep.mubr.f32.mxu0 %v937
        %1129 = vmatmul.mubr.f32.gmra.mrb[0].mxu0 %v936
        %v1130 = vpop.f32.mrb[0].mxu0
        %v1131 = vadd.f32 %v1027, %v1130
        %v1132 = vpop.f32.mrb[0].mxu0
        %v1133 = vadd.f32 %v1031, %v1132
        %1134 = vmatprep.mubr.f32.mxu0 %v939
        %1135 = vmatmul.mubr.f32.gmra.mrb[0].mxu0 %v938
        %v1136 = vpop.f32.mrb[0].mxu0
        %v1137 = vadd.f32 %v1027, %v1136
        %v1138 = vpop.f32.mrb[0].mxu0
        %v1139 = vadd.f32 %v1031, %v1138
        %1140 = vmatprep.mubr.f32.mxu0 %v941
        %1141 = vmatmul.mubr.f32.gmra.mrb[0].mxu0 %v940
        %v1142 = vpop.f32.mrb[0].mxu0
        %v1143 = vadd.f32 %v1027, %v1142
        %v1144 = vpop.f32.mrb[0].mxu0
        %v1145 = vadd.f32 %v1031, %v1144
        %1146 = vmatprep.mubr.f32.mxu0 %v943
        %1147 = vmatmul.mubr.f32.gmra.mrb[0].mxu0 %v942
        %v1148 = vpop.f32.mrb[0].mxu0
        %v1149 = vadd.f32 %v1027, %v1148
        %v1150 = vpop.f32.mrb[0].mxu0
        %v1151 = vadd.f32 %v1031, %v1150
        %1152 = vmatprep.mubr.f32.mxu0 %v945
        %1153 = vmatmul.mubr.f32.gmra.mrb[0].mxu0 %v944
        %v1154 = vpop.f32.mrb[0].mxu0
        %v1155 = vadd.f32 %v1027, %v1154
        %v1156 = vpop.f32.mrb[0].mxu0
        %v1157 = vadd.f32 %v1031, %v1156
        %1158 = vmatprep.mubr.f32.mxu0 %v947
        %1159 = vmatmul.mubr.f32.gmra.mrb[0].mxu0 %v946
        %v1160 = vpop.f32.mrb[0].mxu0
        %v1161 = vadd.f32 %v1027, %v1160
        %v1162 = vpop.f32.mrb[0].mxu0
        %v1163 = vadd.f32 %v1031, %v1162
        %1164 = vmatprep.mubr.f32.mxu0 %v949
        %1165 = vmatmul.mubr.f32.gmra.mrb[0].mxu0 %v948
        %v1166 = vpop.f32.mrb[0].mxu0
        %v1167 = vadd.f32 %v1027, %v1166
        %v1168 = vpop.f32.mrb[0].mxu0
        %v1169 = vadd.f32 %v1031, %v1168
        %1170 = vmatprep.mubr.f32.mxu0 %v951
        %1171 = vmatmul.mubr.f32.gmra.mrb[0].mxu0 %v950
        %v1172 = vpop.f32.mrb[0].mxu0
        %v1173 = vadd.f32 %v1027, %v1172
        %v1174 = vpop.f32.mrb[0].mxu0
        %v1175 = vadd.f32 %v1031, %v1174
        %1176 = vmatprep.mubr.f32.mxu0 %v953
        %1177 = vmatmul.mubr.f32.gmra.mrb[0].mxu0 %v952
        %v1178 = vpop.f32.mrb[0].mxu0
        %v1179 = vadd.f32 %v1027, %v1178
        %v1180 = vpop.f32.mrb[0].mxu0
        %v1181 = vadd.f32 %v1031, %v1180
        %1182 = vmatprep.mubr.f32.mxu0 %v955
        %1183 = vmatmul.mubr.f32.gmra.mrb[0].mxu0 %v954
        %v1184 = vpop.f32.mrb[0].mxu0
        %v1185 = vadd.f32 %v1027, %v1184
        %v1186 = vpop.f32.mrb[0].mxu0
        %v1187 = vadd.f32 %v1031, %v1186
        %1188 = vmatprep.mubr.f32.mxu0 %v957
        %1189 = vmatmul.mubr.f32.gmra.mrb[0].mxu0 %v956
        %v1190 = vpop.f32.mrb[0].mxu0
        %v1191 = vadd.f32 %v1027, %v1190
        %v1192 = vpop.f32.mrb[0].mxu0
        %v1193 = vadd.f32 %v1031, %v1192
        %1194 = vdwg.mxu0
        %v1195 = vmax.f32 %v1101, 0.0
        %v1196 = vmax.f32 %v1103, 0.0
        %v1197 = vmax.f32 %v1107, 0.0
        %v1198 = vmax.f32 %v1109, 0.0
        %v1199 = vmax.f32 %v1113, 0.0
        %v1200 = vmax.f32 %v1115, 0.0
        %v1201 = vmax.f32 %v1119, 0.0
        %v1202 = vmax.f32 %v1121, 0.0
        %v1203 = vmax.f32 %v1125, 0.0
        %v1204 = vmax.f32 %v1127, 0.0
        %v1205 = vmax.f32 %v1131, 0.0
        %v1206 = vmax.f32 %v1133, 0.0
        %v1207 = vmax.f32 %v1137, 0.0
        %v1208 = vmax.f32 %v1139, 0.0
        %v1209 = vmax.f32 %v1143, 0.0
        %v1210 = vmax.f32 %v1145, 0.0
        %v1211 = vmax.f32 %v1149, 0.0
        %v1212 = vmax.f32 %v1151, 0.0
        %v1213 = vmax.f32 %v1155, 0.0
        %v1214 = vmax.f32 %v1157, 0.0
        %v1215 = vmax.f32 %v1161, 0.0
        %v1216 = vmax.f32 %v1163, 0.0
        %v1217 = vmax.f32 %v1167, 0.0
        %v1218 = vmax.f32 %v1169, 0.0
        %v1219 = vmax.f32 %v1173, 0.0
        %v1220 = vmax.f32 %v1175, 0.0
        %v1221 = vmax.f32 %v1179, 0.0
        %v1222 = vmax.f32 %v1181, 0.0
        %v1223 = vmax.f32 %v1185, 0.0
        %v1224 = vmax.f32 %v1187, 0.0
        %v1225 = vmax.f32 %v1191, 0.0
        %v1226 = vmax.f32 %v1193, 0.0
        %s1227 = scalar_lea.vmem [#allocation6], 512
        %v1228 = vld [vmem:[%s1227] sm:$0xff]
        %v1229 = vld [vmem:[%s1227 + $0x8] sm:$0xff]
        %v1230 = vld [vmem:[%s1227 + $0x10] sm:$0xff]
        %v1231 = vld [vmem:[%s1227 + $0x18] sm:$0xff]
        %v1232 = vld [vmem:[%s1227 + $0x20] sm:$0xff]
        %v1233 = vld [vmem:[%s1227 + $0x28] sm:$0xff]
        %v1234 = vld [vmem:[%s1227 + $0x30] sm:$0xff]
        %v1235 = vld [vmem:[%s1227 + $0x38] sm:$0xff]
        %v1236 = vld [vmem:[%s1227 + $0x40] sm:$0xff]
        %v1237 = vld [vmem:[%s1227 + $0x48] sm:$0xff]
        %v1238 = vld [vmem:[%s1227 + $0x50] sm:$0xff]
        %v1239 = vld [vmem:[%s1227 + $0x58] sm:$0xff]
        %v1240 = vld [vmem:[%s1227 + $0x60] sm:$0xff]
        %v1241 = vld [vmem:[%s1227 + $0x68] sm:$0xff]
        %v1242 = vld [vmem:[%s1227 + $0x70] sm:$0xff]
        %v1243 = vld [vmem:[%s1227 + $0x78] sm:$0xff]
        %v1244 = vld [vmem:[%s1227 + $0x80] sm:$0xff]
        %v1245 = vld [vmem:[%s1227 + $0x88] sm:$0xff]
        %v1246 = vld [vmem:[%s1227 + $0x90] sm:$0xff]
        %v1247 = vld [vmem:[%s1227 + $0x98] sm:$0xff]
        %v1248 = vld [vmem:[%s1227 + $0xa0] sm:$0xff]
        %v1249 = vld [vmem:[%s1227 + $0xa8] sm:$0xff]
        %v1250 = vld [vmem:[%s1227 + $0xb0] sm:$0xff]
        %v1251 = vld [vmem:[%s1227 + $0xb8] sm:$0xff]
        %v1252 = vld [vmem:[%s1227 + $0xc0] sm:$0xff]
        %v1253 = vld [vmem:[%s1227 + $0xc8] sm:$0xff]
        %v1254 = vld [vmem:[%s1227 + $0xd0] sm:$0xff]
        %v1255 = vld [vmem:[%s1227 + $0xd8] sm:$0xff]
        %v1256 = vld [vmem:[%s1227 + $0xe0] sm:$0xff]
        %v1257 = vld [vmem:[%s1227 + $0xe8] sm:$0xff]
        %v1258 = vld [vmem:[%s1227 + $0xf0] sm:$0xff]
        %v1259 = vld [vmem:[%s1227 + $0xf8] sm:$0xff]
        %v1260 = vld [vmem:[%s1227 + $0x100] sm:$0xff]
        %v1261 = vld [vmem:[%s1227 + $0x108] sm:$0xff]
        %v1262 = vld [vmem:[%s1227 + $0x110] sm:$0xff]
        %v1263 = vld [vmem:[%s1227 + $0x118] sm:$0xff]
        %v1264 = vld [vmem:[%s1227 + $0x120] sm:$0xff]
        %v1265 = vld [vmem:[%s1227 + $0x128] sm:$0xff]
        %v1266 = vld [vmem:[%s1227 + $0x130] sm:$0xff]
        %v1267 = vld [vmem:[%s1227 + $0x138] sm:$0xff]
        %v1268 = vld [vmem:[%s1227 + $0x140] sm:$0xff]
        %v1269 = vld [vmem:[%s1227 + $0x148] sm:$0xff]
        %v1270 = vld [vmem:[%s1227 + $0x150] sm:$0xff]
        %v1271 = vld [vmem:[%s1227 + $0x158] sm:$0xff]
        %v1272 = vld [vmem:[%s1227 + $0x160] sm:$0xff]
        %v1273 = vld [vmem:[%s1227 + $0x168] sm:$0xff]
        %v1274 = vld [vmem:[%s1227 + $0x170] sm:$0xff]
        %v1275 = vld [vmem:[%s1227 + $0x178] sm:$0xff]
        %v1276 = vld [vmem:[%s1227 + $0x180] sm:$0xff]
        %v1277 = vld [vmem:[%s1227 + $0x188] sm:$0xff]
        %v1278 = vld [vmem:[%s1227 + $0x190] sm:$0xff]
        %v1279 = vld [vmem:[%s1227 + $0x198] sm:$0xff]
        %v1280 = vld [vmem:[%s1227 + $0x1a0] sm:$0xff]
        %v1281 = vld [vmem:[%s1227 + $0x1a8] sm:$0xff]
        %v1282 = vld [vmem:[%s1227 + $0x1b0] sm:$0xff]
        %v1283 = vld [vmem:[%s1227 + $0x1b8] sm:$0xff]
        %v1284 = vld [vmem:[%s1227 + $0x1c0] sm:$0xff]
        %v1285 = vld [vmem:[%s1227 + $0x1c8] sm:$0xff]
        %v1286 = vld [vmem:[%s1227 + $0x1d0] sm:$0xff]
        %v1287 = vld [vmem:[%s1227 + $0x1d8] sm:$0xff]
        %v1288 = vld [vmem:[%s1227 + $0x1e0] sm:$0xff]
        %v1289 = vld [vmem:[%s1227 + $0x1e8] sm:$0xff]
        %v1290 = vld [vmem:[%s1227 + $0x1f0] sm:$0xff]
        %v1291 = vld [vmem:[%s1227 + $0x1f8] sm:$0xff]
        %s1292 = scalar_lea.vmem [#allocation7], 2
        %v1293 = vld [vmem:[%s1292] sm:$0x3]
        %v1295 = vlaneseq
        %v1296 = vshrl.u32 %v1295, 7
        %v1297 = vsub.s32 0, %v1296
        %v1298 = vrot.slane %v1293, %v1297
        %v1299 = vlaneseq
        %v1300 = vshrl.u32 %v1299, 7
        %v1301 = vsub.s32 1, %v1300
        %v1302 = vrot.slane %v1293, %v1301
        %1305 = vmatprep.subr.mxu0 %v1229
        %1306 = vmatpush1.msra.mxu0 %v1228
        %1307 = vmatprep.subr.mxu0 %v1231
        %1308 = vmatpush1.msra.mxu0 %v1230
        %1309 = vmatprep.subr.mxu0 %v1233
        %1310 = vmatpush1.msra.mxu0 %v1232
        %1311 = vmatprep.subr.mxu0 %v1235
        %1312 = vmatpush1.msra.mxu0 %v1234
        %1313 = vmatprep.subr.mxu0 %v1237
        %1314 = vmatpush1.msra.mxu0 %v1236
        %1315 = vmatprep.subr.mxu0 %v1239
        %1316 = vmatpush1.msra.mxu0 %v1238
        %1317 = vmatprep.subr.mxu0 %v1241
        %1318 = vmatpush1.msra.mxu0 %v1240
        %1319 = vmatprep.subr.mxu0 %v1243
        %1320 = vmatpush1.msra.mxu0 %v1242
        %1321 = vmatprep.subr.mxu0 %v1245
        %1322 = vmatpush1.msra.mxu0 %v1244
        %1323 = vmatprep.subr.mxu0 %v1247
        %1324 = vmatpush1.msra.mxu0 %v1246
        %1325 = vmatprep.subr.mxu0 %v1249
        %1326 = vmatpush1.msra.mxu0 %v1248
        %1327 = vmatprep.subr.mxu0 %v1251
        %1328 = vmatpush1.msra.mxu0 %v1250
        %1329 = vmatprep.subr.mxu0 %v1253
        %1330 = vmatpush1.msra.mxu0 %v1252
        %1331 = vmatprep.subr.mxu0 %v1255
        %1332 = vmatpush1.msra.mxu0 %v1254
        %1333 = vmatprep.subr.mxu0 %v1257
        %1334 = vmatpush1.msra.mxu0 %v1256
        %1335 = vmatprep.subr.mxu0 %v1259
        %1336 = vmatpush1.msra.mxu0 %v1258
        %1337 = vmatprep.subr.mxu0 %v1261
        %1338 = vmatpush1.msra.mxu0 %v1260
        %1339 = vmatprep.subr.mxu0 %v1263
        %1340 = vmatpush1.msra.mxu0 %v1262
        %1341 = vmatprep.subr.mxu0 %v1265
        %1342 = vmatpush1.msra.mxu0 %v1264
        %1343 = vmatprep.subr.mxu0 %v1267
        %1344 = vmatpush1.msra.mxu0 %v1266
        %1345 = vmatprep.subr.mxu0 %v1269
        %1346 = vmatpush1.msra.mxu0 %v1268
        %1347 = vmatprep.subr.mxu0 %v1271
        %1348 = vmatpush1.msra.mxu0 %v1270
        %1349 = vmatprep.subr.mxu0 %v1273
        %1350 = vmatpush1.msra.mxu0 %v1272
        %1351 = vmatprep.subr.mxu0 %v1275
        %1352 = vmatpush1.msra.mxu0 %v1274
        %1353 = vmatprep.subr.mxu0 %v1277
        %1354 = vmatpush1.msra.mxu0 %v1276
        %1355 = vmatprep.subr.mxu0 %v1279
        %1356 = vmatpush1.msra.mxu0 %v1278
        %1357 = vmatprep.subr.mxu0 %v1281
        %1358 = vmatpush1.msra.mxu0 %v1280
        %1359 = vmatprep.subr.mxu0 %v1283
        %1360 = vmatpush1.msra.mxu0 %v1282
        %1361 = vmatprep.subr.mxu0 %v1285
        %1362 = vmatpush1.msra.mxu0 %v1284
        %1363 = vmatprep.subr.mxu0 %v1287
        %1364 = vmatpush1.msra.mxu0 %v1286
        %1365 = vmatprep.subr.mxu0 %v1289
        %1366 = vmatpush1.msra.mxu0 %v1288
        %1367 = vmatprep.subr.mxu0 %v1291
        %1368 = vmatpush1.msra.mxu0 %v1290
        %1369 = vmatprep.mubr.f32.mxu0 %v1196
        %1370 = vmatmul.mubr.f32.gmra.mrb[0].mxu0 %v1195
        %v1371 = vpop.f32.mrb[0].mxu0
        %v1372 = vadd.f32 %v1298, %v1371
        %v1373 = vpop.f32.mrb[0].mxu0
        %v1374 = vadd.f32 %v1302, %v1373
        %1375 = vmatprep.mubr.f32.mxu0 %v1198
        %1376 = vmatmul.mubr.f32.gmra.mrb[0].mxu0 %v1197
        %v1377 = vpop.f32.mrb[0].mxu0
        %v1378 = vadd.f32 %v1298, %v1377
        %v1379 = vpop.f32.mrb[0].mxu0
        %v1380 = vadd.f32 %v1302, %v1379
        %1381 = vmatprep.mubr.f32.mxu0 %v1200
        %1382 = vmatmul.mubr.f32.gmra.mrb[0].mxu0 %v1199
        %v1383 = vpop.f32.mrb[0].mxu0
        %v1384 = vadd.f32 %v1298, %v1383
        %v1385 = vpop.f32.mrb[0].mxu0
        %v1386 = vadd.f32 %v1302, %v1385
        %1387 = vmatprep.mubr.f32.mxu0 %v1202
        %1388 = vmatmul.mubr.f32.gmra.mrb[0].mxu0 %v1201
        %v1389 = vpop.f32.mrb[0].mxu0
        %v1390 = vadd.f32 %v1298, %v1389
        %v1391 = vpop.f32.mrb[0].mxu0
        %v1392 = vadd.f32 %v1302, %v1391
        %1393 = vmatprep.mubr.f32.mxu0 %v1204
        %1394 = vmatmul.mubr.f32.gmra.mrb[0].mxu0 %v1203
        %v1395 = vpop.f32.mrb[0].mxu0
        %v1396 = vadd.f32 %v1298, %v1395
        %v1397 = vpop.f32.mrb[0].mxu0
        %v1398 = vadd.f32 %v1302, %v1397
        %1399 = vmatprep.mubr.f32.mxu0 %v1206
        %1400 = vmatmul.mubr.f32.gmra.mrb[0].mxu0 %v1205
        %v1401 = vpop.f32.mrb[0].mxu0
        %v1402 = vadd.f32 %v1298, %v1401
        %v1403 = vpop.f32.mrb[0].mxu0
        %v1404 = vadd.f32 %v1302, %v1403
        %1405 = vmatprep.mubr.f32.mxu0 %v1208
        %1406 = vmatmul.mubr.f32.gmra.mrb[0].mxu0 %v1207
        %v1407 = vpop.f32.mrb[0].mxu0
        %v1408 = vadd.f32 %v1298, %v1407
        %v1409 = vpop.f32.mrb[0].mxu0
        %v1410 = vadd.f32 %v1302, %v1409
        %1411 = vmatprep.mubr.f32.mxu0 %v1210
        %1412 = vmatmul.mubr.f32.gmra.mrb[0].mxu0 %v1209
        %v1413 = vpop.f32.mrb[0].mxu0
        %v1414 = vadd.f32 %v1298, %v1413
        %v1415 = vpop.f32.mrb[0].mxu0
        %v1416 = vadd.f32 %v1302, %v1415
        %1417 = vmatprep.mubr.f32.mxu0 %v1212
        %1418 = vmatmul.mubr.f32.gmra.mrb[0].mxu0 %v1211
        %v1419 = vpop.f32.mrb[0].mxu0
        %v1420 = vadd.f32 %v1298, %v1419
        %v1421 = vpop.f32.mrb[0].mxu0
        %v1422 = vadd.f32 %v1302, %v1421
        %1423 = vmatprep.mubr.f32.mxu0 %v1214
        %1424 = vmatmul.mubr.f32.gmra.mrb[0].mxu0 %v1213
        %v1425 = vpop.f32.mrb[0].mxu0
        %v1426 = vadd.f32 %v1298, %v1425
        %v1427 = vpop.f32.mrb[0].mxu0
        %v1428 = vadd.f32 %v1302, %v1427
        %1429 = vmatprep.mubr.f32.mxu0 %v1216
        %1430 = vmatmul.mubr.f32.gmra.mrb[0].mxu0 %v1215
        %v1431 = vpop.f32.mrb[0].mxu0
        %v1432 = vadd.f32 %v1298, %v1431
        %v1433 = vpop.f32.mrb[0].mxu0
        %v1434 = vadd.f32 %v1302, %v1433
        %1435 = vmatprep.mubr.f32.mxu0 %v1218
        %1436 = vmatmul.mubr.f32.gmra.mrb[0].mxu0 %v1217
        %v1437 = vpop.f32.mrb[0].mxu0
        %v1438 = vadd.f32 %v1298, %v1437
        %v1439 = vpop.f32.mrb[0].mxu0
        %v1440 = vadd.f32 %v1302, %v1439
        %1441 = vmatprep.mubr.f32.mxu0 %v1220
        %1442 = vmatmul.mubr.f32.gmra.mrb[0].mxu0 %v1219
        %v1443 = vpop.f32.mrb[0].mxu0
        %v1444 = vadd.f32 %v1298, %v1443
        %v1445 = vpop.f32.mrb[0].mxu0
        %v1446 = vadd.f32 %v1302, %v1445
        %1447 = vmatprep.mubr.f32.mxu0 %v1222
        %1448 = vmatmul.mubr.f32.gmra.mrb[0].mxu0 %v1221
        %v1449 = vpop.f32.mrb[0].mxu0
        %v1450 = vadd.f32 %v1298, %v1449
        %v1451 = vpop.f32.mrb[0].mxu0
        %v1452 = vadd.f32 %v1302, %v1451
        %1453 = vmatprep.mubr.f32.mxu0 %v1224
        %1454 = vmatmul.mubr.f32.gmra.mrb[0].mxu0 %v1223
        %v1455 = vpop.f32.mrb[0].mxu0
        %v1456 = vadd.f32 %v1298, %v1455
        %v1457 = vpop.f32.mrb[0].mxu0
        %v1458 = vadd.f32 %v1302, %v1457
        %1459 = vmatprep.mubr.f32.mxu0 %v1226
        %1460 = vmatmul.mubr.f32.gmra.mrb[0].mxu0 %v1225
        %v1461 = vpop.f32.mrb[0].mxu0
        %v1462 = vadd.f32 %v1298, %v1461
        %v1463 = vpop.f32.mrb[0].mxu0
        %v1464 = vadd.f32 %v1302, %v1463
        %1465 = vdwg.mxu0
        %v1466 = vmax.f32 %v1372, 0.0
        %v1467 = vmax.f32 %v1374, 0.0
        %v1468 = vmax.f32 %v1378, 0.0
        %v1469 = vmax.f32 %v1380, 0.0
        %v1470 = vmax.f32 %v1384, 0.0
        %v1471 = vmax.f32 %v1386, 0.0
        %v1472 = vmax.f32 %v1390, 0.0
        %v1473 = vmax.f32 %v1392, 0.0
        %v1474 = vmax.f32 %v1396, 0.0
        %v1475 = vmax.f32 %v1398, 0.0
        %v1476 = vmax.f32 %v1402, 0.0
        %v1477 = vmax.f32 %v1404, 0.0
        %v1478 = vmax.f32 %v1408, 0.0
        %v1479 = vmax.f32 %v1410, 0.0
        %v1480 = vmax.f32 %v1414, 0.0
        %v1481 = vmax.f32 %v1416, 0.0
        %v1482 = vmax.f32 %v1420, 0.0
        %v1483 = vmax.f32 %v1422, 0.0
        %v1484 = vmax.f32 %v1426, 0.0
        %v1485 = vmax.f32 %v1428, 0.0
        %v1486 = vmax.f32 %v1432, 0.0
        %v1487 = vmax.f32 %v1434, 0.0
        %v1488 = vmax.f32 %v1438, 0.0
        %v1489 = vmax.f32 %v1440, 0.0
        %v1490 = vmax.f32 %v1444, 0.0
        %v1491 = vmax.f32 %v1446, 0.0
        %v1492 = vmax.f32 %v1450, 0.0
        %v1493 = vmax.f32 %v1452, 0.0
        %v1494 = vmax.f32 %v1456, 0.0
        %v1495 = vmax.f32 %v1458, 0.0
        %v1496 = vmax.f32 %v1462, 0.0
        %v1497 = vmax.f32 %v1464, 0.0
        %s1498 = scalar_lea.vmem [#allocation6], 1024
        %v1499 = vld [vmem:[%s1498] sm:$0xff]
        %v1500 = vld [vmem:[%s1498 + $0x8] sm:$0xff]
        %v1501 = vld [vmem:[%s1498 + $0x10] sm:$0xff]
        %v1502 = vld [vmem:[%s1498 + $0x18] sm:$0xff]
        %v1503 = vld [vmem:[%s1498 + $0x20] sm:$0xff]
        %v1504 = vld [vmem:[%s1498 + $0x28] sm:$0xff]
        %v1505 = vld [vmem:[%s1498 + $0x30] sm:$0xff]
        %v1506 = vld [vmem:[%s1498 + $0x38] sm:$0xff]
        %v1507 = vld [vmem:[%s1498 + $0x40] sm:$0xff]
        %v1508 = vld [vmem:[%s1498 + $0x48] sm:$0xff]
        %v1509 = vld [vmem:[%s1498 + $0x50] sm:$0xff]
        %v1510 = vld [vmem:[%s1498 + $0x58] sm:$0xff]
        %v1511 = vld [vmem:[%s1498 + $0x60] sm:$0xff]
        %v1512 = vld [vmem:[%s1498 + $0x68] sm:$0xff]
        %v1513 = vld [vmem:[%s1498 + $0x70] sm:$0xff]
        %v1514 = vld [vmem:[%s1498 + $0x78] sm:$0xff]
        %v1515 = vld [vmem:[%s1498 + $0x80] sm:$0xff]
        %v1516 = vld [vmem:[%s1498 + $0x88] sm:$0xff]
        %v1517 = vld [vmem:[%s1498 + $0x90] sm:$0xff]
        %v1518 = vld [vmem:[%s1498 + $0x98] sm:$0xff]
        %v1519 = vld [vmem:[%s1498 + $0xa0] sm:$0xff]
        %v1520 = vld [vmem:[%s1498 + $0xa8] sm:$0xff]
        %v1521 = vld [vmem:[%s1498 + $0xb0] sm:$0xff]
        %v1522 = vld [vmem:[%s1498 + $0xb8] sm:$0xff]
        %v1523 = vld [vmem:[%s1498 + $0xc0] sm:$0xff]
        %v1524 = vld [vmem:[%s1498 + $0xc8] sm:$0xff]
        %v1525 = vld [vmem:[%s1498 + $0xd0] sm:$0xff]
        %v1526 = vld [vmem:[%s1498 + $0xd8] sm:$0xff]
        %v1527 = vld [vmem:[%s1498 + $0xe0] sm:$0xff]
        %v1528 = vld [vmem:[%s1498 + $0xe8] sm:$0xff]
        %v1529 = vld [vmem:[%s1498 + $0xf0] sm:$0xff]
        %v1530 = vld [vmem:[%s1498 + $0xf8] sm:$0xff]
        %v1531 = vld [vmem:[%s1498 + $0x100] sm:$0xff]
        %v1532 = vld [vmem:[%s1498 + $0x108] sm:$0xff]
        %v1533 = vld [vmem:[%s1498 + $0x110] sm:$0xff]
        %v1534 = vld [vmem:[%s1498 + $0x118] sm:$0xff]
        %v1535 = vld [vmem:[%s1498 + $0x120] sm:$0xff]
        %v1536 = vld [vmem:[%s1498 + $0x128] sm:$0xff]
        %v1537 = vld [vmem:[%s1498 + $0x130] sm:$0xff]
        %v1538 = vld [vmem:[%s1498 + $0x138] sm:$0xff]
        %v1539 = vld [vmem:[%s1498 + $0x140] sm:$0xff]
        %v1540 = vld [vmem:[%s1498 + $0x148] sm:$0xff]
        %v1541 = vld [vmem:[%s1498 + $0x150] sm:$0xff]
        %v1542 = vld [vmem:[%s1498 + $0x158] sm:$0xff]
        %v1543 = vld [vmem:[%s1498 + $0x160] sm:$0xff]
        %v1544 = vld [vmem:[%s1498 + $0x168] sm:$0xff]
        %v1545 = vld [vmem:[%s1498 + $0x170] sm:$0xff]
        %v1546 = vld [vmem:[%s1498 + $0x178] sm:$0xff]
        %v1547 = vld [vmem:[%s1498 + $0x180] sm:$0xff]
        %v1548 = vld [vmem:[%s1498 + $0x188] sm:$0xff]
        %v1549 = vld [vmem:[%s1498 + $0x190] sm:$0xff]
        %v1550 = vld [vmem:[%s1498 + $0x198] sm:$0xff]
        %v1551 = vld [vmem:[%s1498 + $0x1a0] sm:$0xff]
        %v1552 = vld [vmem:[%s1498 + $0x1a8] sm:$0xff]
        %v1553 = vld [vmem:[%s1498 + $0x1b0] sm:$0xff]
        %v1554 = vld [vmem:[%s1498 + $0x1b8] sm:$0xff]
        %v1555 = vld [vmem:[%s1498 + $0x1c0] sm:$0xff]
        %v1556 = vld [vmem:[%s1498 + $0x1c8] sm:$0xff]
        %v1557 = vld [vmem:[%s1498 + $0x1d0] sm:$0xff]
        %v1558 = vld [vmem:[%s1498 + $0x1d8] sm:$0xff]
        %v1559 = vld [vmem:[%s1498 + $0x1e0] sm:$0xff]
        %v1560 = vld [vmem:[%s1498 + $0x1e8] sm:$0xff]
        %v1561 = vld [vmem:[%s1498 + $0x1f0] sm:$0xff]
        %v1562 = vld [vmem:[%s1498 + $0x1f8] sm:$0xff]
        %s1563 = scalar_lea.vmem [#allocation7], 4
        %v1564 = vld [vmem:[%s1563] sm:$0x3]
        %v1566 = vlaneseq
        %v1567 = vshrl.u32 %v1566, 7
        %v1568 = vsub.s32 0, %v1567
        %v1569 = vrot.slane %v1564, %v1568
        %v1570 = vlaneseq
        %v1571 = vshrl.u32 %v1570, 7
        %v1572 = vsub.s32 1, %v1571
        %v1573 = vrot.slane %v1564, %v1572
        %1576 = vmatprep.subr.mxu0 %v1500
        %1577 = vmatpush1.msra.mxu0 %v1499
        %1578 = vmatprep.subr.mxu0 %v1502
        %1579 = vmatpush1.msra.mxu0 %v1501
        %1580 = vmatprep.subr.mxu0 %v1504
        %1581 = vmatpush1.msra.mxu0 %v1503
        %1582 = vmatprep.subr.mxu0 %v1506
        %1583 = vmatpush1.msra.mxu0 %v1505
        %1584 = vmatprep.subr.mxu0 %v1508
        %1585 = vmatpush1.msra.mxu0 %v1507
        %1586 = vmatprep.subr.mxu0 %v1510
        %1587 = vmatpush1.msra.mxu0 %v1509
        %1588 = vmatprep.subr.mxu0 %v1512
        %1589 = vmatpush1.msra.mxu0 %v1511
        %1590 = vmatprep.subr.mxu0 %v1514
        %1591 = vmatpush1.msra.mxu0 %v1513
        %1592 = vmatprep.subr.mxu0 %v1516
        %1593 = vmatpush1.msra.mxu0 %v1515
        %1594 = vmatprep.subr.mxu0 %v1518
        %1595 = vmatpush1.msra.mxu0 %v1517
        %1596 = vmatprep.subr.mxu0 %v1520
        %1597 = vmatpush1.msra.mxu0 %v1519
        %1598 = vmatprep.subr.mxu0 %v1522
        %1599 = vmatpush1.msra.mxu0 %v1521
        %1600 = vmatprep.subr.mxu0 %v1524
        %1601 = vmatpush1.msra.mxu0 %v1523
        %1602 = vmatprep.subr.mxu0 %v1526
        %1603 = vmatpush1.msra.mxu0 %v1525
        %1604 = vmatprep.subr.mxu0 %v1528
        %1605 = vmatpush1.msra.mxu0 %v1527
        %1606 = vmatprep.subr.mxu0 %v1530
        %1607 = vmatpush1.msra.mxu0 %v1529
        %1608 = vmatprep.subr.mxu0 %v1532
        %1609 = vmatpush1.msra.mxu0 %v1531
        %1610 = vmatprep.subr.mxu0 %v1534
        %1611 = vmatpush1.msra.mxu0 %v1533
        %1612 = vmatprep.subr.mxu0 %v1536
        %1613 = vmatpush1.msra.mxu0 %v1535
        %1614 = vmatprep.subr.mxu0 %v1538
        %1615 = vmatpush1.msra.mxu0 %v1537
        %1616 = vmatprep.subr.mxu0 %v1540
        %1617 = vmatpush1.msra.mxu0 %v1539
        %1618 = vmatprep.subr.mxu0 %v1542
        %1619 = vmatpush1.msra.mxu0 %v1541
        %1620 = vmatprep.subr.mxu0 %v1544
        %1621 = vmatpush1.msra.mxu0 %v1543
        %1622 = vmatprep.subr.mxu0 %v1546
        %1623 = vmatpush1.msra.mxu0 %v1545
        %1624 = vmatprep.subr.mxu0 %v1548
        %1625 = vmatpush1.msra.mxu0 %v1547
        %1626 = vmatprep.subr.mxu0 %v1550
        %1627 = vmatpush1.msra.mxu0 %v1549
        %1628 = vmatprep.subr.mxu0 %v1552
        %1629 = vmatpush1.msra.mxu0 %v1551
        %1630 = vmatprep.subr.mxu0 %v1554
        %1631 = vmatpush1.msra.mxu0 %v1553
        %1632 = vmatprep.subr.mxu0 %v1556
        %1633 = vmatpush1.msra.mxu0 %v1555
        %1634 = vmatprep.subr.mxu0 %v1558
        %1635 = vmatpush1.msra.mxu0 %v1557
        %1636 = vmatprep.subr.mxu0 %v1560
        %1637 = vmatpush1.msra.mxu0 %v1559
        %1638 = vmatprep.subr.mxu0 %v1562
        %1639 = vmatpush1.msra.mxu0 %v1561
        %1640 = vmatprep.mubr.f32.mxu0 %v1467
        %1641 = vmatmul.mubr.f32.gmra.mrb[0].mxu0 %v1466
        %v1642 = vpop.f32.mrb[0].mxu0
        %v1643 = vadd.f32 %v1569, %v1642
        %v1644 = vpop.f32.mrb[0].mxu0
        %v1645 = vadd.f32 %v1573, %v1644
        %1646 = vmatprep.mubr.f32.mxu0 %v1469
        %1647 = vmatmul.mubr.f32.gmra.mrb[0].mxu0 %v1468
        %v1648 = vpop.f32.mrb[0].mxu0
        %v1649 = vadd.f32 %v1569, %v1648
        %v1650 = vpop.f32.mrb[0].mxu0
        %v1651 = vadd.f32 %v1573, %v1650
        %1652 = vmatprep.mubr.f32.mxu0 %v1471
        %1653 = vmatmul.mubr.f32.gmra.mrb[0].mxu0 %v1470
        %v1654 = vpop.f32.mrb[0].mxu0
        %v1655 = vadd.f32 %v1569, %v1654
        %v1656 = vpop.f32.mrb[0].mxu0
        %v1657 = vadd.f32 %v1573, %v1656
        %1658 = vmatprep.mubr.f32.mxu0 %v1473
        %1659 = vmatmul.mubr.f32.gmra.mrb[0].mxu0 %v1472
        %v1660 = vpop.f32.mrb[0].mxu0
        %v1661 = vadd.f32 %v1569, %v1660
        %v1662 = vpop.f32.mrb[0].mxu0
        %v1663 = vadd.f32 %v1573, %v1662
        %1664 = vmatprep.mubr.f32.mxu0 %v1475
        %1665 = vmatmul.mubr.f32.gmra.mrb[0].mxu0 %v1474
        %v1666 = vpop.f32.mrb[0].mxu0
        %v1667 = vadd.f32 %v1569, %v1666
        %v1668 = vpop.f32.mrb[0].mxu0
        %v1669 = vadd.f32 %v1573, %v1668
        %1670 = vmatprep.mubr.f32.mxu0 %v1477
        %1671 = vmatmul.mubr.f32.gmra.mrb[0].mxu0 %v1476
        %v1672 = vpop.f32.mrb[0].mxu0
        %v1673 = vadd.f32 %v1569, %v1672
        %v1674 = vpop.f32.mrb[0].mxu0
        %v1675 = vadd.f32 %v1573, %v1674
        %1676 = vmatprep.mubr.f32.mxu0 %v1479
        %1677 = vmatmul.mubr.f32.gmra.mrb[0].mxu0 %v1478
        %v1678 = vpop.f32.mrb[0].mxu0
        %v1679 = vadd.f32 %v1569, %v1678
        %v1680 = vpop.f32.mrb[0].mxu0
        %v1681 = vadd.f32 %v1573, %v1680
        %1682 = vmatprep.mubr.f32.mxu0 %v1481
        %1683 = vmatmul.mubr.f32.gmra.mrb[0].mxu0 %v1480
        %v1684 = vpop.f32.mrb[0].mxu0
        %v1685 = vadd.f32 %v1569, %v1684
        %v1686 = vpop.f32.mrb[0].mxu0
        %v1687 = vadd.f32 %v1573, %v1686
        %1688 = vmatprep.mubr.f32.mxu0 %v1483
        %1689 = vmatmul.mubr.f32.gmra.mrb[0].mxu0 %v1482
        %v1690 = vpop.f32.mrb[0].mxu0
        %v1691 = vadd.f32 %v1569, %v1690
        %v1692 = vpop.f32.mrb[0].mxu0
        %v1693 = vadd.f32 %v1573, %v1692
        %1694 = vmatprep.mubr.f32.mxu0 %v1485
        %1695 = vmatmul.mubr.f32.gmra.mrb[0].mxu0 %v1484
        %v1696 = vpop.f32.mrb[0].mxu0
        %v1697 = vadd.f32 %v1569, %v1696
        %v1698 = vpop.f32.mrb[0].mxu0
        %v1699 = vadd.f32 %v1573, %v1698
        %1700 = vmatprep.mubr.f32.mxu0 %v1487
        %1701 = vmatmul.mubr.f32.gmra.mrb[0].mxu0 %v1486
        %v1702 = vpop.f32.mrb[0].mxu0
        %v1703 = vadd.f32 %v1569, %v1702
        %v1704 = vpop.f32.mrb[0].mxu0
        %v1705 = vadd.f32 %v1573, %v1704
        %1706 = vmatprep.mubr.f32.mxu0 %v1489
        %1707 = vmatmul.mubr.f32.gmra.mrb[0].mxu0 %v1488
        %v1708 = vpop.f32.mrb[0].mxu0
        %v1709 = vadd.f32 %v1569, %v1708
        %v1710 = vpop.f32.mrb[0].mxu0
        %v1711 = vadd.f32 %v1573, %v1710
        %1712 = vmatprep.mubr.f32.mxu0 %v1491
        %1713 = vmatmul.mubr.f32.gmra.mrb[0].mxu0 %v1490
        %v1714 = vpop.f32.mrb[0].mxu0
        %v1715 = vadd.f32 %v1569, %v1714
        %v1716 = vpop.f32.mrb[0].mxu0
        %v1717 = vadd.f32 %v1573, %v1716
        %1718 = vmatprep.mubr.f32.mxu0 %v1493
        %1719 = vmatmul.mubr.f32.gmra.mrb[0].mxu0 %v1492
        %v1720 = vpop.f32.mrb[0].mxu0
        %v1721 = vadd.f32 %v1569, %v1720
        %v1722 = vpop.f32.mrb[0].mxu0
        %v1723 = vadd.f32 %v1573, %v1722
        %1724 = vmatprep.mubr.f32.mxu0 %v1495
        %1725 = vmatmul.mubr.f32.gmra.mrb[0].mxu0 %v1494
        %v1726 = vpop.f32.mrb[0].mxu0
        %v1727 = vadd.f32 %v1569, %v1726
        %v1728 = vpop.f32.mrb[0].mxu0
        %v1729 = vadd.f32 %v1573, %v1728
        %1730 = vmatprep.mubr.f32.mxu0 %v1497
        %1731 = vmatmul.mubr.f32.gmra.mrb[0].mxu0 %v1496
        %v1732 = vpop.f32.mrb[0].mxu0
        %v1733 = vadd.f32 %v1569, %v1732
        %v1734 = vpop.f32.mrb[0].mxu0
        %v1735 = vadd.f32 %v1573, %v1734
        %1736 = vdwg.mxu0
        %v1737 = vmax.f32 %v1643, 0.0
        %v1738 = vmax.f32 %v1645, 0.0
        %v1739 = vmax.f32 %v1649, 0.0
        %v1740 = vmax.f32 %v1651, 0.0
        %v1741 = vmax.f32 %v1655, 0.0
        %v1742 = vmax.f32 %v1657, 0.0
        %v1743 = vmax.f32 %v1661, 0.0
        %v1744 = vmax.f32 %v1663, 0.0
        %v1745 = vmax.f32 %v1667, 0.0
        %v1746 = vmax.f32 %v1669, 0.0
        %v1747 = vmax.f32 %v1673, 0.0
        %v1748 = vmax.f32 %v1675, 0.0
        %v1749 = vmax.f32 %v1679, 0.0
        %v1750 = vmax.f32 %v1681, 0.0
        %v1751 = vmax.f32 %v1685, 0.0
        %v1752 = vmax.f32 %v1687, 0.0
        %v1753 = vmax.f32 %v1691, 0.0
        %v1754 = vmax.f32 %v1693, 0.0
        %v1755 = vmax.f32 %v1697, 0.0
        %v1756 = vmax.f32 %v1699, 0.0
        %v1757 = vmax.f32 %v1703, 0.0
        %v1758 = vmax.f32 %v1705, 0.0
        %v1759 = vmax.f32 %v1709, 0.0
        %v1760 = vmax.f32 %v1711, 0.0
        %v1761 = vmax.f32 %v1715, 0.0
        %v1762 = vmax.f32 %v1717, 0.0
        %v1763 = vmax.f32 %v1721, 0.0
        %v1764 = vmax.f32 %v1723, 0.0
        %v1765 = vmax.f32 %v1727, 0.0
        %v1766 = vmax.f32 %v1729, 0.0
        %v1767 = vmax.f32 %v1733, 0.0
        %v1768 = vmax.f32 %v1735, 0.0
        %s1769 = scalar_lea.vmem [#allocation6], 1536
        %v1770 = vld [vmem:[%s1769] sm:$0xff]
        %v1771 = vld [vmem:[%s1769 + $0x8] sm:$0xff]
        %v1772 = vld [vmem:[%s1769 + $0x10] sm:$0xff]
        %v1773 = vld [vmem:[%s1769 + $0x18] sm:$0xff]
        %v1774 = vld [vmem:[%s1769 + $0x20] sm:$0xff]
        %v1775 = vld [vmem:[%s1769 + $0x28] sm:$0xff]
        %v1776 = vld [vmem:[%s1769 + $0x30] sm:$0xff]
        %v1777 = vld [vmem:[%s1769 + $0x38] sm:$0xff]
        %v1778 = vld [vmem:[%s1769 + $0x40] sm:$0xff]
        %v1779 = vld [vmem:[%s1769 + $0x48] sm:$0xff]
        %v1780 = vld [vmem:[%s1769 + $0x50] sm:$0xff]
        %v1781 = vld [vmem:[%s1769 + $0x58] sm:$0xff]
        %v1782 = vld [vmem:[%s1769 + $0x60] sm:$0xff]
        %v1783 = vld [vmem:[%s1769 + $0x68] sm:$0xff]
        %v1784 = vld [vmem:[%s1769 + $0x70] sm:$0xff]
        %v1785 = vld [vmem:[%s1769 + $0x78] sm:$0xff]
        %v1786 = vld [vmem:[%s1769 + $0x80] sm:$0xff]
        %v1787 = vld [vmem:[%s1769 + $0x88] sm:$0xff]
        %v1788 = vld [vmem:[%s1769 + $0x90] sm:$0xff]
        %v1789 = vld [vmem:[%s1769 + $0x98] sm:$0xff]
        %v1790 = vld [vmem:[%s1769 + $0xa0] sm:$0xff]
        %v1791 = vld [vmem:[%s1769 + $0xa8] sm:$0xff]
        %v1792 = vld [vmem:[%s1769 + $0xb0] sm:$0xff]
        %v1793 = vld [vmem:[%s1769 + $0xb8] sm:$0xff]
        %v1794 = vld [vmem:[%s1769 + $0xc0] sm:$0xff]
        %v1795 = vld [vmem:[%s1769 + $0xc8] sm:$0xff]
        %v1796 = vld [vmem:[%s1769 + $0xd0] sm:$0xff]
        %v1797 = vld [vmem:[%s1769 + $0xd8] sm:$0xff]
        %v1798 = vld [vmem:[%s1769 + $0xe0] sm:$0xff]
        %v1799 = vld [vmem:[%s1769 + $0xe8] sm:$0xff]
        %v1800 = vld [vmem:[%s1769 + $0xf0] sm:$0xff]
        %v1801 = vld [vmem:[%s1769 + $0xf8] sm:$0xff]
        %v1802 = vld [vmem:[%s1769 + $0x100] sm:$0xff]
        %v1803 = vld [vmem:[%s1769 + $0x108] sm:$0xff]
        %v1804 = vld [vmem:[%s1769 + $0x110] sm:$0xff]
        %v1805 = vld [vmem:[%s1769 + $0x118] sm:$0xff]
        %v1806 = vld [vmem:[%s1769 + $0x120] sm:$0xff]
        %v1807 = vld [vmem:[%s1769 + $0x128] sm:$0xff]
        %v1808 = vld [vmem:[%s1769 + $0x130] sm:$0xff]
        %v1809 = vld [vmem:[%s1769 + $0x138] sm:$0xff]
        %v1810 = vld [vmem:[%s1769 + $0x140] sm:$0xff]
        %v1811 = vld [vmem:[%s1769 + $0x148] sm:$0xff]
        %v1812 = vld [vmem:[%s1769 + $0x150] sm:$0xff]
        %v1813 = vld [vmem:[%s1769 + $0x158] sm:$0xff]
        %v1814 = vld [vmem:[%s1769 + $0x160] sm:$0xff]
        %v1815 = vld [vmem:[%s1769 + $0x168] sm:$0xff]
        %v1816 = vld [vmem:[%s1769 + $0x170] sm:$0xff]
        %v1817 = vld [vmem:[%s1769 + $0x178] sm:$0xff]
        %v1818 = vld [vmem:[%s1769 + $0x180] sm:$0xff]
        %v1819 = vld [vmem:[%s1769 + $0x188] sm:$0xff]
        %v1820 = vld [vmem:[%s1769 + $0x190] sm:$0xff]
        %v1821 = vld [vmem:[%s1769 + $0x198] sm:$0xff]
        %v1822 = vld [vmem:[%s1769 + $0x1a0] sm:$0xff]
        %v1823 = vld [vmem:[%s1769 + $0x1a8] sm:$0xff]
        %v1824 = vld [vmem:[%s1769 + $0x1b0] sm:$0xff]
        %v1825 = vld [vmem:[%s1769 + $0x1b8] sm:$0xff]
        %v1826 = vld [vmem:[%s1769 + $0x1c0] sm:$0xff]
        %v1827 = vld [vmem:[%s1769 + $0x1c8] sm:$0xff]
        %v1828 = vld [vmem:[%s1769 + $0x1d0] sm:$0xff]
        %v1829 = vld [vmem:[%s1769 + $0x1d8] sm:$0xff]
        %v1830 = vld [vmem:[%s1769 + $0x1e0] sm:$0xff]
        %v1831 = vld [vmem:[%s1769 + $0x1e8] sm:$0xff]
        %v1832 = vld [vmem:[%s1769 + $0x1f0] sm:$0xff]
        %v1833 = vld [vmem:[%s1769 + $0x1f8] sm:$0xff]
        %s1834 = scalar_lea.vmem [#allocation7], 6
        %v1835 = vld [vmem:[%s1834] sm:$0x3]
        %v1837 = vlaneseq
        %v1838 = vshrl.u32 %v1837, 7
        %v1839 = vsub.s32 0, %v1838
        %v1840 = vrot.slane %v1835, %v1839
        %v1841 = vlaneseq
        %v1842 = vshrl.u32 %v1841, 7
        %v1843 = vsub.s32 1, %v1842
        %v1844 = vrot.slane %v1835, %v1843
        %1847 = vmatprep.subr.mxu0 %v1771
        %1848 = vmatpush1.msra.mxu0 %v1770
        %1849 = vmatprep.subr.mxu0 %v1773
        %1850 = vmatpush1.msra.mxu0 %v1772
        %1851 = vmatprep.subr.mxu0 %v1775
        %1852 = vmatpush1.msra.mxu0 %v1774
        %1853 = vmatprep.subr.mxu0 %v1777
        %1854 = vmatpush1.msra.mxu0 %v1776
        %1855 = vmatprep.subr.mxu0 %v1779
        %1856 = vmatpush1.msra.mxu0 %v1778
        %1857 = vmatprep.subr.mxu0 %v1781
        %1858 = vmatpush1.msra.mxu0 %v1780
        %1859 = vmatprep.subr.mxu0 %v1783
        %1860 = vmatpush1.msra.mxu0 %v1782
        %1861 = vmatprep.subr.mxu0 %v1785
        %1862 = vmatpush1.msra.mxu0 %v1784
        %1863 = vmatprep.subr.mxu0 %v1787
        %1864 = vmatpush1.msra.mxu0 %v1786
        %1865 = vmatprep.subr.mxu0 %v1789
        %1866 = vmatpush1.msra.mxu0 %v1788
        %1867 = vmatprep.subr.mxu0 %v1791
        %1868 = vmatpush1.msra.mxu0 %v1790
        %1869 = vmatprep.subr.mxu0 %v1793
        %1870 = vmatpush1.msra.mxu0 %v1792
        %1871 = vmatprep.subr.mxu0 %v1795
        %1872 = vmatpush1.msra.mxu0 %v1794
        %1873 = vmatprep.subr.mxu0 %v1797
        %1874 = vmatpush1.msra.mxu0 %v1796
        %1875 = vmatprep.subr.mxu0 %v1799
        %1876 = vmatpush1.msra.mxu0 %v1798
        %1877 = vmatprep.subr.mxu0 %v1801
        %1878 = vmatpush1.msra.mxu0 %v1800
        %1879 = vmatprep.subr.mxu0 %v1803
        %1880 = vmatpush1.msra.mxu0 %v1802
        %1881 = vmatprep.subr.mxu0 %v1805
        %1882 = vmatpush1.msra.mxu0 %v1804
        %1883 = vmatprep.subr.mxu0 %v1807
        %1884 = vmatpush1.msra.mxu0 %v1806
        %1885 = vmatprep.subr.mxu0 %v1809
        %1886 = vmatpush1.msra.mxu0 %v1808
        %1887 = vmatprep.subr.mxu0 %v1811
        %1888 = vmatpush1.msra.mxu0 %v1810
        %1889 = vmatprep.subr.mxu0 %v1813
        %1890 = vmatpush1.msra.mxu0 %v1812
        %1891 = vmatprep.subr.mxu0 %v1815
        %1892 = vmatpush1.msra.mxu0 %v1814
        %1893 = vmatprep.subr.mxu0 %v1817
        %1894 = vmatpush1.msra.mxu0 %v1816
        %1895 = vmatprep.subr.mxu0 %v1819
        %1896 = vmatpush1.msra.mxu0 %v1818
        %1897 = vmatprep.subr.mxu0 %v1821
        %1898 = vmatpush1.msra.mxu0 %v1820
        %1899 = vmatprep.subr.mxu0 %v1823
        %1900 = vmatpush1.msra.mxu0 %v1822
        %1901 = vmatprep.subr.mxu0 %v1825
        %1902 = vmatpush1.msra.mxu0 %v1824
        %1903 = vmatprep.subr.mxu0 %v1827
        %1904 = vmatpush1.msra.mxu0 %v1826
        %1905 = vmatprep.subr.mxu0 %v1829
        %1906 = vmatpush1.msra.mxu0 %v1828
        %1907 = vmatprep.subr.mxu0 %v1831
        %1908 = vmatpush1.msra.mxu0 %v1830
        %1909 = vmatprep.subr.mxu0 %v1833
        %1910 = vmatpush1.msra.mxu0 %v1832
        %1911 = vmatprep.mubr.f32.mxu0 %v1738
        %1912 = vmatmul.mubr.f32.gmra.mrb[0].mxu0 %v1737
        %v1913 = vpop.f32.mrb[0].mxu0
        %v1914 = vadd.f32 %v1840, %v1913
        %v1915 = vpop.f32.mrb[0].mxu0
        %v1916 = vadd.f32 %v1844, %v1915
        %1917 = vmatprep.mubr.f32.mxu0 %v1740
        %1918 = vmatmul.mubr.f32.gmra.mrb[0].mxu0 %v1739
        %v1919 = vpop.f32.mrb[0].mxu0
        %v1920 = vadd.f32 %v1840, %v1919
        %v1921 = vpop.f32.mrb[0].mxu0
        %v1922 = vadd.f32 %v1844, %v1921
        %1923 = vmatprep.mubr.f32.mxu0 %v1742
        %1924 = vmatmul.mubr.f32.gmra.mrb[0].mxu0 %v1741
        %v1925 = vpop.f32.mrb[0].mxu0
        %v1926 = vadd.f32 %v1840, %v1925
        %v1927 = vpop.f32.mrb[0].mxu0
        %v1928 = vadd.f32 %v1844, %v1927
        %1929 = vmatprep.mubr.f32.mxu0 %v1744
        %1930 = vmatmul.mubr.f32.gmra.mrb[0].mxu0 %v1743
        %v1931 = vpop.f32.mrb[0].mxu0
        %v1932 = vadd.f32 %v1840, %v1931
        %v1933 = vpop.f32.mrb[0].mxu0
        %v1934 = vadd.f32 %v1844, %v1933
        %1935 = vmatprep.mubr.f32.mxu0 %v1746
        %1936 = vmatmul.mubr.f32.gmra.mrb[0].mxu0 %v1745
        %v1937 = vpop.f32.mrb[0].mxu0
        %v1938 = vadd.f32 %v1840, %v1937
        %v1939 = vpop.f32.mrb[0].mxu0
        %v1940 = vadd.f32 %v1844, %v1939
        %1941 = vmatprep.mubr.f32.mxu0 %v1748
        %1942 = vmatmul.mubr.f32.gmra.mrb[0].mxu0 %v1747
        %v1943 = vpop.f32.mrb[0].mxu0
        %v1944 = vadd.f32 %v1840, %v1943
        %v1945 = vpop.f32.mrb[0].mxu0
        %v1946 = vadd.f32 %v1844, %v1945
        %1947 = vmatprep.mubr.f32.mxu0 %v1750
        %1948 = vmatmul.mubr.f32.gmra.mrb[0].mxu0 %v1749
        %v1949 = vpop.f32.mrb[0].mxu0
        %v1950 = vadd.f32 %v1840, %v1949
        %v1951 = vpop.f32.mrb[0].mxu0
        %v1952 = vadd.f32 %v1844, %v1951
        %1953 = vmatprep.mubr.f32.mxu0 %v1752
        %1954 = vmatmul.mubr.f32.gmra.mrb[0].mxu0 %v1751
        %v1955 = vpop.f32.mrb[0].mxu0
        %v1956 = vadd.f32 %v1840, %v1955
        %v1957 = vpop.f32.mrb[0].mxu0
        %v1958 = vadd.f32 %v1844, %v1957
        %1959 = vmatprep.mubr.f32.mxu0 %v1754
        %1960 = vmatmul.mubr.f32.gmra.mrb[0].mxu0 %v1753
        %v1961 = vpop.f32.mrb[0].mxu0
        %v1962 = vadd.f32 %v1840, %v1961
        %v1963 = vpop.f32.mrb[0].mxu0
        %v1964 = vadd.f32 %v1844, %v1963
        %1965 = vmatprep.mubr.f32.mxu0 %v1756
        %1966 = vmatmul.mubr.f32.gmra.mrb[0].mxu0 %v1755
        %v1967 = vpop.f32.mrb[0].mxu0
        %v1968 = vadd.f32 %v1840, %v1967
        %v1969 = vpop.f32.mrb[0].mxu0
        %v1970 = vadd.f32 %v1844, %v1969
        %1971 = vmatprep.mubr.f32.mxu0 %v1758
        %1972 = vmatmul.mubr.f32.gmra.mrb[0].mxu0 %v1757
        %v1973 = vpop.f32.mrb[0].mxu0
        %v1974 = vadd.f32 %v1840, %v1973
        %v1975 = vpop.f32.mrb[0].mxu0
        %v1976 = vadd.f32 %v1844, %v1975
        %1977 = vmatprep.mubr.f32.mxu0 %v1760
        %1978 = vmatmul.mubr.f32.gmra.mrb[0].mxu0 %v1759
        %v1979 = vpop.f32.mrb[0].mxu0
        %v1980 = vadd.f32 %v1840, %v1979
        %v1981 = vpop.f32.mrb[0].mxu0
        %v1982 = vadd.f32 %v1844, %v1981
        %1983 = vmatprep.mubr.f32.mxu0 %v1762
        %1984 = vmatmul.mubr.f32.gmra.mrb[0].mxu0 %v1761
        %v1985 = vpop.f32.mrb[0].mxu0
        %v1986 = vadd.f32 %v1840, %v1985
        %v1987 = vpop.f32.mrb[0].mxu0
        %v1988 = vadd.f32 %v1844, %v1987
        %1989 = vmatprep.mubr.f32.mxu0 %v1764
        %1990 = vmatmul.mubr.f32.gmra.mrb[0].mxu0 %v1763
        %v1991 = vpop.f32.mrb[0].mxu0
        %v1992 = vadd.f32 %v1840, %v1991
        %v1993 = vpop.f32.mrb[0].mxu0
        %v1994 = vadd.f32 %v1844, %v1993
        %1995 = vmatprep.mubr.f32.mxu0 %v1766
        %1996 = vmatmul.mubr.f32.gmra.mrb[0].mxu0 %v1765
        %v1997 = vpop.f32.mrb[0].mxu0
        %v1998 = vadd.f32 %v1840, %v1997
        %v1999 = vpop.f32.mrb[0].mxu0
        %v2000 = vadd.f32 %v1844, %v1999
        %2001 = vmatprep.mubr.f32.mxu0 %v1768
        %2002 = vmatmul.mubr.f32.gmra.mrb[0].mxu0 %v1767
        %v2003 = vpop.f32.mrb[0].mxu0
        %v2004 = vadd.f32 %v1840, %v2003
        %v2005 = vpop.f32.mrb[0].mxu0
        %v2006 = vadd.f32 %v1844, %v2005
        %2007 = vdwg.mxu0
        %v2008 = vmax.f32 %v1914, 0.0
        %v2009 = vmax.f32 %v1916, 0.0
        %v2010 = vmax.f32 %v1920, 0.0
        %v2011 = vmax.f32 %v1922, 0.0
        %v2012 = vmax.f32 %v1926, 0.0
        %v2013 = vmax.f32 %v1928, 0.0
        %v2014 = vmax.f32 %v1932, 0.0
        %v2015 = vmax.f32 %v1934, 0.0
        %v2016 = vmax.f32 %v1938, 0.0
        %v2017 = vmax.f32 %v1940, 0.0
        %v2018 = vmax.f32 %v1944, 0.0
        %v2019 = vmax.f32 %v1946, 0.0
        %v2020 = vmax.f32 %v1950, 0.0
        %v2021 = vmax.f32 %v1952, 0.0
        %v2022 = vmax.f32 %v1956, 0.0
        %v2023 = vmax.f32 %v1958, 0.0
        %v2024 = vmax.f32 %v1962, 0.0
        %v2025 = vmax.f32 %v1964, 0.0
        %v2026 = vmax.f32 %v1968, 0.0
        %v2027 = vmax.f32 %v1970, 0.0
        %v2028 = vmax.f32 %v1974, 0.0
        %v2029 = vmax.f32 %v1976, 0.0
        %v2030 = vmax.f32 %v1980, 0.0
        %v2031 = vmax.f32 %v1982, 0.0
        %v2032 = vmax.f32 %v1986, 0.0
        %v2033 = vmax.f32 %v1988, 0.0
        %v2034 = vmax.f32 %v1992, 0.0
        %v2035 = vmax.f32 %v1994, 0.0
        %v2036 = vmax.f32 %v1998, 0.0
        %v2037 = vmax.f32 %v2000, 0.0
        %v2038 = vmax.f32 %v2004, 0.0
        %v2039 = vmax.f32 %v2006, 0.0
        %s2040 = scalar_lea.vmem [#allocation6], 2048
        %v2041 = vld [vmem:[%s2040] sm:$0xff]
        %v2042 = vld [vmem:[%s2040 + $0x8] sm:$0xff]
        %v2043 = vld [vmem:[%s2040 + $0x10] sm:$0xff]
        %v2044 = vld [vmem:[%s2040 + $0x18] sm:$0xff]
        %v2045 = vld [vmem:[%s2040 + $0x20] sm:$0xff]
        %v2046 = vld [vmem:[%s2040 + $0x28] sm:$0xff]
        %v2047 = vld [vmem:[%s2040 + $0x30] sm:$0xff]
        %v2048 = vld [vmem:[%s2040 + $0x38] sm:$0xff]
        %v2049 = vld [vmem:[%s2040 + $0x40] sm:$0xff]
        %v2050 = vld [vmem:[%s2040 + $0x48] sm:$0xff]
        %v2051 = vld [vmem:[%s2040 + $0x50] sm:$0xff]
        %v2052 = vld [vmem:[%s2040 + $0x58] sm:$0xff]
        %v2053 = vld [vmem:[%s2040 + $0x60] sm:$0xff]
        %v2054 = vld [vmem:[%s2040 + $0x68] sm:$0xff]
        %v2055 = vld [vmem:[%s2040 + $0x70] sm:$0xff]
        %v2056 = vld [vmem:[%s2040 + $0x78] sm:$0xff]
        %v2057 = vld [vmem:[%s2040 + $0x80] sm:$0xff]
        %v2058 = vld [vmem:[%s2040 + $0x88] sm:$0xff]
        %v2059 = vld [vmem:[%s2040 + $0x90] sm:$0xff]
        %v2060 = vld [vmem:[%s2040 + $0x98] sm:$0xff]
        %v2061 = vld [vmem:[%s2040 + $0xa0] sm:$0xff]
        %v2062 = vld [vmem:[%s2040 + $0xa8] sm:$0xff]
        %v2063 = vld [vmem:[%s2040 + $0xb0] sm:$0xff]
        %v2064 = vld [vmem:[%s2040 + $0xb8] sm:$0xff]
        %v2065 = vld [vmem:[%s2040 + $0xc0] sm:$0xff]
        %v2066 = vld [vmem:[%s2040 + $0xc8] sm:$0xff]
        %v2067 = vld [vmem:[%s2040 + $0xd0] sm:$0xff]
        %v2068 = vld [vmem:[%s2040 + $0xd8] sm:$0xff]
        %v2069 = vld [vmem:[%s2040 + $0xe0] sm:$0xff]
        %v2070 = vld [vmem:[%s2040 + $0xe8] sm:$0xff]
        %v2071 = vld [vmem:[%s2040 + $0xf0] sm:$0xff]
        %v2072 = vld [vmem:[%s2040 + $0xf8] sm:$0xff]
        %v2073 = vld [vmem:[%s2040 + $0x100] sm:$0xff]
        %v2074 = vld [vmem:[%s2040 + $0x108] sm:$0xff]
        %v2075 = vld [vmem:[%s2040 + $0x110] sm:$0xff]
        %v2076 = vld [vmem:[%s2040 + $0x118] sm:$0xff]
        %v2077 = vld [vmem:[%s2040 + $0x120] sm:$0xff]
        %v2078 = vld [vmem:[%s2040 + $0x128] sm:$0xff]
        %v2079 = vld [vmem:[%s2040 + $0x130] sm:$0xff]
        %v2080 = vld [vmem:[%s2040 + $0x138] sm:$0xff]
        %v2081 = vld [vmem:[%s2040 + $0x140] sm:$0xff]
        %v2082 = vld [vmem:[%s2040 + $0x148] sm:$0xff]
        %v2083 = vld [vmem:[%s2040 + $0x150] sm:$0xff]
        %v2084 = vld [vmem:[%s2040 + $0x158] sm:$0xff]
        %v2085 = vld [vmem:[%s2040 + $0x160] sm:$0xff]
        %v2086 = vld [vmem:[%s2040 + $0x168] sm:$0xff]
        %v2087 = vld [vmem:[%s2040 + $0x170] sm:$0xff]
        %v2088 = vld [vmem:[%s2040 + $0x178] sm:$0xff]
        %v2089 = vld [vmem:[%s2040 + $0x180] sm:$0xff]
        %v2090 = vld [vmem:[%s2040 + $0x188] sm:$0xff]
        %v2091 = vld [vmem:[%s2040 + $0x190] sm:$0xff]
        %v2092 = vld [vmem:[%s2040 + $0x198] sm:$0xff]
        %v2093 = vld [vmem:[%s2040 + $0x1a0] sm:$0xff]
        %v2094 = vld [vmem:[%s2040 + $0x1a8] sm:$0xff]
        %v2095 = vld [vmem:[%s2040 + $0x1b0] sm:$0xff]
        %v2096 = vld [vmem:[%s2040 + $0x1b8] sm:$0xff]
        %v2097 = vld [vmem:[%s2040 + $0x1c0] sm:$0xff]
        %v2098 = vld [vmem:[%s2040 + $0x1c8] sm:$0xff]
        %v2099 = vld [vmem:[%s2040 + $0x1d0] sm:$0xff]
        %v2100 = vld [vmem:[%s2040 + $0x1d8] sm:$0xff]
        %v2101 = vld [vmem:[%s2040 + $0x1e0] sm:$0xff]
        %v2102 = vld [vmem:[%s2040 + $0x1e8] sm:$0xff]
        %v2103 = vld [vmem:[%s2040 + $0x1f0] sm:$0xff]
        %v2104 = vld [vmem:[%s2040 + $0x1f8] sm:$0xff]
        %s2105 = scalar_lea.vmem [#allocation7], 8
        %v2106 = vld [vmem:[%s2105] sm:$0x3]
        %v2108 = vlaneseq
        %v2109 = vshrl.u32 %v2108, 7
        %v2110 = vsub.s32 0, %v2109
        %v2111 = vrot.slane %v2106, %v2110
        %v2112 = vlaneseq
        %v2113 = vshrl.u32 %v2112, 7
        %v2114 = vsub.s32 1, %v2113
        %v2115 = vrot.slane %v2106, %v2114
        %2118 = vmatprep.subr.mxu0 %v2042
        %2119 = vmatpush1.msra.mxu0 %v2041
        %2120 = vmatprep.subr.mxu0 %v2044
        %2121 = vmatpush1.msra.mxu0 %v2043
        %2122 = vmatprep.subr.mxu0 %v2046
        %2123 = vmatpush1.msra.mxu0 %v2045
        %2124 = vmatprep.subr.mxu0 %v2048
        %2125 = vmatpush1.msra.mxu0 %v2047
        %2126 = vmatprep.subr.mxu0 %v2050
        %2127 = vmatpush1.msra.mxu0 %v2049
        %2128 = vmatprep.subr.mxu0 %v2052
        %2129 = vmatpush1.msra.mxu0 %v2051
        %2130 = vmatprep.subr.mxu0 %v2054
        %2131 = vmatpush1.msra.mxu0 %v2053
        %2132 = vmatprep.subr.mxu0 %v2056
        %2133 = vmatpush1.msra.mxu0 %v2055
        %2134 = vmatprep.subr.mxu0 %v2058
        %2135 = vmatpush1.msra.mxu0 %v2057
        %2136 = vmatprep.subr.mxu0 %v2060
        %2137 = vmatpush1.msra.mxu0 %v2059
        %2138 = vmatprep.subr.mxu0 %v2062
        %2139 = vmatpush1.msra.mxu0 %v2061
        %2140 = vmatprep.subr.mxu0 %v2064
        %2141 = vmatpush1.msra.mxu0 %v2063
        %2142 = vmatprep.subr.mxu0 %v2066
        %2143 = vmatpush1.msra.mxu0 %v2065
        %2144 = vmatprep.subr.mxu0 %v2068
        %2145 = vmatpush1.msra.mxu0 %v2067
        %2146 = vmatprep.subr.mxu0 %v2070
        %2147 = vmatpush1.msra.mxu0 %v2069
        %2148 = vmatprep.subr.mxu0 %v2072
        %2149 = vmatpush1.msra.mxu0 %v2071
        %2150 = vmatprep.subr.mxu0 %v2074
        %2151 = vmatpush1.msra.mxu0 %v2073
        %2152 = vmatprep.subr.mxu0 %v2076
        %2153 = vmatpush1.msra.mxu0 %v2075
        %2154 = vmatprep.subr.mxu0 %v2078
        %2155 = vmatpush1.msra.mxu0 %v2077
        %2156 = vmatprep.subr.mxu0 %v2080
        %2157 = vmatpush1.msra.mxu0 %v2079
        %2158 = vmatprep.subr.mxu0 %v2082
        %2159 = vmatpush1.msra.mxu0 %v2081
        %2160 = vmatprep.subr.mxu0 %v2084
        %2161 = vmatpush1.msra.mxu0 %v2083
        %2162 = vmatprep.subr.mxu0 %v2086
        %2163 = vmatpush1.msra.mxu0 %v2085
        %2164 = vmatprep.subr.mxu0 %v2088
        %2165 = vmatpush1.msra.mxu0 %v2087
        %2166 = vmatprep.subr.mxu0 %v2090
        %2167 = vmatpush1.msra.mxu0 %v2089
        %2168 = vmatprep.subr.mxu0 %v2092
        %2169 = vmatpush1.msra.mxu0 %v2091
        %2170 = vmatprep.subr.mxu0 %v2094
        %2171 = vmatpush1.msra.mxu0 %v2093
        %2172 = vmatprep.subr.mxu0 %v2096
        %2173 = vmatpush1.msra.mxu0 %v2095
        %2174 = vmatprep.subr.mxu0 %v2098
        %2175 = vmatpush1.msra.mxu0 %v2097
        %2176 = vmatprep.subr.mxu0 %v2100
        %2177 = vmatpush1.msra.mxu0 %v2099
        %2178 = vmatprep.subr.mxu0 %v2102
        %2179 = vmatpush1.msra.mxu0 %v2101
        %2180 = vmatprep.subr.mxu0 %v2104
        %2181 = vmatpush1.msra.mxu0 %v2103
        %2182 = vmatprep.mubr.f32.mxu0 %v2009
        %2183 = vmatmul.mubr.f32.gmra.mrb[0].mxu0 %v2008
        %v2184 = vpop.f32.mrb[0].mxu0
        %v2185 = vadd.f32 %v2111, %v2184
        %v2186 = vpop.f32.mrb[0].mxu0
        %v2187 = vadd.f32 %v2115, %v2186
        %2188 = vmatprep.mubr.f32.mxu0 %v2011
        %2189 = vmatmul.mubr.f32.gmra.mrb[0].mxu0 %v2010
        %v2190 = vpop.f32.mrb[0].mxu0
        %v2191 = vadd.f32 %v2111, %v2190
        %v2192 = vpop.f32.mrb[0].mxu0
        %v2193 = vadd.f32 %v2115, %v2192
        %2194 = vmatprep.mubr.f32.mxu0 %v2013
        %2195 = vmatmul.mubr.f32.gmra.mrb[0].mxu0 %v2012
        %v2196 = vpop.f32.mrb[0].mxu0
        %v2197 = vadd.f32 %v2111, %v2196
        %v2198 = vpop.f32.mrb[0].mxu0
        %v2199 = vadd.f32 %v2115, %v2198
        %2200 = vmatprep.mubr.f32.mxu0 %v2015
        %2201 = vmatmul.mubr.f32.gmra.mrb[0].mxu0 %v2014
        %v2202 = vpop.f32.mrb[0].mxu0
        %v2203 = vadd.f32 %v2111, %v2202
        %v2204 = vpop.f32.mrb[0].mxu0
        %v2205 = vadd.f32 %v2115, %v2204
        %2206 = vmatprep.mubr.f32.mxu0 %v2017
        %2207 = vmatmul.mubr.f32.gmra.mrb[0].mxu0 %v2016
        %v2208 = vpop.f32.mrb[0].mxu0
        %v2209 = vadd.f32 %v2111, %v2208
        %v2210 = vpop.f32.mrb[0].mxu0
        %v2211 = vadd.f32 %v2115, %v2210
        %2212 = vmatprep.mubr.f32.mxu0 %v2019
        %2213 = vmatmul.mubr.f32.gmra.mrb[0].mxu0 %v2018
        %v2214 = vpop.f32.mrb[0].mxu0
        %v2215 = vadd.f32 %v2111, %v2214
        %v2216 = vpop.f32.mrb[0].mxu0
        %v2217 = vadd.f32 %v2115, %v2216
        %2218 = vmatprep.mubr.f32.mxu0 %v2021
        %2219 = vmatmul.mubr.f32.gmra.mrb[0].mxu0 %v2020
        %v2220 = vpop.f32.mrb[0].mxu0
        %v2221 = vadd.f32 %v2111, %v2220
        %v2222 = vpop.f32.mrb[0].mxu0
        %v2223 = vadd.f32 %v2115, %v2222
        %2224 = vmatprep.mubr.f32.mxu0 %v2023
        %2225 = vmatmul.mubr.f32.gmra.mrb[0].mxu0 %v2022
        %v2226 = vpop.f32.mrb[0].mxu0
        %v2227 = vadd.f32 %v2111, %v2226
        %v2228 = vpop.f32.mrb[0].mxu0
        %v2229 = vadd.f32 %v2115, %v2228
        %2230 = vmatprep.mubr.f32.mxu0 %v2025
        %2231 = vmatmul.mubr.f32.gmra.mrb[0].mxu0 %v2024
        %v2232 = vpop.f32.mrb[0].mxu0
        %v2233 = vadd.f32 %v2111, %v2232
        %v2234 = vpop.f32.mrb[0].mxu0
        %v2235 = vadd.f32 %v2115, %v2234
        %2236 = vmatprep.mubr.f32.mxu0 %v2027
        %2237 = vmatmul.mubr.f32.gmra.mrb[0].mxu0 %v2026
        %v2238 = vpop.f32.mrb[0].mxu0
        %v2239 = vadd.f32 %v2111, %v2238
        %v2240 = vpop.f32.mrb[0].mxu0
        %v2241 = vadd.f32 %v2115, %v2240
        %2242 = vmatprep.mubr.f32.mxu0 %v2029
        %2243 = vmatmul.mubr.f32.gmra.mrb[0].mxu0 %v2028
        %v2244 = vpop.f32.mrb[0].mxu0
        %v2245 = vadd.f32 %v2111, %v2244
        %v2246 = vpop.f32.mrb[0].mxu0
        %v2247 = vadd.f32 %v2115, %v2246
        %2248 = vmatprep.mubr.f32.mxu0 %v2031
        %2249 = vmatmul.mubr.f32.gmra.mrb[0].mxu0 %v2030
        %v2250 = vpop.f32.mrb[0].mxu0
        %v2251 = vadd.f32 %v2111, %v2250
        %v2252 = vpop.f32.mrb[0].mxu0
        %v2253 = vadd.f32 %v2115, %v2252
        %2254 = vmatprep.mubr.f32.mxu0 %v2033
        %2255 = vmatmul.mubr.f32.gmra.mrb[0].mxu0 %v2032
        %v2256 = vpop.f32.mrb[0].mxu0
        %v2257 = vadd.f32 %v2111, %v2256
        %v2258 = vpop.f32.mrb[0].mxu0
        %v2259 = vadd.f32 %v2115, %v2258
        %2260 = vmatprep.mubr.f32.mxu0 %v2035
        %2261 = vmatmul.mubr.f32.gmra.mrb[0].mxu0 %v2034
        %v2262 = vpop.f32.mrb[0].mxu0
        %v2263 = vadd.f32 %v2111, %v2262
        %v2264 = vpop.f32.mrb[0].mxu0
        %v2265 = vadd.f32 %v2115, %v2264
        %2266 = vmatprep.mubr.f32.mxu0 %v2037
        %2267 = vmatmul.mubr.f32.gmra.mrb[0].mxu0 %v2036
        %v2268 = vpop.f32.mrb[0].mxu0
        %v2269 = vadd.f32 %v2111, %v2268
        %v2270 = vpop.f32.mrb[0].mxu0
        %v2271 = vadd.f32 %v2115, %v2270
        %2272 = vmatprep.mubr.f32.mxu0 %v2039
        %2273 = vmatmul.mubr.f32.gmra.mrb[0].mxu0 %v2038
        %v2274 = vpop.f32.mrb[0].mxu0
        %v2275 = vadd.f32 %v2111, %v2274
        %v2276 = vpop.f32.mrb[0].mxu0
        %v2277 = vadd.f32 %v2115, %v2276
        %2278 = vdwg.mxu0
        %v2279 = vld [vmem:[#allocation9] sm:$0x77]
        %v2281 = vlaneseq
        %v2282 = vshrl.u32 %v2281, 7
        %v2283 = vsub.s32 0, %v2282
        %v2284 = vrot.slane %v2279, %v2283
        %v2285 = vlaneseq
        %v2286 = vshrl.u32 %v2285, 7
        %v2287 = vsub.s32 4, %v2286
        %v2288 = vrot.slane %v2279, %v2287
        %v2291 = vlaneseq
        %v2292 = vshrl.u32 %v2291, 7
        %v2293 = vsub.s32 0, %v2292
        %v2294 = vrot.slane %v2284, %v2293
        %v2295 = vlaneseq
        %v2296 = vshrl.u32 %v2295, 7
        %v2297 = vsub.s32 0, %v2296
        %v2298 = vrot.slane %v2288, %v2297
        %v2299 = vmul.f32 %v462, %v2294
        %v2300 = vmul.f32 %v462, %v2298
        %v2301 = vmul.f32 %v467, %v2294
        %v2302 = vmul.f32 %v467, %v2298
        %v2303 = vmul.f32 %v472, %v2294
        %v2304 = vmul.f32 %v472, %v2298
        %v2305 = vmul.f32 %v477, %v2294
        %v2306 = vmul.f32 %v477, %v2298
        %v2307 = vmul.f32 %v482, %v2294
        %v2308 = vmul.f32 %v482, %v2298
        %v2309 = vmul.f32 %v487, %v2294
        %v2310 = vmul.f32 %v487, %v2298
        %v2311 = vmul.f32 %v492, %v2294
        %v2312 = vmul.f32 %v492, %v2298
        %v2313 = vmul.f32 %v497, %v2294
        %v2314 = vmul.f32 %v497, %v2298
        %v2315 = vmul.f32 %v502, %v2294
        %v2316 = vmul.f32 %v502, %v2298
        %v2317 = vmul.f32 %v507, %v2294
        %v2318 = vmul.f32 %v507, %v2298
        %v2319 = vmul.f32 %v512, %v2294
        %v2320 = vmul.f32 %v512, %v2298
        %v2321 = vmul.f32 %v517, %v2294
        %v2322 = vmul.f32 %v517, %v2298
        %v2323 = vmul.f32 %v522, %v2294
        %v2324 = vmul.f32 %v522, %v2298
        %v2325 = vmul.f32 %v527, %v2294
        %v2326 = vmul.f32 %v527, %v2298
        %v2327 = vmul.f32 %v532, %v2294
        %v2328 = vmul.f32 %v532, %v2298
        %v2329 = vmul.f32 %v537, %v2294
        %v2330 = vmul.f32 %v537, %v2298
        %v2331 = vlaneseq
        %v2332 = vshrl.u32 %v2331, 7
        %v2333 = vsub.s32 1, %v2332
        %v2334 = vrot.slane %v2279, %v2333
        %v2335 = vlaneseq
        %v2336 = vshrl.u32 %v2335, 7
        %v2337 = vsub.s32 5, %v2336
        %v2338 = vrot.slane %v2279, %v2337
        %v2341 = vlaneseq
        %v2342 = vshrl.u32 %v2341, 7
        %v2343 = vsub.s32 1, %v2342
        %v2344 = vrot.slane %v2334, %v2343
        %v2345 = vlaneseq
        %v2346 = vshrl.u32 %v2345, 7
        %v2347 = vsub.s32 1, %v2346
        %v2348 = vrot.slane %v2338, %v2347
        %v2349 = vmul.f32 %v592, %v2344
        %v2350 = vmul.f32 %v592, %v2348
        %v2351 = vmul.f32 %v596, %v2344
        %v2352 = vmul.f32 %v596, %v2348
        %v2353 = vmul.f32 %v600, %v2344
        %v2354 = vmul.f32 %v600, %v2348
        %v2355 = vmul.f32 %v604, %v2344
        %v2356 = vmul.f32 %v604, %v2348
        %v2357 = vmul.f32 %v608, %v2344
        %v2358 = vmul.f32 %v608, %v2348
        %v2359 = vmul.f32 %v612, %v2344
        %v2360 = vmul.f32 %v612, %v2348
        %v2361 = vmul.f32 %v616, %v2344
        %v2362 = vmul.f32 %v616, %v2348
        %v2363 = vmul.f32 %v620, %v2344
        %v2364 = vmul.f32 %v620, %v2348
        %v2365 = vmul.f32 %v624, %v2344
        %v2366 = vmul.f32 %v624, %v2348
        %v2367 = vmul.f32 %v628, %v2344
        %v2368 = vmul.f32 %v628, %v2348
        %v2369 = vmul.f32 %v632, %v2344
        %v2370 = vmul.f32 %v632, %v2348
        %v2371 = vmul.f32 %v636, %v2344
        %v2372 = vmul.f32 %v636, %v2348
        %v2373 = vmul.f32 %v640, %v2344
        %v2374 = vmul.f32 %v640, %v2348
        %v2375 = vmul.f32 %v644, %v2344
        %v2376 = vmul.f32 %v644, %v2348
        %v2377 = vmul.f32 %v648, %v2344
        %v2378 = vmul.f32 %v648, %v2348
        %v2379 = vmul.f32 %v652, %v2344
        %v2380 = vmul.f32 %v652, %v2348
        %v2381 = vadd.f32 %v2299, %v2349
        %v2382 = vadd.f32 %v2300, %v2350
        %v2383 = vadd.f32 %v2301, %v2351
        %v2384 = vadd.f32 %v2302, %v2352
        %v2385 = vadd.f32 %v2303, %v2353
        %v2386 = vadd.f32 %v2304, %v2354
        %v2387 = vadd.f32 %v2305, %v2355
        %v2388 = vadd.f32 %v2306, %v2356
        %v2389 = vadd.f32 %v2307, %v2357
        %v2390 = vadd.f32 %v2308, %v2358
        %v2391 = vadd.f32 %v2309, %v2359
        %v2392 = vadd.f32 %v2310, %v2360
        %v2393 = vadd.f32 %v2311, %v2361
        %v2394 = vadd.f32 %v2312, %v2362
        %v2395 = vadd.f32 %v2313, %v2363
        %v2396 = vadd.f32 %v2314, %v2364
        %v2397 = vadd.f32 %v2315, %v2365
        %v2398 = vadd.f32 %v2316, %v2366
        %v2399 = vadd.f32 %v2317, %v2367
        %v2400 = vadd.f32 %v2318, %v2368
        %v2401 = vadd.f32 %v2319, %v2369
        %v2402 = vadd.f32 %v2320, %v2370
        %v2403 = vadd.f32 %v2321, %v2371
        %v2404 = vadd.f32 %v2322, %v2372
        %v2405 = vadd.f32 %v2323, %v2373
        %v2406 = vadd.f32 %v2324, %v2374
        %v2407 = vadd.f32 %v2325, %v2375
        %v2408 = vadd.f32 %v2326, %v2376
        %v2409 = vadd.f32 %v2327, %v2377
        %v2410 = vadd.f32 %v2328, %v2378
        %v2411 = vadd.f32 %v2329, %v2379
        %v2412 = vadd.f32 %v2330, %v2380
        %v2413 = vlaneseq
        %v2414 = vshrl.u32 %v2413, 7
        %v2415 = vsub.s32 2, %v2414
        %v2416 = vrot.slane %v2279, %v2415
        %v2417 = vlaneseq
        %v2418 = vshrl.u32 %v2417, 7
        %v2419 = vsub.s32 6, %v2418
        %v2420 = vrot.slane %v2279, %v2419
        %v2423 = vlaneseq
        %v2424 = vshrl.u32 %v2423, 7
        %v2425 = vsub.s32 2, %v2424
        %v2426 = vrot.slane %v2416, %v2425
        %v2427 = vlaneseq
        %v2428 = vshrl.u32 %v2427, 7
        %v2429 = vsub.s32 2, %v2428
        %v2430 = vrot.slane %v2420, %v2429
        %v2431 = vmul.f32 %v738, %v2426
        %v2432 = vmul.f32 %v738, %v2430
        %v2433 = vmul.f32 %v742, %v2426
        %v2434 = vmul.f32 %v742, %v2430
        %v2435 = vmul.f32 %v746, %v2426
        %v2436 = vmul.f32 %v746, %v2430
        %v2437 = vmul.f32 %v750, %v2426
        %v2438 = vmul.f32 %v750, %v2430
        %v2439 = vmul.f32 %v754, %v2426
        %v2440 = vmul.f32 %v754, %v2430
        %v2441 = vmul.f32 %v758, %v2426
        %v2442 = vmul.f32 %v758, %v2430
        %v2443 = vmul.f32 %v762, %v2426
        %v2444 = vmul.f32 %v762, %v2430
        %v2445 = vmul.f32 %v766, %v2426
        %v2446 = vmul.f32 %v766, %v2430
        %v2447 = vmul.f32 %v770, %v2426
        %v2448 = vmul.f32 %v770, %v2430
        %v2449 = vmul.f32 %v774, %v2426
        %v2450 = vmul.f32 %v774, %v2430
        %v2451 = vmul.f32 %v778, %v2426
        %v2452 = vmul.f32 %v778, %v2430
        %v2453 = vmul.f32 %v782, %v2426
        %v2454 = vmul.f32 %v782, %v2430
        %v2455 = vmul.f32 %v786, %v2426
        %v2456 = vmul.f32 %v786, %v2430
        %v2457 = vmul.f32 %v790, %v2426
        %v2458 = vmul.f32 %v790, %v2430
        %v2459 = vmul.f32 %v794, %v2426
        %v2460 = vmul.f32 %v794, %v2430
        %v2461 = vmul.f32 %v798, %v2426
        %v2462 = vmul.f32 %v798, %v2430
        %v2463 = vadd.f32 %v2381, %v2431
        %v2464 = vadd.f32 %v2382, %v2432
        %v2465 = vadd.f32 %v2383, %v2433
        %v2466 = vadd.f32 %v2384, %v2434
        %v2467 = vadd.f32 %v2385, %v2435
        %v2468 = vadd.f32 %v2386, %v2436
        %v2469 = vadd.f32 %v2387, %v2437
        %v2470 = vadd.f32 %v2388, %v2438
        %v2471 = vadd.f32 %v2389, %v2439
        %v2472 = vadd.f32 %v2390, %v2440
        %v2473 = vadd.f32 %v2391, %v2441
        %v2474 = vadd.f32 %v2392, %v2442
        %v2475 = vadd.f32 %v2393, %v2443
        %v2476 = vadd.f32 %v2394, %v2444
        %v2477 = vadd.f32 %v2395, %v2445
        %v2478 = vadd.f32 %v2396, %v2446
        %v2479 = vadd.f32 %v2397, %v2447
        %v2480 = vadd.f32 %v2398, %v2448
        %v2481 = vadd.f32 %v2399, %v2449
        %v2482 = vadd.f32 %v2400, %v2450
        %v2483 = vadd.f32 %v2401, %v2451
        %v2484 = vadd.f32 %v2402, %v2452
        %v2485 = vadd.f32 %v2403, %v2453
        %v2486 = vadd.f32 %v2404, %v2454
        %v2487 = vadd.f32 %v2405, %v2455
        %v2488 = vadd.f32 %v2406, %v2456
        %v2489 = vadd.f32 %v2407, %v2457
        %v2490 = vadd.f32 %v2408, %v2458
        %v2491 = vadd.f32 %v2409, %v2459
        %v2492 = vadd.f32 %v2410, %v2460
        %v2493 = vadd.f32 %v2411, %v2461
        %v2494 = vadd.f32 %v2412, %v2462
        %v2495 = vadd.f32 %v2185, %v2463
        %v2496 = vadd.f32 %v2187, %v2464
        %v2497 = vadd.f32 %v2191, %v2465
        %v2498 = vadd.f32 %v2193, %v2466
        %v2499 = vadd.f32 %v2197, %v2467
        %v2500 = vadd.f32 %v2199, %v2468
        %v2501 = vadd.f32 %v2203, %v2469
        %v2502 = vadd.f32 %v2205, %v2470
        %v2503 = vadd.f32 %v2209, %v2471
        %v2504 = vadd.f32 %v2211, %v2472
        %v2505 = vadd.f32 %v2215, %v2473
        %v2506 = vadd.f32 %v2217, %v2474
        %v2507 = vadd.f32 %v2221, %v2475
        %v2508 = vadd.f32 %v2223, %v2476
        %v2509 = vadd.f32 %v2227, %v2477
        %v2510 = vadd.f32 %v2229, %v2478
        %v2511 = vadd.f32 %v2233, %v2479
        %v2512 = vadd.f32 %v2235, %v2480
        %v2513 = vadd.f32 %v2239, %v2481
        %v2514 = vadd.f32 %v2241, %v2482
        %v2515 = vadd.f32 %v2245, %v2483
        %v2516 = vadd.f32 %v2247, %v2484
        %v2517 = vadd.f32 %v2251, %v2485
        %v2518 = vadd.f32 %v2253, %v2486
        %v2519 = vadd.f32 %v2257, %v2487
        %v2520 = vadd.f32 %v2259, %v2488
        %v2521 = vadd.f32 %v2263, %v2489
        %v2522 = vadd.f32 %v2265, %v2490
        %v2523 = vadd.f32 %v2269, %v2491
        %v2524 = vadd.f32 %v2271, %v2492
        %v2525 = vadd.f32 %v2275, %v2493
        %v2526 = vadd.f32 %v2277, %v2494
        %v2527 = vmax.f32 %v2495, 0.0
        %v2528 = vmax.f32 %v2496, 0.0
        %v2529 = vmax.f32 %v2497, 0.0
        %v2530 = vmax.f32 %v2498, 0.0
        %v2531 = vmax.f32 %v2499, 0.0
        %v2532 = vmax.f32 %v2500, 0.0
        %v2533 = vmax.f32 %v2501, 0.0
        %v2534 = vmax.f32 %v2502, 0.0
        %v2535 = vmax.f32 %v2503, 0.0
        %v2536 = vmax.f32 %v2504, 0.0
        %v2537 = vmax.f32 %v2505, 0.0
        %v2538 = vmax.f32 %v2506, 0.0
        %v2539 = vmax.f32 %v2507, 0.0
        %v2540 = vmax.f32 %v2508, 0.0
        %v2541 = vmax.f32 %v2509, 0.0
        %v2542 = vmax.f32 %v2510, 0.0
        %v2543 = vmax.f32 %v2511, 0.0
        %v2544 = vmax.f32 %v2512, 0.0
        %v2545 = vmax.f32 %v2513, 0.0
        %v2546 = vmax.f32 %v2514, 0.0
        %v2547 = vmax.f32 %v2515, 0.0
        %v2548 = vmax.f32 %v2516, 0.0
        %v2549 = vmax.f32 %v2517, 0.0
        %v2550 = vmax.f32 %v2518, 0.0
        %v2551 = vmax.f32 %v2519, 0.0
        %v2552 = vmax.f32 %v2520, 0.0
        %v2553 = vmax.f32 %v2521, 0.0
        %v2554 = vmax.f32 %v2522, 0.0
        %v2555 = vmax.f32 %v2523, 0.0
        %v2556 = vmax.f32 %v2524, 0.0
        %v2557 = vmax.f32 %v2525, 0.0
        %v2558 = vmax.f32 %v2526, 0.0
        %s2559 = scalar_lea.vmem [#allocation6], 2560
        %v2560 = vld [vmem:[%s2559] sm:$0xff]
        %v2561 = vld [vmem:[%s2559 + $0x8] sm:$0xff]
        %v2562 = vld [vmem:[%s2559 + $0x10] sm:$0xff]
        %v2563 = vld [vmem:[%s2559 + $0x18] sm:$0xff]
        %v2564 = vld [vmem:[%s2559 + $0x20] sm:$0xff]
        %v2565 = vld [vmem:[%s2559 + $0x28] sm:$0xff]
        %v2566 = vld [vmem:[%s2559 + $0x30] sm:$0xff]
        %v2567 = vld [vmem:[%s2559 + $0x38] sm:$0xff]
        %v2568 = vld [vmem:[%s2559 + $0x40] sm:$0xff]
        %v2569 = vld [vmem:[%s2559 + $0x48] sm:$0xff]
        %v2570 = vld [vmem:[%s2559 + $0x50] sm:$0xff]
        %v2571 = vld [vmem:[%s2559 + $0x58] sm:$0xff]
        %v2572 = vld [vmem:[%s2559 + $0x60] sm:$0xff]
        %v2573 = vld [vmem:[%s2559 + $0x68] sm:$0xff]
        %v2574 = vld [vmem:[%s2559 + $0x70] sm:$0xff]
        %v2575 = vld [vmem:[%s2559 + $0x78] sm:$0xff]
        %v2576 = vld [vmem:[%s2559 + $0x80] sm:$0xff]
        %v2577 = vld [vmem:[%s2559 + $0x88] sm:$0xff]
        %v2578 = vld [vmem:[%s2559 + $0x90] sm:$0xff]
        %v2579 = vld [vmem:[%s2559 + $0x98] sm:$0xff]
        %v2580 = vld [vmem:[%s2559 + $0xa0] sm:$0xff]
        %v2581 = vld [vmem:[%s2559 + $0xa8] sm:$0xff]
        %v2582 = vld [vmem:[%s2559 + $0xb0] sm:$0xff]
        %v2583 = vld [vmem:[%s2559 + $0xb8] sm:$0xff]
        %v2584 = vld [vmem:[%s2559 + $0xc0] sm:$0xff]
        %v2585 = vld [vmem:[%s2559 + $0xc8] sm:$0xff]
        %v2586 = vld [vmem:[%s2559 + $0xd0] sm:$0xff]
        %v2587 = vld [vmem:[%s2559 + $0xd8] sm:$0xff]
        %v2588 = vld [vmem:[%s2559 + $0xe0] sm:$0xff]
        %v2589 = vld [vmem:[%s2559 + $0xe8] sm:$0xff]
        %v2590 = vld [vmem:[%s2559 + $0xf0] sm:$0xff]
        %v2591 = vld [vmem:[%s2559 + $0xf8] sm:$0xff]
        %v2592 = vld [vmem:[%s2559 + $0x100] sm:$0xff]
        %v2593 = vld [vmem:[%s2559 + $0x108] sm:$0xff]
        %v2594 = vld [vmem:[%s2559 + $0x110] sm:$0xff]
        %v2595 = vld [vmem:[%s2559 + $0x118] sm:$0xff]
        %v2596 = vld [vmem:[%s2559 + $0x120] sm:$0xff]
        %v2597 = vld [vmem:[%s2559 + $0x128] sm:$0xff]
        %v2598 = vld [vmem:[%s2559 + $0x130] sm:$0xff]
        %v2599 = vld [vmem:[%s2559 + $0x138] sm:$0xff]
        %v2600 = vld [vmem:[%s2559 + $0x140] sm:$0xff]
        %v2601 = vld [vmem:[%s2559 + $0x148] sm:$0xff]
        %v2602 = vld [vmem:[%s2559 + $0x150] sm:$0xff]
        %v2603 = vld [vmem:[%s2559 + $0x158] sm:$0xff]
        %v2604 = vld [vmem:[%s2559 + $0x160] sm:$0xff]
        %v2605 = vld [vmem:[%s2559 + $0x168] sm:$0xff]
        %v2606 = vld [vmem:[%s2559 + $0x170] sm:$0xff]
        %v2607 = vld [vmem:[%s2559 + $0x178] sm:$0xff]
        %v2608 = vld [vmem:[%s2559 + $0x180] sm:$0xff]
        %v2609 = vld [vmem:[%s2559 + $0x188] sm:$0xff]
        %v2610 = vld [vmem:[%s2559 + $0x190] sm:$0xff]
        %v2611 = vld [vmem:[%s2559 + $0x198] sm:$0xff]
        %v2612 = vld [vmem:[%s2559 + $0x1a0] sm:$0xff]
        %v2613 = vld [vmem:[%s2559 + $0x1a8] sm:$0xff]
        %v2614 = vld [vmem:[%s2559 + $0x1b0] sm:$0xff]
        %v2615 = vld [vmem:[%s2559 + $0x1b8] sm:$0xff]
        %v2616 = vld [vmem:[%s2559 + $0x1c0] sm:$0xff]
        %v2617 = vld [vmem:[%s2559 + $0x1c8] sm:$0xff]
        %v2618 = vld [vmem:[%s2559 + $0x1d0] sm:$0xff]
        %v2619 = vld [vmem:[%s2559 + $0x1d8] sm:$0xff]
        %v2620 = vld [vmem:[%s2559 + $0x1e0] sm:$0xff]
        %v2621 = vld [vmem:[%s2559 + $0x1e8] sm:$0xff]
        %v2622 = vld [vmem:[%s2559 + $0x1f0] sm:$0xff]
        %v2623 = vld [vmem:[%s2559 + $0x1f8] sm:$0xff]
        %s2624 = scalar_lea.vmem [#allocation7], 10
        %v2625 = vld [vmem:[%s2624] sm:$0x3]
        %v2627 = vlaneseq
        %v2628 = vshrl.u32 %v2627, 7
        %v2629 = vsub.s32 0, %v2628
        %v2630 = vrot.slane %v2625, %v2629
        %v2631 = vlaneseq
        %v2632 = vshrl.u32 %v2631, 7
        %v2633 = vsub.s32 1, %v2632
        %v2634 = vrot.slane %v2625, %v2633
        %2637 = vmatprep.subr.mxu0 %v2561
        %2638 = vmatpush1.msra.mxu0 %v2560
        %2639 = vmatprep.subr.mxu0 %v2563
        %2640 = vmatpush1.msra.mxu0 %v2562
        %2641 = vmatprep.subr.mxu0 %v2565
        %2642 = vmatpush1.msra.mxu0 %v2564
        %2643 = vmatprep.subr.mxu0 %v2567
        %2644 = vmatpush1.msra.mxu0 %v2566
        %2645 = vmatprep.subr.mxu0 %v2569
        %2646 = vmatpush1.msra.mxu0 %v2568
        %2647 = vmatprep.subr.mxu0 %v2571
        %2648 = vmatpush1.msra.mxu0 %v2570
        %2649 = vmatprep.subr.mxu0 %v2573
        %2650 = vmatpush1.msra.mxu0 %v2572
        %2651 = vmatprep.subr.mxu0 %v2575
        %2652 = vmatpush1.msra.mxu0 %v2574
        %2653 = vmatprep.subr.mxu0 %v2577
        %2654 = vmatpush1.msra.mxu0 %v2576
        %2655 = vmatprep.subr.mxu0 %v2579
        %2656 = vmatpush1.msra.mxu0 %v2578
        %2657 = vmatprep.subr.mxu0 %v2581
        %2658 = vmatpush1.msra.mxu0 %v2580
        %2659 = vmatprep.subr.mxu0 %v2583
        %2660 = vmatpush1.msra.mxu0 %v2582
        %2661 = vmatprep.subr.mxu0 %v2585
        %2662 = vmatpush1.msra.mxu0 %v2584
        %2663 = vmatprep.subr.mxu0 %v2587
        %2664 = vmatpush1.msra.mxu0 %v2586
        %2665 = vmatprep.subr.mxu0 %v2589
        %2666 = vmatpush1.msra.mxu0 %v2588
        %2667 = vmatprep.subr.mxu0 %v2591
        %2668 = vmatpush1.msra.mxu0 %v2590
        %2669 = vmatprep.subr.mxu0 %v2593
        %2670 = vmatpush1.msra.mxu0 %v2592
        %2671 = vmatprep.subr.mxu0 %v2595
        %2672 = vmatpush1.msra.mxu0 %v2594
        %2673 = vmatprep.subr.mxu0 %v2597
        %2674 = vmatpush1.msra.mxu0 %v2596
        %2675 = vmatprep.subr.mxu0 %v2599
        %2676 = vmatpush1.msra.mxu0 %v2598
        %2677 = vmatprep.subr.mxu0 %v2601
        %2678 = vmatpush1.msra.mxu0 %v2600
        %2679 = vmatprep.subr.mxu0 %v2603
        %2680 = vmatpush1.msra.mxu0 %v2602
        %2681 = vmatprep.subr.mxu0 %v2605
        %2682 = vmatpush1.msra.mxu0 %v2604
        %2683 = vmatprep.subr.mxu0 %v2607
        %2684 = vmatpush1.msra.mxu0 %v2606
        %2685 = vmatprep.subr.mxu0 %v2609
        %2686 = vmatpush1.msra.mxu0 %v2608
        %2687 = vmatprep.subr.mxu0 %v2611
        %2688 = vmatpush1.msra.mxu0 %v2610
        %2689 = vmatprep.subr.mxu0 %v2613
        %2690 = vmatpush1.msra.mxu0 %v2612
        %2691 = vmatprep.subr.mxu0 %v2615
        %2692 = vmatpush1.msra.mxu0 %v2614
        %2693 = vmatprep.subr.mxu0 %v2617
        %2694 = vmatpush1.msra.mxu0 %v2616
        %2695 = vmatprep.subr.mxu0 %v2619
        %2696 = vmatpush1.msra.mxu0 %v2618
        %2697 = vmatprep.subr.mxu0 %v2621
        %2698 = vmatpush1.msra.mxu0 %v2620
        %2699 = vmatprep.subr.mxu0 %v2623
        %2700 = vmatpush1.msra.mxu0 %v2622
        %2701 = vmatprep.mubr.f32.mxu0 %v2528
        %2702 = vmatmul.mubr.f32.gmra.mrb[0].mxu0 %v2527
        %v2703 = vpop.f32.mrb[0].mxu0
        %v2704 = vadd.f32 %v2630, %v2703
        %v2705 = vpop.f32.mrb[0].mxu0
        %v2706 = vadd.f32 %v2634, %v2705
        %2707 = vmatprep.mubr.f32.mxu0 %v2530
        %2708 = vmatmul.mubr.f32.gmra.mrb[0].mxu0 %v2529
        %v2709 = vpop.f32.mrb[0].mxu0
        %v2710 = vadd.f32 %v2630, %v2709
        %v2711 = vpop.f32.mrb[0].mxu0
        %v2712 = vadd.f32 %v2634, %v2711
        %2713 = vmatprep.mubr.f32.mxu0 %v2532
        %2714 = vmatmul.mubr.f32.gmra.mrb[0].mxu0 %v2531
        %v2715 = vpop.f32.mrb[0].mxu0
        %v2716 = vadd.f32 %v2630, %v2715
        %v2717 = vpop.f32.mrb[0].mxu0
        %v2718 = vadd.f32 %v2634, %v2717
        %2719 = vmatprep.mubr.f32.mxu0 %v2534
        %2720 = vmatmul.mubr.f32.gmra.mrb[0].mxu0 %v2533
        %v2721 = vpop.f32.mrb[0].mxu0
        %v2722 = vadd.f32 %v2630, %v2721
        %v2723 = vpop.f32.mrb[0].mxu0
        %v2724 = vadd.f32 %v2634, %v2723
        %2725 = vmatprep.mubr.f32.mxu0 %v2536
        %2726 = vmatmul.mubr.f32.gmra.mrb[0].mxu0 %v2535
        %v2727 = vpop.f32.mrb[0].mxu0
        %v2728 = vadd.f32 %v2630, %v2727
        %v2729 = vpop.f32.mrb[0].mxu0
        %v2730 = vadd.f32 %v2634, %v2729
        %2731 = vmatprep.mubr.f32.mxu0 %v2538
        %2732 = vmatmul.mubr.f32.gmra.mrb[0].mxu0 %v2537
        %v2733 = vpop.f32.mrb[0].mxu0
        %v2734 = vadd.f32 %v2630, %v2733
        %v2735 = vpop.f32.mrb[0].mxu0
        %v2736 = vadd.f32 %v2634, %v2735
        %2737 = vmatprep.mubr.f32.mxu0 %v2540
        %2738 = vmatmul.mubr.f32.gmra.mrb[0].mxu0 %v2539
        %v2739 = vpop.f32.mrb[0].mxu0
        %v2740 = vadd.f32 %v2630, %v2739
        %v2741 = vpop.f32.mrb[0].mxu0
        %v2742 = vadd.f32 %v2634, %v2741
        %2743 = vmatprep.mubr.f32.mxu0 %v2542
        %2744 = vmatmul.mubr.f32.gmra.mrb[0].mxu0 %v2541
        %v2745 = vpop.f32.mrb[0].mxu0
        %v2746 = vadd.f32 %v2630, %v2745
        %v2747 = vpop.f32.mrb[0].mxu0
        %v2748 = vadd.f32 %v2634, %v2747
        %2749 = vmatprep.mubr.f32.mxu0 %v2544
        %2750 = vmatmul.mubr.f32.gmra.mrb[0].mxu0 %v2543
        %v2751 = vpop.f32.mrb[0].mxu0
        %v2752 = vadd.f32 %v2630, %v2751
        %v2753 = vpop.f32.mrb[0].mxu0
        %v2754 = vadd.f32 %v2634, %v2753
        %2755 = vmatprep.mubr.f32.mxu0 %v2546
        %2756 = vmatmul.mubr.f32.gmra.mrb[0].mxu0 %v2545
        %v2757 = vpop.f32.mrb[0].mxu0
        %v2758 = vadd.f32 %v2630, %v2757
        %v2759 = vpop.f32.mrb[0].mxu0
        %v2760 = vadd.f32 %v2634, %v2759
        %2761 = vmatprep.mubr.f32.mxu0 %v2548
        %2762 = vmatmul.mubr.f32.gmra.mrb[0].mxu0 %v2547
        %v2763 = vpop.f32.mrb[0].mxu0
        %v2764 = vadd.f32 %v2630, %v2763
        %v2765 = vpop.f32.mrb[0].mxu0
        %v2766 = vadd.f32 %v2634, %v2765
        %2767 = vmatprep.mubr.f32.mxu0 %v2550
        %2768 = vmatmul.mubr.f32.gmra.mrb[0].mxu0 %v2549
        %v2769 = vpop.f32.mrb[0].mxu0
        %v2770 = vadd.f32 %v2630, %v2769
        %v2771 = vpop.f32.mrb[0].mxu0
        %v2772 = vadd.f32 %v2634, %v2771
        %2773 = vmatprep.mubr.f32.mxu0 %v2552
        %2774 = vmatmul.mubr.f32.gmra.mrb[0].mxu0 %v2551
        %v2775 = vpop.f32.mrb[0].mxu0
        %v2776 = vadd.f32 %v2630, %v2775
        %v2777 = vpop.f32.mrb[0].mxu0
        %v2778 = vadd.f32 %v2634, %v2777
        %2779 = vmatprep.mubr.f32.mxu0 %v2554
        %2780 = vmatmul.mubr.f32.gmra.mrb[0].mxu0 %v2553
        %v2781 = vpop.f32.mrb[0].mxu0
        %v2782 = vadd.f32 %v2630, %v2781
        %v2783 = vpop.f32.mrb[0].mxu0
        %v2784 = vadd.f32 %v2634, %v2783
        %2785 = vmatprep.mubr.f32.mxu0 %v2556
        %2786 = vmatmul.mubr.f32.gmra.mrb[0].mxu0 %v2555
        %v2787 = vpop.f32.mrb[0].mxu0
        %v2788 = vadd.f32 %v2630, %v2787
        %v2789 = vpop.f32.mrb[0].mxu0
        %v2790 = vadd.f32 %v2634, %v2789
        %2791 = vmatprep.mubr.f32.mxu0 %v2558
        %2792 = vmatmul.mubr.f32.gmra.mrb[0].mxu0 %v2557
        %v2793 = vpop.f32.mrb[0].mxu0
        %v2794 = vadd.f32 %v2630, %v2793
        %v2795 = vpop.f32.mrb[0].mxu0
        %v2796 = vadd.f32 %v2634, %v2795
        %2797 = vdwg.mxu0
        %v2798 = vmax.f32 %v2704, 0.0
        %v2799 = vmax.f32 %v2706, 0.0
        %v2800 = vmax.f32 %v2710, 0.0
        %v2801 = vmax.f32 %v2712, 0.0
        %v2802 = vmax.f32 %v2716, 0.0
        %v2803 = vmax.f32 %v2718, 0.0
        %v2804 = vmax.f32 %v2722, 0.0
        %v2805 = vmax.f32 %v2724, 0.0
        %v2806 = vmax.f32 %v2728, 0.0
        %v2807 = vmax.f32 %v2730, 0.0
        %v2808 = vmax.f32 %v2734, 0.0
        %v2809 = vmax.f32 %v2736, 0.0
        %v2810 = vmax.f32 %v2740, 0.0
        %v2811 = vmax.f32 %v2742, 0.0
        %v2812 = vmax.f32 %v2746, 0.0
        %v2813 = vmax.f32 %v2748, 0.0
        %v2814 = vmax.f32 %v2752, 0.0
        %v2815 = vmax.f32 %v2754, 0.0
        %v2816 = vmax.f32 %v2758, 0.0
        %v2817 = vmax.f32 %v2760, 0.0
        %v2818 = vmax.f32 %v2764, 0.0
        %v2819 = vmax.f32 %v2766, 0.0
        %v2820 = vmax.f32 %v2770, 0.0
        %v2821 = vmax.f32 %v2772, 0.0
        %v2822 = vmax.f32 %v2776, 0.0
        %v2823 = vmax.f32 %v2778, 0.0
        %v2824 = vmax.f32 %v2782, 0.0
        %v2825 = vmax.f32 %v2784, 0.0
        %v2826 = vmax.f32 %v2788, 0.0
        %v2827 = vmax.f32 %v2790, 0.0
        %v2828 = vmax.f32 %v2794, 0.0
        %v2829 = vmax.f32 %v2796, 0.0
        %s2830 = scalar_lea.vmem [#allocation6], 3072
        %v2831 = vld [vmem:[%s2830] sm:$0xff]
        %v2832 = vld [vmem:[%s2830 + $0x8] sm:$0xff]
        %v2833 = vld [vmem:[%s2830 + $0x10] sm:$0xff]
        %v2834 = vld [vmem:[%s2830 + $0x18] sm:$0xff]
        %v2835 = vld [vmem:[%s2830 + $0x20] sm:$0xff]
        %v2836 = vld [vmem:[%s2830 + $0x28] sm:$0xff]
        %v2837 = vld [vmem:[%s2830 + $0x30] sm:$0xff]
        %v2838 = vld [vmem:[%s2830 + $0x38] sm:$0xff]
        %v2839 = vld [vmem:[%s2830 + $0x40] sm:$0xff]
        %v2840 = vld [vmem:[%s2830 + $0x48] sm:$0xff]
        %v2841 = vld [vmem:[%s2830 + $0x50] sm:$0xff]
        %v2842 = vld [vmem:[%s2830 + $0x58] sm:$0xff]
        %v2843 = vld [vmem:[%s2830 + $0x60] sm:$0xff]
        %v2844 = vld [vmem:[%s2830 + $0x68] sm:$0xff]
        %v2845 = vld [vmem:[%s2830 + $0x70] sm:$0xff]
        %v2846 = vld [vmem:[%s2830 + $0x78] sm:$0xff]
        %v2847 = vld [vmem:[%s2830 + $0x80] sm:$0xff]
        %v2848 = vld [vmem:[%s2830 + $0x88] sm:$0xff]
        %v2849 = vld [vmem:[%s2830 + $0x90] sm:$0xff]
        %v2850 = vld [vmem:[%s2830 + $0x98] sm:$0xff]
        %v2851 = vld [vmem:[%s2830 + $0xa0] sm:$0xff]
        %v2852 = vld [vmem:[%s2830 + $0xa8] sm:$0xff]
        %v2853 = vld [vmem:[%s2830 + $0xb0] sm:$0xff]
        %v2854 = vld [vmem:[%s2830 + $0xb8] sm:$0xff]
        %v2855 = vld [vmem:[%s2830 + $0xc0] sm:$0xff]
        %v2856 = vld [vmem:[%s2830 + $0xc8] sm:$0xff]
        %v2857 = vld [vmem:[%s2830 + $0xd0] sm:$0xff]
        %v2858 = vld [vmem:[%s2830 + $0xd8] sm:$0xff]
        %v2859 = vld [vmem:[%s2830 + $0xe0] sm:$0xff]
        %v2860 = vld [vmem:[%s2830 + $0xe8] sm:$0xff]
        %v2861 = vld [vmem:[%s2830 + $0xf0] sm:$0xff]
        %v2862 = vld [vmem:[%s2830 + $0xf8] sm:$0xff]
        %v2863 = vld [vmem:[%s2830 + $0x100] sm:$0xff]
        %v2864 = vld [vmem:[%s2830 + $0x108] sm:$0xff]
        %v2865 = vld [vmem:[%s2830 + $0x110] sm:$0xff]
        %v2866 = vld [vmem:[%s2830 + $0x118] sm:$0xff]
        %v2867 = vld [vmem:[%s2830 + $0x120] sm:$0xff]
        %v2868 = vld [vmem:[%s2830 + $0x128] sm:$0xff]
        %v2869 = vld [vmem:[%s2830 + $0x130] sm:$0xff]
        %v2870 = vld [vmem:[%s2830 + $0x138] sm:$0xff]
        %v2871 = vld [vmem:[%s2830 + $0x140] sm:$0xff]
        %v2872 = vld [vmem:[%s2830 + $0x148] sm:$0xff]
        %v2873 = vld [vmem:[%s2830 + $0x150] sm:$0xff]
        %v2874 = vld [vmem:[%s2830 + $0x158] sm:$0xff]
        %v2875 = vld [vmem:[%s2830 + $0x160] sm:$0xff]
        %v2876 = vld [vmem:[%s2830 + $0x168] sm:$0xff]
        %v2877 = vld [vmem:[%s2830 + $0x170] sm:$0xff]
        %v2878 = vld [vmem:[%s2830 + $0x178] sm:$0xff]
        %v2879 = vld [vmem:[%s2830 + $0x180] sm:$0xff]
        %v2880 = vld [vmem:[%s2830 + $0x188] sm:$0xff]
        %v2881 = vld [vmem:[%s2830 + $0x190] sm:$0xff]
        %v2882 = vld [vmem:[%s2830 + $0x198] sm:$0xff]
        %v2883 = vld [vmem:[%s2830 + $0x1a0] sm:$0xff]
        %v2884 = vld [vmem:[%s2830 + $0x1a8] sm:$0xff]
        %v2885 = vld [vmem:[%s2830 + $0x1b0] sm:$0xff]
        %v2886 = vld [vmem:[%s2830 + $0x1b8] sm:$0xff]
        %v2887 = vld [vmem:[%s2830 + $0x1c0] sm:$0xff]
        %v2888 = vld [vmem:[%s2830 + $0x1c8] sm:$0xff]
        %v2889 = vld [vmem:[%s2830 + $0x1d0] sm:$0xff]
        %v2890 = vld [vmem:[%s2830 + $0x1d8] sm:$0xff]
        %v2891 = vld [vmem:[%s2830 + $0x1e0] sm:$0xff]
        %v2892 = vld [vmem:[%s2830 + $0x1e8] sm:$0xff]
        %v2893 = vld [vmem:[%s2830 + $0x1f0] sm:$0xff]
        %v2894 = vld [vmem:[%s2830 + $0x1f8] sm:$0xff]
        %s2895 = scalar_lea.vmem [#allocation7], 12
        %v2896 = vld [vmem:[%s2895] sm:$0x3]
        %v2898 = vlaneseq
        %v2899 = vshrl.u32 %v2898, 7
        %v2900 = vsub.s32 0, %v2899
        %v2901 = vrot.slane %v2896, %v2900
        %v2902 = vlaneseq
        %v2903 = vshrl.u32 %v2902, 7
        %v2904 = vsub.s32 1, %v2903
        %v2905 = vrot.slane %v2896, %v2904
        %2908 = vmatprep.subr.mxu0 %v2832
        %2909 = vmatpush1.msra.mxu0 %v2831
        %2910 = vmatprep.subr.mxu0 %v2834
        %2911 = vmatpush1.msra.mxu0 %v2833
        %2912 = vmatprep.subr.mxu0 %v2836
        %2913 = vmatpush1.msra.mxu0 %v2835
        %2914 = vmatprep.subr.mxu0 %v2838
        %2915 = vmatpush1.msra.mxu0 %v2837
        %2916 = vmatprep.subr.mxu0 %v2840
        %2917 = vmatpush1.msra.mxu0 %v2839
        %2918 = vmatprep.subr.mxu0 %v2842
        %2919 = vmatpush1.msra.mxu0 %v2841
        %2920 = vmatprep.subr.mxu0 %v2844
        %2921 = vmatpush1.msra.mxu0 %v2843
        %2922 = vmatprep.subr.mxu0 %v2846
        %2923 = vmatpush1.msra.mxu0 %v2845
        %2924 = vmatprep.subr.mxu0 %v2848
        %2925 = vmatpush1.msra.mxu0 %v2847
        %2926 = vmatprep.subr.mxu0 %v2850
        %2927 = vmatpush1.msra.mxu0 %v2849
        %2928 = vmatprep.subr.mxu0 %v2852
        %2929 = vmatpush1.msra.mxu0 %v2851
        %2930 = vmatprep.subr.mxu0 %v2854
        %2931 = vmatpush1.msra.mxu0 %v2853
        %2932 = vmatprep.subr.mxu0 %v2856
        %2933 = vmatpush1.msra.mxu0 %v2855
        %2934 = vmatprep.subr.mxu0 %v2858
        %2935 = vmatpush1.msra.mxu0 %v2857
        %2936 = vmatprep.subr.mxu0 %v2860
        %2937 = vmatpush1.msra.mxu0 %v2859
        %2938 = vmatprep.subr.mxu0 %v2862
        %2939 = vmatpush1.msra.mxu0 %v2861
        %2940 = vmatprep.subr.mxu0 %v2864
        %2941 = vmatpush1.msra.mxu0 %v2863
        %2942 = vmatprep.subr.mxu0 %v2866
        %2943 = vmatpush1.msra.mxu0 %v2865
        %2944 = vmatprep.subr.mxu0 %v2868
        %2945 = vmatpush1.msra.mxu0 %v2867
        %2946 = vmatprep.subr.mxu0 %v2870
        %2947 = vmatpush1.msra.mxu0 %v2869
        %2948 = vmatprep.subr.mxu0 %v2872
        %2949 = vmatpush1.msra.mxu0 %v2871
        %2950 = vmatprep.subr.mxu0 %v2874
        %2951 = vmatpush1.msra.mxu0 %v2873
        %2952 = vmatprep.subr.mxu0 %v2876
        %2953 = vmatpush1.msra.mxu0 %v2875
        %2954 = vmatprep.subr.mxu0 %v2878
        %2955 = vmatpush1.msra.mxu0 %v2877
        %2956 = vmatprep.subr.mxu0 %v2880
        %2957 = vmatpush1.msra.mxu0 %v2879
        %2958 = vmatprep.subr.mxu0 %v2882
        %2959 = vmatpush1.msra.mxu0 %v2881
        %2960 = vmatprep.subr.mxu0 %v2884
        %2961 = vmatpush1.msra.mxu0 %v2883
        %2962 = vmatprep.subr.mxu0 %v2886
        %2963 = vmatpush1.msra.mxu0 %v2885
        %2964 = vmatprep.subr.mxu0 %v2888
        %2965 = vmatpush1.msra.mxu0 %v2887
        %2966 = vmatprep.subr.mxu0 %v2890
        %2967 = vmatpush1.msra.mxu0 %v2889
        %2968 = vmatprep.subr.mxu0 %v2892
        %2969 = vmatpush1.msra.mxu0 %v2891
        %2970 = vmatprep.subr.mxu0 %v2894
        %2971 = vmatpush1.msra.mxu0 %v2893
        %2972 = vmatprep.mubr.f32.mxu0 %v2799
        %2973 = vmatmul.mubr.f32.gmra.mrb[0].mxu0 %v2798
        %v2974 = vpop.f32.mrb[0].mxu0
        %v2975 = vadd.f32 %v2901, %v2974
        %v2976 = vpop.f32.mrb[0].mxu0
        %v2977 = vadd.f32 %v2905, %v2976
        %2978 = vmatprep.mubr.f32.mxu0 %v2801
        %2979 = vmatmul.mubr.f32.gmra.mrb[0].mxu0 %v2800
        %v2980 = vpop.f32.mrb[0].mxu0
        %v2981 = vadd.f32 %v2901, %v2980
        %v2982 = vpop.f32.mrb[0].mxu0
        %v2983 = vadd.f32 %v2905, %v2982
        %2984 = vmatprep.mubr.f32.mxu0 %v2803
        %2985 = vmatmul.mubr.f32.gmra.mrb[0].mxu0 %v2802
        %v2986 = vpop.f32.mrb[0].mxu0
        %v2987 = vadd.f32 %v2901, %v2986
        %v2988 = vpop.f32.mrb[0].mxu0
        %v2989 = vadd.f32 %v2905, %v2988
        %2990 = vmatprep.mubr.f32.mxu0 %v2805
        %2991 = vmatmul.mubr.f32.gmra.mrb[0].mxu0 %v2804
        %v2992 = vpop.f32.mrb[0].mxu0
        %v2993 = vadd.f32 %v2901, %v2992
        %v2994 = vpop.f32.mrb[0].mxu0
        %v2995 = vadd.f32 %v2905, %v2994
        %2996 = vmatprep.mubr.f32.mxu0 %v2807
        %2997 = vmatmul.mubr.f32.gmra.mrb[0].mxu0 %v2806
        %v2998 = vpop.f32.mrb[0].mxu0
        %v2999 = vadd.f32 %v2901, %v2998
        %v3000 = vpop.f32.mrb[0].mxu0
        %v3001 = vadd.f32 %v2905, %v3000
        %3002 = vmatprep.mubr.f32.mxu0 %v2809
        %3003 = vmatmul.mubr.f32.gmra.mrb[0].mxu0 %v2808
        %v3004 = vpop.f32.mrb[0].mxu0
        %v3005 = vadd.f32 %v2901, %v3004
        %v3006 = vpop.f32.mrb[0].mxu0
        %v3007 = vadd.f32 %v2905, %v3006
        %3008 = vmatprep.mubr.f32.mxu0 %v2811
        %3009 = vmatmul.mubr.f32.gmra.mrb[0].mxu0 %v2810
        %v3010 = vpop.f32.mrb[0].mxu0
        %v3011 = vadd.f32 %v2901, %v3010
        %v3012 = vpop.f32.mrb[0].mxu0
        %v3013 = vadd.f32 %v2905, %v3012
        %3014 = vmatprep.mubr.f32.mxu0 %v2813
        %3015 = vmatmul.mubr.f32.gmra.mrb[0].mxu0 %v2812
        %v3016 = vpop.f32.mrb[0].mxu0
        %v3017 = vadd.f32 %v2901, %v3016
        %v3018 = vpop.f32.mrb[0].mxu0
        %v3019 = vadd.f32 %v2905, %v3018
        %3020 = vmatprep.mubr.f32.mxu0 %v2815
        %3021 = vmatmul.mubr.f32.gmra.mrb[0].mxu0 %v2814
        %v3022 = vpop.f32.mrb[0].mxu0
        %v3023 = vadd.f32 %v2901, %v3022
        %v3024 = vpop.f32.mrb[0].mxu0
        %v3025 = vadd.f32 %v2905, %v3024
        %3026 = vmatprep.mubr.f32.mxu0 %v2817
        %3027 = vmatmul.mubr.f32.gmra.mrb[0].mxu0 %v2816
        %v3028 = vpop.f32.mrb[0].mxu0
        %v3029 = vadd.f32 %v2901, %v3028
        %v3030 = vpop.f32.mrb[0].mxu0
        %v3031 = vadd.f32 %v2905, %v3030
        %3032 = vmatprep.mubr.f32.mxu0 %v2819
        %3033 = vmatmul.mubr.f32.gmra.mrb[0].mxu0 %v2818
        %v3034 = vpop.f32.mrb[0].mxu0
        %v3035 = vadd.f32 %v2901, %v3034
        %v3036 = vpop.f32.mrb[0].mxu0
        %v3037 = vadd.f32 %v2905, %v3036
        %3038 = vmatprep.mubr.f32.mxu0 %v2821
        %3039 = vmatmul.mubr.f32.gmra.mrb[0].mxu0 %v2820
        %v3040 = vpop.f32.mrb[0].mxu0
        %v3041 = vadd.f32 %v2901, %v3040
        %v3042 = vpop.f32.mrb[0].mxu0
        %v3043 = vadd.f32 %v2905, %v3042
        %3044 = vmatprep.mubr.f32.mxu0 %v2823
        %3045 = vmatmul.mubr.f32.gmra.mrb[0].mxu0 %v2822
        %v3046 = vpop.f32.mrb[0].mxu0
        %v3047 = vadd.f32 %v2901, %v3046
        %v3048 = vpop.f32.mrb[0].mxu0
        %v3049 = vadd.f32 %v2905, %v3048
        %3050 = vmatprep.mubr.f32.mxu0 %v2825
        %3051 = vmatmul.mubr.f32.gmra.mrb[0].mxu0 %v2824
        %v3052 = vpop.f32.mrb[0].mxu0
        %v3053 = vadd.f32 %v2901, %v3052
        %v3054 = vpop.f32.mrb[0].mxu0
        %v3055 = vadd.f32 %v2905, %v3054
        %3056 = vmatprep.mubr.f32.mxu0 %v2827
        %3057 = vmatmul.mubr.f32.gmra.mrb[0].mxu0 %v2826
        %v3058 = vpop.f32.mrb[0].mxu0
        %v3059 = vadd.f32 %v2901, %v3058
        %v3060 = vpop.f32.mrb[0].mxu0
        %v3061 = vadd.f32 %v2905, %v3060
        %3062 = vmatprep.mubr.f32.mxu0 %v2829
        %3063 = vmatmul.mubr.f32.gmra.mrb[0].mxu0 %v2828
        %v3064 = vpop.f32.mrb[0].mxu0
        %v3065 = vadd.f32 %v2901, %v3064
        %v3066 = vpop.f32.mrb[0].mxu0
        %v3067 = vadd.f32 %v2905, %v3066
        %3068 = vdwg.mxu0
        %v3069 = vmax.f32 %v2975, 0.0
        %v3070 = vmax.f32 %v2977, 0.0
        %v3071 = vmax.f32 %v2981, 0.0
        %v3072 = vmax.f32 %v2983, 0.0
        %v3073 = vmax.f32 %v2987, 0.0
        %v3074 = vmax.f32 %v2989, 0.0
        %v3075 = vmax.f32 %v2993, 0.0
        %v3076 = vmax.f32 %v2995, 0.0
        %v3077 = vmax.f32 %v2999, 0.0
        %v3078 = vmax.f32 %v3001, 0.0
        %v3079 = vmax.f32 %v3005, 0.0
        %v3080 = vmax.f32 %v3007, 0.0
        %v3081 = vmax.f32 %v3011, 0.0
        %v3082 = vmax.f32 %v3013, 0.0
        %v3083 = vmax.f32 %v3017, 0.0
        %v3084 = vmax.f32 %v3019, 0.0
        %v3085 = vmax.f32 %v3023, 0.0
        %v3086 = vmax.f32 %v3025, 0.0
        %v3087 = vmax.f32 %v3029, 0.0
        %v3088 = vmax.f32 %v3031, 0.0
        %v3089 = vmax.f32 %v3035, 0.0
        %v3090 = vmax.f32 %v3037, 0.0
        %v3091 = vmax.f32 %v3041, 0.0
        %v3092 = vmax.f32 %v3043, 0.0
        %v3093 = vmax.f32 %v3047, 0.0
        %v3094 = vmax.f32 %v3049, 0.0
        %v3095 = vmax.f32 %v3053, 0.0
        %v3096 = vmax.f32 %v3055, 0.0
        %v3097 = vmax.f32 %v3059, 0.0
        %v3098 = vmax.f32 %v3061, 0.0
        %v3099 = vmax.f32 %v3065, 0.0
        %v3100 = vmax.f32 %v3067, 0.0
        %v3101 = vld [vmem:[#allocation10] sm:$0xff]
        %v3102 = vld [vmem:[#allocation12] sm:$0x1]
        %v3104 = vlaneseq
        %v3105 = vshrl.u32 %v3104, 7
        %v3106 = vsub.s32 0, %v3105
        %v3107 = vrot.slane %v3101, %v3106
        %v3108 = vlaneseq
        %v3109 = vshrl.u32 %v3108, 7
        %v3110 = vsub.s32 4, %v3109
        %v3111 = vrot.slane %v3101, %v3110
        %v3114 = vlaneseq
        %v3115 = vshrl.u32 %v3114, 7
        %v3116 = vsub.s32 0, %v3115
        %v3117 = vrot.slane %v3107, %v3116
        %v3118 = vlaneseq
        %v3119 = vshrl.u32 %v3118, 7
        %v3120 = vsub.s32 0, %v3119
        %v3121 = vrot.slane %v3111, %v3120
        %v3122 = vmul.f32 %v3069, %v3117
        %v3123 = vmul.f32 %v3070, %v3121
        %v3124 = vmul.f32 %v3071, %v3117
        %v3125 = vmul.f32 %v3072, %v3121
        %v3126 = vmul.f32 %v3073, %v3117
        %v3127 = vmul.f32 %v3074, %v3121
        %v3128 = vmul.f32 %v3075, %v3117
        %v3129 = vmul.f32 %v3076, %v3121
        %v3130 = vmul.f32 %v3077, %v3117
        %v3131 = vmul.f32 %v3078, %v3121
        %v3132 = vmul.f32 %v3079, %v3117
        %v3133 = vmul.f32 %v3080, %v3121
        %v3134 = vmul.f32 %v3081, %v3117
        %v3135 = vmul.f32 %v3082, %v3121
        %v3136 = vmul.f32 %v3083, %v3117
        %v3137 = vmul.f32 %v3084, %v3121
        %v3138 = vmul.f32 %v3085, %v3117
        %v3139 = vmul.f32 %v3086, %v3121
        %v3140 = vmul.f32 %v3087, %v3117
        %v3141 = vmul.f32 %v3088, %v3121
        %v3142 = vmul.f32 %v3089, %v3117
        %v3143 = vmul.f32 %v3090, %v3121
        %v3144 = vmul.f32 %v3091, %v3117
        %v3145 = vmul.f32 %v3092, %v3121
        %v3146 = vmul.f32 %v3093, %v3117
        %v3147 = vmul.f32 %v3094, %v3121
        %v3148 = vmul.f32 %v3095, %v3117
        %v3149 = vmul.f32 %v3096, %v3121
        %v3150 = vmul.f32 %v3097, %v3117
        %v3151 = vmul.f32 %v3098, %v3121
        %v3152 = vmul.f32 %v3099, %v3117
        %v3153 = vmul.f32 %v3100, %v3121
        %v3154 = vadd.f32 %v3122, %v3123
        %3155 = vadd.xlane.f32.xlu0 %v3154
        %v3156 = vpop.xlane.xlu0 %3155
        %v3157 = vadd.f32 %v3124, %v3125
        %3158 = vadd.xlane.f32.xlu0 %v3157
        %v3159 = vpop.xlane.xlu0 %3158
        %v3160 = vadd.f32 %v3126, %v3127
        %3161 = vadd.xlane.f32.xlu0 %v3160
        %v3162 = vpop.xlane.xlu0 %3161
        %v3163 = vadd.f32 %v3128, %v3129
        %3164 = vadd.xlane.f32.xlu0 %v3163
        %v3165 = vpop.xlane.xlu0 %3164
        %v3166 = vadd.f32 %v3130, %v3131
        %3167 = vadd.xlane.f32.xlu0 %v3166
        %v3168 = vpop.xlane.xlu0 %3167
        %v3169 = vadd.f32 %v3132, %v3133
        %3170 = vadd.xlane.f32.xlu0 %v3169
        %v3171 = vpop.xlane.xlu0 %3170
        %v3172 = vadd.f32 %v3134, %v3135
        %3173 = vadd.xlane.f32.xlu0 %v3172
        %v3174 = vpop.xlane.xlu0 %3173
        %v3175 = vadd.f32 %v3136, %v3137
        %3176 = vadd.xlane.f32.xlu0 %v3175
        %v3177 = vpop.xlane.xlu0 %3176
        %v3178 = vadd.f32 %v3138, %v3139
        %3179 = vadd.xlane.f32.xlu0 %v3178
        %v3180 = vpop.xlane.xlu0 %3179
        %v3181 = vadd.f32 %v3140, %v3141
        %3182 = vadd.xlane.f32.xlu0 %v3181
        %v3183 = vpop.xlane.xlu0 %3182
        %v3184 = vadd.f32 %v3142, %v3143
        %3185 = vadd.xlane.f32.xlu0 %v3184
        %v3186 = vpop.xlane.xlu0 %3185
        %v3187 = vadd.f32 %v3144, %v3145
        %3188 = vadd.xlane.f32.xlu0 %v3187
        %v3189 = vpop.xlane.xlu0 %3188
        %v3190 = vadd.f32 %v3146, %v3147
        %3191 = vadd.xlane.f32.xlu0 %v3190
        %v3192 = vpop.xlane.xlu0 %3191
        %v3193 = vadd.f32 %v3148, %v3149
        %3194 = vadd.xlane.f32.xlu0 %v3193
        %v3195 = vpop.xlane.xlu0 %3194
        %v3196 = vadd.f32 %v3150, %v3151
        %3197 = vadd.xlane.f32.xlu0 %v3196
        %v3198 = vpop.xlane.xlu0 %3197
        %v3199 = vadd.f32 %v3152, %v3153
        %3200 = vadd.xlane.f32.xlu0 %v3199
        %v3201 = vpop.xlane.xlu0 %3200
        %v3203 = vlaneseq
        %v3204 = vshrl.u32 %v3203, 7
        %v3205 = vsub.s32 0, %v3204
        %v3206 = vrot.slane %v3102, %v3205
        %v3208 = vadd.f32 %v3156, %v3206
        %v3209 = vadd.f32 %v3159, %v3206
        %v3210 = vadd.f32 %v3162, %v3206
        %v3211 = vadd.f32 %v3165, %v3206
        %v3212 = vadd.f32 %v3168, %v3206
        %v3213 = vadd.f32 %v3171, %v3206
        %v3214 = vadd.f32 %v3174, %v3206
        %v3215 = vadd.f32 %v3177, %v3206
        %v3216 = vadd.f32 %v3180, %v3206
        %v3217 = vadd.f32 %v3183, %v3206
        %v3218 = vadd.f32 %v3186, %v3206
        %v3219 = vadd.f32 %v3189, %v3206
        %v3220 = vadd.f32 %v3192, %v3206
        %v3221 = vadd.f32 %v3195, %v3206
        %v3222 = vadd.f32 %v3198, %v3206
        %v3223 = vadd.f32 %v3201, %v3206
        %v3224 = vlaneseq
        %v3225 = vshrl.u32 %v3224, 7
        %v3226 = vsub.s32 1, %v3225
        %v3227 = vrot.slane %v3101, %v3226
        %v3228 = vlaneseq
        %v3229 = vshrl.u32 %v3228, 7
        %v3230 = vsub.s32 5, %v3229
        %v3231 = vrot.slane %v3101, %v3230
        %v3234 = vlaneseq
        %v3235 = vshrl.u32 %v3234, 7
        %v3236 = vsub.s32 1, %v3235
        %v3237 = vrot.slane %v3227, %v3236
        %v3238 = vlaneseq
        %v3239 = vshrl.u32 %v3238, 7
        %v3240 = vsub.s32 1, %v3239
        %v3241 = vrot.slane %v3231, %v3240
        %v3242 = vmul.f32 %v3069, %v3237
        %v3243 = vmul.f32 %v3070, %v3241
        %v3244 = vmul.f32 %v3071, %v3237
        %v3245 = vmul.f32 %v3072, %v3241
        %v3246 = vmul.f32 %v3073, %v3237
        %v3247 = vmul.f32 %v3074, %v3241
        %v3248 = vmul.f32 %v3075, %v3237
        %v3249 = vmul.f32 %v3076, %v3241
        %v3250 = vmul.f32 %v3077, %v3237
        %v3251 = vmul.f32 %v3078, %v3241
        %v3252 = vmul.f32 %v3079, %v3237
        %v3253 = vmul.f32 %v3080, %v3241
        %v3254 = vmul.f32 %v3081, %v3237
        %v3255 = vmul.f32 %v3082, %v3241
        %v3256 = vmul.f32 %v3083, %v3237
        %v3257 = vmul.f32 %v3084, %v3241
        %v3258 = vmul.f32 %v3085, %v3237
        %v3259 = vmul.f32 %v3086, %v3241
        %v3260 = vmul.f32 %v3087, %v3237
        %v3261 = vmul.f32 %v3088, %v3241
        %v3262 = vmul.f32 %v3089, %v3237
        %v3263 = vmul.f32 %v3090, %v3241
        %v3264 = vmul.f32 %v3091, %v3237
        %v3265 = vmul.f32 %v3092, %v3241
        %v3266 = vmul.f32 %v3093, %v3237
        %v3267 = vmul.f32 %v3094, %v3241
        %v3268 = vmul.f32 %v3095, %v3237
        %v3269 = vmul.f32 %v3096, %v3241
        %v3270 = vmul.f32 %v3097, %v3237
        %v3271 = vmul.f32 %v3098, %v3241
        %v3272 = vmul.f32 %v3099, %v3237
        %v3273 = vmul.f32 %v3100, %v3241
        %v3274 = vadd.f32 %v3242, %v3243
        %3275 = vadd.xlane.f32.xlu0 %v3274
        %v3276 = vpop.xlane.xlu0 %3275
        %v3277 = vadd.f32 %v3244, %v3245
        %3278 = vadd.xlane.f32.xlu0 %v3277
        %v3279 = vpop.xlane.xlu0 %3278
        %v3280 = vadd.f32 %v3246, %v3247
        %3281 = vadd.xlane.f32.xlu0 %v3280
        %v3282 = vpop.xlane.xlu0 %3281
        %v3283 = vadd.f32 %v3248, %v3249
        %3284 = vadd.xlane.f32.xlu0 %v3283
        %v3285 = vpop.xlane.xlu0 %3284
        %v3286 = vadd.f32 %v3250, %v3251
        %3287 = vadd.xlane.f32.xlu0 %v3286
        %v3288 = vpop.xlane.xlu0 %3287
        %v3289 = vadd.f32 %v3252, %v3253
        %3290 = vadd.xlane.f32.xlu0 %v3289
        %v3291 = vpop.xlane.xlu0 %3290
        %v3292 = vadd.f32 %v3254, %v3255
        %3293 = vadd.xlane.f32.xlu0 %v3292
        %v3294 = vpop.xlane.xlu0 %3293
        %v3295 = vadd.f32 %v3256, %v3257
        %3296 = vadd.xlane.f32.xlu0 %v3295
        %v3297 = vpop.xlane.xlu0 %3296
        %v3298 = vadd.f32 %v3258, %v3259
        %3299 = vadd.xlane.f32.xlu0 %v3298
        %v3300 = vpop.xlane.xlu0 %3299
        %v3301 = vadd.f32 %v3260, %v3261
        %3302 = vadd.xlane.f32.xlu0 %v3301
        %v3303 = vpop.xlane.xlu0 %3302
        %v3304 = vadd.f32 %v3262, %v3263
        %3305 = vadd.xlane.f32.xlu0 %v3304
        %v3306 = vpop.xlane.xlu0 %3305
        %v3307 = vadd.f32 %v3264, %v3265
        %3308 = vadd.xlane.f32.xlu0 %v3307
        %v3309 = vpop.xlane.xlu0 %3308
        %v3310 = vadd.f32 %v3266, %v3267
        %3311 = vadd.xlane.f32.xlu0 %v3310
        %v3312 = vpop.xlane.xlu0 %3311
        %v3313 = vadd.f32 %v3268, %v3269
        %3314 = vadd.xlane.f32.xlu0 %v3313
        %v3315 = vpop.xlane.xlu0 %3314
        %v3316 = vadd.f32 %v3270, %v3271
        %3317 = vadd.xlane.f32.xlu0 %v3316
        %v3318 = vpop.xlane.xlu0 %3317
        %v3319 = vadd.f32 %v3272, %v3273
        %3320 = vadd.xlane.f32.xlu0 %v3319
        %v3321 = vpop.xlane.xlu0 %3320
        %v3322 = vadd.f32 %v3276, %v3206
        %v3323 = vadd.f32 %v3279, %v3206
        %v3324 = vadd.f32 %v3282, %v3206
        %v3325 = vadd.f32 %v3285, %v3206
        %v3326 = vadd.f32 %v3288, %v3206
        %v3327 = vadd.f32 %v3291, %v3206
        %v3328 = vadd.f32 %v3294, %v3206
        %v3329 = vadd.f32 %v3297, %v3206
        %v3330 = vadd.f32 %v3300, %v3206
        %v3331 = vadd.f32 %v3303, %v3206
        %v3332 = vadd.f32 %v3306, %v3206
        %v3333 = vadd.f32 %v3309, %v3206
        %v3334 = vadd.f32 %v3312, %v3206
        %v3335 = vadd.f32 %v3315, %v3206
        %v3336 = vadd.f32 %v3318, %v3206
        %v3337 = vadd.f32 %v3321, %v3206
        %v3338 = vlaneseq
        %v3339 = vshrl.u32 %v3338, 7
        %v3340 = vsub.s32 2, %v3339
        %v3341 = vrot.slane %v3101, %v3340
        %v3342 = vlaneseq
        %v3343 = vshrl.u32 %v3342, 7
        %v3344 = vsub.s32 6, %v3343
        %v3345 = vrot.slane %v3101, %v3344
        %v3348 = vlaneseq
        %v3349 = vshrl.u32 %v3348, 7
        %v3350 = vsub.s32 2, %v3349
        %v3351 = vrot.slane %v3341, %v3350
        %v3352 = vlaneseq
        %v3353 = vshrl.u32 %v3352, 7
        %v3354 = vsub.s32 2, %v3353
        %v3355 = vrot.slane %v3345, %v3354
        %v3356 = vmul.f32 %v3069, %v3351
        %v3357 = vmul.f32 %v3070, %v3355
        %v3358 = vmul.f32 %v3071, %v3351
        %v3359 = vmul.f32 %v3072, %v3355
        %v3360 = vmul.f32 %v3073, %v3351
        %v3361 = vmul.f32 %v3074, %v3355
        %v3362 = vmul.f32 %v3075, %v3351
        %v3363 = vmul.f32 %v3076, %v3355
        %v3364 = vmul.f32 %v3077, %v3351
        %v3365 = vmul.f32 %v3078, %v3355
        %v3366 = vmul.f32 %v3079, %v3351
        %v3367 = vmul.f32 %v3080, %v3355
        %v3368 = vmul.f32 %v3081, %v3351
        %v3369 = vmul.f32 %v3082, %v3355
        %v3370 = vmul.f32 %v3083, %v3351
        %v3371 = vmul.f32 %v3084, %v3355
        %v3372 = vmul.f32 %v3085, %v3351
        %v3373 = vmul.f32 %v3086, %v3355
        %v3374 = vmul.f32 %v3087, %v3351
        %v3375 = vmul.f32 %v3088, %v3355
        %v3376 = vmul.f32 %v3089, %v3351
        %v3377 = vmul.f32 %v3090, %v3355
        %v3378 = vmul.f32 %v3091, %v3351
        %v3379 = vmul.f32 %v3092, %v3355
        %v3380 = vmul.f32 %v3093, %v3351
        %v3381 = vmul.f32 %v3094, %v3355
        %v3382 = vmul.f32 %v3095, %v3351
        %v3383 = vmul.f32 %v3096, %v3355
        %v3384 = vmul.f32 %v3097, %v3351
        %v3385 = vmul.f32 %v3098, %v3355
        %v3386 = vmul.f32 %v3099, %v3351
        %v3387 = vmul.f32 %v3100, %v3355
        %v3388 = vadd.f32 %v3356, %v3357
        %3389 = vadd.xlane.f32.xlu0 %v3388
        %v3390 = vpop.xlane.xlu0 %3389
        %v3391 = vadd.f32 %v3358, %v3359
        %3392 = vadd.xlane.f32.xlu0 %v3391
        %v3393 = vpop.xlane.xlu0 %3392
        %v3394 = vadd.f32 %v3360, %v3361
        %3395 = vadd.xlane.f32.xlu0 %v3394
        %v3396 = vpop.xlane.xlu0 %3395
        %v3397 = vadd.f32 %v3362, %v3363
        %3398 = vadd.xlane.f32.xlu0 %v3397
        %v3399 = vpop.xlane.xlu0 %3398
        %v3400 = vadd.f32 %v3364, %v3365
        %3401 = vadd.xlane.f32.xlu0 %v3400
        %v3402 = vpop.xlane.xlu0 %3401
        %v3403 = vadd.f32 %v3366, %v3367
        %3404 = vadd.xlane.f32.xlu0 %v3403
        %v3405 = vpop.xlane.xlu0 %3404
        %v3406 = vadd.f32 %v3368, %v3369
        %3407 = vadd.xlane.f32.xlu0 %v3406
        %v3408 = vpop.xlane.xlu0 %3407
        %v3409 = vadd.f32 %v3370, %v3371
        %3410 = vadd.xlane.f32.xlu0 %v3409
        %v3411 = vpop.xlane.xlu0 %3410
        %v3412 = vadd.f32 %v3372, %v3373
        %3413 = vadd.xlane.f32.xlu0 %v3412
        %v3414 = vpop.xlane.xlu0 %3413
        %v3415 = vadd.f32 %v3374, %v3375
        %3416 = vadd.xlane.f32.xlu0 %v3415
        %v3417 = vpop.xlane.xlu0 %3416
        %v3418 = vadd.f32 %v3376, %v3377
        %3419 = vadd.xlane.f32.xlu0 %v3418
        %v3420 = vpop.xlane.xlu0 %3419
        %v3421 = vadd.f32 %v3378, %v3379
        %3422 = vadd.xlane.f32.xlu0 %v3421
        %v3423 = vpop.xlane.xlu0 %3422
        %v3424 = vadd.f32 %v3380, %v3381
        %3425 = vadd.xlane.f32.xlu0 %v3424
        %v3426 = vpop.xlane.xlu0 %3425
        %v3427 = vadd.f32 %v3382, %v3383
        %3428 = vadd.xlane.f32.xlu0 %v3427
        %v3429 = vpop.xlane.xlu0 %3428
        %v3430 = vadd.f32 %v3384, %v3385
        %3431 = vadd.xlane.f32.xlu0 %v3430
        %v3432 = vpop.xlane.xlu0 %3431
        %v3433 = vadd.f32 %v3386, %v3387
        %3434 = vadd.xlane.f32.xlu0 %v3433
        %v3435 = vpop.xlane.xlu0 %3434
        %v3436 = vadd.f32 %v3390, %v3206
        %v3437 = vadd.f32 %v3393, %v3206
        %v3438 = vadd.f32 %v3396, %v3206
        %v3439 = vadd.f32 %v3399, %v3206
        %v3440 = vadd.f32 %v3402, %v3206
        %v3441 = vadd.f32 %v3405, %v3206
        %v3442 = vadd.f32 %v3408, %v3206
        %v3443 = vadd.f32 %v3411, %v3206
        %v3444 = vadd.f32 %v3414, %v3206
        %v3445 = vadd.f32 %v3417, %v3206
        %v3446 = vadd.f32 %v3420, %v3206
        %v3447 = vadd.f32 %v3423, %v3206
        %v3448 = vadd.f32 %v3426, %v3206
        %v3449 = vadd.f32 %v3429, %v3206
        %v3450 = vadd.f32 %v3432, %v3206
        %v3451 = vadd.f32 %v3435, %v3206
        %vm3452 = vcmask 7168
        %v3453 = vsel %vm3452, %v3208, %v3322
        %v3454 = vsel %vm3452, %v3209, %v3323
        %v3455 = vsel %vm3452, %v3210, %v3324
        %v3456 = vsel %vm3452, %v3211, %v3325
        %v3457 = vsel %vm3452, %v3212, %v3326
        %v3458 = vsel %vm3452, %v3213, %v3327
        %v3459 = vsel %vm3452, %v3214, %v3328
        %v3460 = vsel %vm3452, %v3215, %v3329
        %v3461 = vsel %vm3452, %v3216, %v3330
        %v3462 = vsel %vm3452, %v3217, %v3331
        %v3463 = vsel %vm3452, %v3218, %v3332
        %v3464 = vsel %vm3452, %v3219, %v3333
        %v3465 = vsel %vm3452, %v3220, %v3334
        %v3466 = vsel %vm3452, %v3221, %v3335
        %v3467 = vsel %vm3452, %v3222, %v3336
        %v3468 = vsel %vm3452, %v3223, %v3337
        %vm3469 = vcmask 15360
        %v3470 = vsel %vm3469, %v3453, %v3436
        %v3471 = vsel %vm3469, %v3454, %v3437
        %v3472 = vsel %vm3469, %v3455, %v3438
        %v3473 = vsel %vm3469, %v3456, %v3439
        %v3474 = vsel %vm3469, %v3457, %v3440
        %v3475 = vsel %vm3469, %v3458, %v3441
        %v3476 = vsel %vm3469, %v3459, %v3442
        %v3477 = vsel %vm3469, %v3460, %v3443
        %v3478 = vsel %vm3469, %v3461, %v3444
        %v3479 = vsel %vm3469, %v3462, %v3445
        %v3480 = vsel %vm3469, %v3463, %v3446
        %v3481 = vsel %vm3469, %v3464, %v3447
        %v3482 = vsel %vm3469, %v3465, %v3448
        %v3483 = vsel %vm3469, %v3466, %v3449
        %v3484 = vsel %vm3469, %v3467, %v3450
        %v3485 = vsel %vm3469, %v3468, %v3451
        %v3486 = vxor.u32 %v3470, 2147483648
        %v3487 = vxor.u32 %v3471, 2147483648
        %v3488 = vxor.u32 %v3472, 2147483648
        %v3489 = vxor.u32 %v3473, 2147483648
        %v3490 = vxor.u32 %v3474, 2147483648
        %v3491 = vxor.u32 %v3475, 2147483648
        %v3492 = vxor.u32 %v3476, 2147483648
        %v3493 = vxor.u32 %v3477, 2147483648
        %v3494 = vxor.u32 %v3478, 2147483648
        %v3495 = vxor.u32 %v3479, 2147483648
        %v3496 = vxor.u32 %v3480, 2147483648
        %v3497 = vxor.u32 %v3481, 2147483648
        %v3498 = vxor.u32 %v3482, 2147483648
        %v3499 = vxor.u32 %v3483, 2147483648
        %v3500 = vxor.u32 %v3484, 2147483648
        %v3501 = vxor.u32 %v3485, 2147483648
        %v3502 = vmul.f32 %v3486, 1.442695
        %v3503 = vpow.pop %v3502
        %v3504 = vmul.f32 %v3487, 1.442695
        %v3505 = vpow.pop %v3504
        %v3506 = vmul.f32 %v3488, 1.442695
        %v3507 = vpow.pop %v3506
        %v3508 = vmul.f32 %v3489, 1.442695
        %v3509 = vpow.pop %v3508
        %v3510 = vmul.f32 %v3490, 1.442695
        %v3511 = vpow.pop %v3510
        %v3512 = vmul.f32 %v3491, 1.442695
        %v3513 = vpow.pop %v3512
        %v3514 = vmul.f32 %v3492, 1.442695
        %v3515 = vpow.pop %v3514
        %v3516 = vmul.f32 %v3493, 1.442695
        %v3517 = vpow.pop %v3516
        %v3518 = vmul.f32 %v3494, 1.442695
        %v3519 = vpow.pop %v3518
        %v3520 = vmul.f32 %v3495, 1.442695
        %v3521 = vpow.pop %v3520
        %v3522 = vmul.f32 %v3496, 1.442695
        %v3523 = vpow.pop %v3522
        %v3524 = vmul.f32 %v3497, 1.442695
        %v3525 = vpow.pop %v3524
        %v3526 = vmul.f32 %v3498, 1.442695
        %v3527 = vpow.pop %v3526
        %v3528 = vmul.f32 %v3499, 1.442695
        %v3529 = vpow.pop %v3528
        %v3530 = vmul.f32 %v3500, 1.442695
        %v3531 = vpow.pop %v3530
        %v3532 = vmul.f32 %v3501, 1.442695
        %v3533 = vpow.pop %v3532
        %v3534 = vadd.f32 %v3503, 1.0
        %v3535 = vadd.f32 %v3505, 1.0
        %v3536 = vadd.f32 %v3507, 1.0
        %v3537 = vadd.f32 %v3509, 1.0
        %v3538 = vadd.f32 %v3511, 1.0
        %v3539 = vadd.f32 %v3513, 1.0
        %v3540 = vadd.f32 %v3515, 1.0
        %v3541 = vadd.f32 %v3517, 1.0
        %v3542 = vadd.f32 %v3519, 1.0
        %v3543 = vadd.f32 %v3521, 1.0
        %v3544 = vadd.f32 %v3523, 1.0
        %v3545 = vadd.f32 %v3525, 1.0
        %v3546 = vadd.f32 %v3527, 1.0
        %v3547 = vadd.f32 %v3529, 1.0
        %v3548 = vadd.f32 %v3531, 1.0
        %v3549 = vadd.f32 %v3533, 1.0
        %v3550 = vrcp.pop %v3534
        %v3551 = vmul.f32 1.0, %v3550
        %v3552 = vrcp.pop %v3535
        %v3553 = vmul.f32 1.0, %v3552
        %v3554 = vrcp.pop %v3536
        %v3555 = vmul.f32 1.0, %v3554
        %v3556 = vrcp.pop %v3537
        %v3557 = vmul.f32 1.0, %v3556
        %v3558 = vrcp.pop %v3538
        %v3559 = vmul.f32 1.0, %v3558
        %v3560 = vrcp.pop %v3539
        %v3561 = vmul.f32 1.0, %v3560
        %v3562 = vrcp.pop %v3540
        %v3563 = vmul.f32 1.0, %v3562
        %v3564 = vrcp.pop %v3541
        %v3565 = vmul.f32 1.0, %v3564
        %v3566 = vrcp.pop %v3542
        %v3567 = vmul.f32 1.0, %v3566
        %v3568 = vrcp.pop %v3543
        %v3569 = vmul.f32 1.0, %v3568
        %v3570 = vrcp.pop %v3544
        %v3571 = vmul.f32 1.0, %v3570
        %v3572 = vrcp.pop %v3545
        %v3573 = vmul.f32 1.0, %v3572
        %v3574 = vrcp.pop %v3546
        %v3575 = vmul.f32 1.0, %v3574
        %v3576 = vrcp.pop %v3547
        %v3577 = vmul.f32 1.0, %v3576
        %v3578 = vrcp.pop %v3548
        %v3579 = vmul.f32 1.0, %v3578
        %v3580 = vrcp.pop %v3549
        %v3581 = vmul.f32 1.0, %v3580
        %vm3582 = vcmask 23552
        %3583 = vst.msk [vmem:[%s440] sm:$0xff] %vm3582, %v3551
        %3584 = vst.msk [vmem:[%s440 + $0x8] sm:$0xff] %vm3582, %v3553
        %3585 = vst.msk [vmem:[%s440 + $0x10] sm:$0xff] %vm3582, %v3555
        %3586 = vst.msk [vmem:[%s440 + $0x18] sm:$0xff] %vm3582, %v3557
        %3587 = vst.msk [vmem:[%s440 + $0x20] sm:$0xff] %vm3582, %v3559
        %3588 = vst.msk [vmem:[%s440 + $0x28] sm:$0xff] %vm3582, %v3561
        %3589 = vst.msk [vmem:[%s440 + $0x30] sm:$0xff] %vm3582, %v3563
        %3590 = vst.msk [vmem:[%s440 + $0x38] sm:$0xff] %vm3582, %v3565
        %3591 = vst.msk [vmem:[%s440 + $0x40] sm:$0xff] %vm3582, %v3567
        %3592 = vst.msk [vmem:[%s440 + $0x48] sm:$0xff] %vm3582, %v3569
        %3593 = vst.msk [vmem:[%s440 + $0x50] sm:$0xff] %vm3582, %v3571
        %3594 = vst.msk [vmem:[%s440 + $0x58] sm:$0xff] %vm3582, %v3573
        %3595 = vst.msk [vmem:[%s440 + $0x60] sm:$0xff] %vm3582, %v3575
        %3596 = vst.msk [vmem:[%s440 + $0x68] sm:$0xff] %vm3582, %v3577
        %3597 = vst.msk [vmem:[%s440 + $0x70] sm:$0xff] %vm3582, %v3579
        %3598 = vst.msk [vmem:[%s440 + $0x78] sm:$0xff] %vm3582, %v3581
        %v3599 = vlaneseq
        %v3600 = vshrl.u32 %v3599, 7
        %v3601 = vsub.s32 3, %v3600
        %v3602 = vrot.slane %v3101, %v3601
        %v3603 = vlaneseq
        %v3604 = vshrl.u32 %v3603, 7
        %v3605 = vsub.s32 7, %v3604
        %v3606 = vrot.slane %v3101, %v3605
        %v3609 = vlaneseq
        %v3610 = vshrl.u32 %v3609, 7
        %v3611 = vsub.s32 3, %v3610
        %v3612 = vrot.slane %v3602, %v3611
        %v3613 = vlaneseq
        %v3614 = vshrl.u32 %v3613, 7
        %v3615 = vsub.s32 3, %v3614
        %v3616 = vrot.slane %v3606, %v3615
        %v3617 = vmul.f32 %v3069, %v3612
        %v3618 = vmul.f32 %v3070, %v3616
        %v3619 = vmul.f32 %v3071, %v3612
        %v3620 = vmul.f32 %v3072, %v3616
        %v3621 = vmul.f32 %v3073, %v3612
        %v3622 = vmul.f32 %v3074, %v3616
        %v3623 = vmul.f32 %v3075, %v3612
        %v3624 = vmul.f32 %v3076, %v3616
        %v3625 = vmul.f32 %v3077, %v3612
        %v3626 = vmul.f32 %v3078, %v3616
        %v3627 = vmul.f32 %v3079, %v3612
        %v3628 = vmul.f32 %v3080, %v3616
        %v3629 = vmul.f32 %v3081, %v3612
        %v3630 = vmul.f32 %v3082, %v3616
        %v3631 = vmul.f32 %v3083, %v3612
        %v3632 = vmul.f32 %v3084, %v3616
        %v3633 = vmul.f32 %v3085, %v3612
        %v3634 = vmul.f32 %v3086, %v3616
        %v3635 = vmul.f32 %v3087, %v3612
        %v3636 = vmul.f32 %v3088, %v3616
        %v3637 = vmul.f32 %v3089, %v3612
        %v3638 = vmul.f32 %v3090, %v3616
        %v3639 = vmul.f32 %v3091, %v3612
        %v3640 = vmul.f32 %v3092, %v3616
        %v3641 = vmul.f32 %v3093, %v3612
        %v3642 = vmul.f32 %v3094, %v3616
        %v3643 = vmul.f32 %v3095, %v3612
        %v3644 = vmul.f32 %v3096, %v3616
        %v3645 = vmul.f32 %v3097, %v3612
        %v3646 = vmul.f32 %v3098, %v3616
        %v3647 = vmul.f32 %v3099, %v3612
        %v3648 = vmul.f32 %v3100, %v3616
        %v3649 = vadd.f32 %v3617, %v3618
        %3650 = vadd.xlane.f32.xlu0 %v3649
        %v3651 = vpop.xlane.xlu0 %3650
        %v3652 = vadd.f32 %v3619, %v3620
        %3653 = vadd.xlane.f32.xlu0 %v3652
        %v3654 = vpop.xlane.xlu0 %3653
        %v3655 = vadd.f32 %v3621, %v3622
        %3656 = vadd.xlane.f32.xlu0 %v3655
        %v3657 = vpop.xlane.xlu0 %3656
        %v3658 = vadd.f32 %v3623, %v3624
        %3659 = vadd.xlane.f32.xlu0 %v3658
        %v3660 = vpop.xlane.xlu0 %3659
        %v3661 = vadd.f32 %v3625, %v3626
        %3662 = vadd.xlane.f32.xlu0 %v3661
        %v3663 = vpop.xlane.xlu0 %3662
        %v3664 = vadd.f32 %v3627, %v3628
        %3665 = vadd.xlane.f32.xlu0 %v3664
        %v3666 = vpop.xlane.xlu0 %3665
        %v3667 = vadd.f32 %v3629, %v3630
        %3668 = vadd.xlane.f32.xlu0 %v3667
        %v3669 = vpop.xlane.xlu0 %3668
        %v3670 = vadd.f32 %v3631, %v3632
        %3671 = vadd.xlane.f32.xlu0 %v3670
        %v3672 = vpop.xlane.xlu0 %3671
        %v3673 = vadd.f32 %v3633, %v3634
        %3674 = vadd.xlane.f32.xlu0 %v3673
        %v3675 = vpop.xlane.xlu0 %3674
        %v3676 = vadd.f32 %v3635, %v3636
        %3677 = vadd.xlane.f32.xlu0 %v3676
        %v3678 = vpop.xlane.xlu0 %3677
        %v3679 = vadd.f32 %v3637, %v3638
        %3680 = vadd.xlane.f32.xlu0 %v3679
        %v3681 = vpop.xlane.xlu0 %3680
        %v3682 = vadd.f32 %v3639, %v3640
        %3683 = vadd.xlane.f32.xlu0 %v3682
        %v3684 = vpop.xlane.xlu0 %3683
        %v3685 = vadd.f32 %v3641, %v3642
        %3686 = vadd.xlane.f32.xlu0 %v3685
        %v3687 = vpop.xlane.xlu0 %3686
        %v3688 = vadd.f32 %v3643, %v3644
        %3689 = vadd.xlane.f32.xlu0 %v3688
        %v3690 = vpop.xlane.xlu0 %3689
        %v3691 = vadd.f32 %v3645, %v3646
        %3692 = vadd.xlane.f32.xlu0 %v3691
        %v3693 = vpop.xlane.xlu0 %3692
        %v3694 = vadd.f32 %v3647, %v3648
        %3695 = vadd.xlane.f32.xlu0 %v3694
        %v3696 = vpop.xlane.xlu0 %3695
        %v3697 = vadd.f32 %v3651, %v3206
        %v3698 = vadd.f32 %v3654, %v3206
        %v3699 = vadd.f32 %v3657, %v3206
        %v3700 = vadd.f32 %v3660, %v3206
        %v3701 = vadd.f32 %v3663, %v3206
        %v3702 = vadd.f32 %v3666, %v3206
        %v3703 = vadd.f32 %v3669, %v3206
        %v3704 = vadd.f32 %v3672, %v3206
        %v3705 = vadd.f32 %v3675, %v3206
        %v3706 = vadd.f32 %v3678, %v3206
        %v3707 = vadd.f32 %v3681, %v3206
        %v3708 = vadd.f32 %v3684, %v3206
        %v3709 = vadd.f32 %v3687, %v3206
        %v3710 = vadd.f32 %v3690, %v3206
        %v3711 = vadd.f32 %v3693, %v3206
        %v3712 = vadd.f32 %v3696, %v3206
        %3729 = vrot.lane.b32.xlu0 %v3697, 125
        %v3730 = vpop.permute.xlu0 %3729
        %3731 = vrot.lane.b32.xlu0 %v3698, 125
        %v3732 = vpop.permute.xlu0 %3731
        %3733 = vrot.lane.b32.xlu0 %v3699, 125
        %v3734 = vpop.permute.xlu0 %3733
        %3735 = vrot.lane.b32.xlu0 %v3700, 125
        %v3736 = vpop.permute.xlu0 %3735
        %3737 = vrot.lane.b32.xlu0 %v3701, 125
        %v3738 = vpop.permute.xlu0 %3737
        %3739 = vrot.lane.b32.xlu0 %v3702, 125
        %v3740 = vpop.permute.xlu0 %3739
        %3741 = vrot.lane.b32.xlu0 %v3703, 125
        %v3742 = vpop.permute.xlu0 %3741
        %3743 = vrot.lane.b32.xlu0 %v3704, 125
        %v3744 = vpop.permute.xlu0 %3743
        %3745 = vrot.lane.b32.xlu0 %v3705, 125
        %v3746 = vpop.permute.xlu0 %3745
        %3747 = vrot.lane.b32.xlu0 %v3706, 125
        %v3748 = vpop.permute.xlu0 %3747
        %3749 = vrot.lane.b32.xlu0 %v3707, 125
        %v3750 = vpop.permute.xlu0 %3749
        %3751 = vrot.lane.b32.xlu0 %v3708, 125
        %v3752 = vpop.permute.xlu0 %3751
        %3753 = vrot.lane.b32.xlu0 %v3709, 125
        %v3754 = vpop.permute.xlu0 %3753
        %3755 = vrot.lane.b32.xlu0 %v3710, 125
        %v3756 = vpop.permute.xlu0 %3755
        %3757 = vrot.lane.b32.xlu0 %v3711, 125
        %v3758 = vpop.permute.xlu0 %3757
        %3759 = vrot.lane.b32.xlu0 %v3712, 125
        %v3760 = vpop.permute.xlu0 %3759
        %3777 = vst.msk [vmem:[%s434] sm:$0xff] %vm3452, %v3730
        %3778 = vst.msk [vmem:[%s434 + $0x8] sm:$0xff] %vm3452, %v3732
        %3779 = vst.msk [vmem:[%s434 + $0x10] sm:$0xff] %vm3452, %v3734
        %3780 = vst.msk [vmem:[%s434 + $0x18] sm:$0xff] %vm3452, %v3736
        %3781 = vst.msk [vmem:[%s434 + $0x20] sm:$0xff] %vm3452, %v3738
        %3782 = vst.msk [vmem:[%s434 + $0x28] sm:$0xff] %vm3452, %v3740
        %3783 = vst.msk [vmem:[%s434 + $0x30] sm:$0xff] %vm3452, %v3742
        %3784 = vst.msk [vmem:[%s434 + $0x38] sm:$0xff] %vm3452, %v3744
        %3785 = vst.msk [vmem:[%s434 + $0x40] sm:$0xff] %vm3452, %v3746
        %3786 = vst.msk [vmem:[%s434 + $0x48] sm:$0xff] %vm3452, %v3748
        %3787 = vst.msk [vmem:[%s434 + $0x50] sm:$0xff] %vm3452, %v3750
        %3788 = vst.msk [vmem:[%s434 + $0x58] sm:$0xff] %vm3452, %v3752
        %3789 = vst.msk [vmem:[%s434 + $0x60] sm:$0xff] %vm3452, %v3754
        %3790 = vst.msk [vmem:[%s434 + $0x68] sm:$0xff] %vm3452, %v3756
        %3791 = vst.msk [vmem:[%s434 + $0x70] sm:$0xff] %vm3452, %v3758
        %3792 = vst.msk [vmem:[%s434 + $0x78] sm:$0xff] %vm3452, %v3760
        %s3793 = smul.u32 16, %s25
        %p3794 = scmp.lt.s32.totalorder %s3793, 63
        %s3795 = scalar_select %p3794, %s3793, 63
        %s3796 = smul.addr %s3795, 8
        %s3797 = scalar_lea.vmem %s8, %s3796
        %s3798 = smul.u32 16, %s25
        %p3799 = scmp.lt.s32.totalorder %s3798, 63
        %s3800 = scalar_select %p3799, %s3798, 63
        %s3801 = smul.addr %s3800, 8
        %s3802 = scalar_lea.vmem %s9, %s3801
        // Predicated region
        $region81: #{tpu_custom_call.1} parent=51 // pred_check
          %p3803 = pneg %p216
        $region82: #{tpu_custom_call.1} parent=51 // pred_check_branch
          %3805 = sbr.rel (%p3803) target = $region84
        $region83: #{tpu_custom_call.1} parent=51 // pred_region
          %s3806 = smul.u32 16, %s25
        $region84: #{tpu_custom_call.1} parent=51 // pred_fallthru
          _
        // Predicated region
        $region85: #{tpu_custom_call.1} parent=51 // pred_check
          %p3807 = pneg %p242
        $region86: #{tpu_custom_call.1} parent=51 // pred_check_branch
          %3809 = sbr.rel (%p3807) target = $region88
        $region87: #{tpu_custom_call.1} parent=51 // pred_region
          %s3810 = smul.u32 16, %s25
        $region88: #{tpu_custom_call.1} parent=51 // pred_fallthru
          _
      $region52: #{tpu_custom_call.1} parent=5 // pred_fallthru
        _
      %p3811 = scmp.le.s32.totalorder 2, %s20
      // Predicated region
      $region89: #{tpu_custom_call.1} parent=5 // pred_check
        %p3812 = pneg %p3811
      $region90: #{tpu_custom_call.1} parent=5 // pred_check_branch
        %3814 = sbr.rel (%p3812) target = $region92
      $region91: #{tpu_custom_call.1} parent=5 // pred_region
        %s3815 = ssub.s32 %s20, 2
        // Predicated region
        $region93: #{tpu_custom_call.1} parent=91 // pred_check
          %p3816 = pneg %p222
        $region94: #{tpu_custom_call.1} parent=91 // pred_check_branch
          %3818 = sbr.rel (%p3816) target = $region96
        $region95: #{tpu_custom_call.1} parent=91 // pred_region
          %s3819 = smul.u32 16, %s26
          %p3820 = scmp.lt.s32.totalorder %s3819, 63
          %s3821 = scalar_select %p3820, %s3819, 63
          %s3822 = smul.addr %s3821, 8
          %s3823 = scalar_lea.vmem %s8, %s3822
        $region96: #{tpu_custom_call.1} parent=91 // pred_fallthru
          _
        // Predicated region
        $region97: #{tpu_custom_call.1} parent=91 // pred_check
          %p3824 = pneg %p248
        $region98: #{tpu_custom_call.1} parent=91 // pred_check_branch
          %3826 = sbr.rel (%p3824) target = $region100
        $region99: #{tpu_custom_call.1} parent=91 // pred_region
          %s3827 = smul.u32 16, %s26
          %p3828 = scmp.lt.s32.totalorder %s3827, 63
          %s3829 = scalar_select %p3828, %s3827, 63
          %s3830 = smul.addr %s3829, 8
          %s3831 = scalar_lea.vmem %s9, %s3830
        $region100: #{tpu_custom_call.1} parent=91 // pred_fallthru
          _
      $region92: #{tpu_custom_call.1} parent=5 // pred_fallthru
        _
    $region6: #{tpu_custom_call.1} parent=1 // loop_footer
      %s24 = sadd.s32 1, %s20
    $region7: #{tpu_custom_call.1} parent=1 // loop_footer_branch
      %19 = sbr.rel target = $region3
    $region8: #{tpu_custom_call.1} parent=1 // loop_exit
      _
    %3832 = vsyncpa [#allocation3], 1
    %s3833 = scalar_lea.sflag [#allocation3], 1
    %3834 = vsyncpa %s3833, 1
    %3835 = vsyncpa [#allocation5], 1
    %3836 = vsyncpa [#allocation8], 1
    %3837 = vsyncpa [#allocation11], 1

</llo_original>
